<compile_context>
chip_gen: v7x
topology: tpu7x:2x2x1
jax: 0.10.0
libtpu: 0.0.40
codegen_flags: <defaults>
</compile_context>

<pallas_src>
import functools

import numpy as np
import jax
import jax.numpy as jnp
from jax import lax
from jax.experimental import pallas as pl
from jax.experimental.pallas import tpu as pltpu


# --------------------------------------------------------------------------- #
# Static shape helpers                                                        #
# --------------------------------------------------------------------------- #
def conv_out_size(size, k, pad, stride):
    return (size + 2 * pad - k) // stride + 1


def avgpool_out_size(size, k, pad, stride):
    # PyTorch AvgPool2d, ceil_mode=True
    out = -(-(size + 2 * pad - k) // stride) + 1
    if (out - 1) * stride >= size + pad:
        out -= 1
    return out


def avg_inv_divisor(H, W, k, pad, stride, OH, OW):
    # count_include_pad=True: divisor = window clipped to the *padded* extent
    # (matches aten::avg_pool2d: hend = min(hstart + k, H + pad)).
    def span(o, size):
        start = o * stride - pad
        end = min(start + k, size + pad)
        return end - start
    div = np.array([[span(i, H) * span(j, W) for j in range(OW)] for i in range(OH)],
                   dtype=np.float32)
    return jnp.asarray(1.0 / div).reshape(OH * OW, 1)


# --------------------------------------------------------------------------- #
# Fused Pallas kernel: conv/BN + avg-pool + q/k/v projections + QK^T          #
# --------------------------------------------------------------------------- #
def fused_self_attn_kernel(xpar_ref, convw_ref, inv_ref,
                           wq_ref, bq_ref, wk_ref, bk_ref, wv_ref, bv_ref,
                           attn_ref, vout_ref, q_scr, kv_scr, *,
                           oh_q, ow_q, oh_kv, ow_kv, num_heads):
    """One batch element per grid step.

    xpar_ref : (1, 4, Hh, Wh, C)  stride-2 space-to-depth layout of the padded
               image:  xpar[0, ph*2+pw, i, j, c] == x_padded[2*i+ph, 2*j+pw, c]
    convw_ref: (9, 1, 1, C)       depthwise conv taps (per-channel)
    inv_ref  : (Tkv, 1)           per-token 1/avg-pool-divisor
    wq_ref   : (H, C, hd)         q projection, BN affine + attn scale folded in
    bq_ref   : (H, 1, hd)
    wk_ref   : (H, C, hd), bk_ref: (H, 1, hd)
    wv_ref   : (C, D),     bv_ref: (1, D)
    attn_ref : (1, H, Tq, Tkv)    output attention scores
    vout_ref : (1, Tkv, D)        output v, lane-dense (head split in wrapper)
    q_scr    : VMEM (Tq, C), kv_scr: VMEM (Tkv, C)  token-major scratch
    """
    C = xpar_ref.shape[-1]

    # ---- fused depthwise 3x3/s2 conv (q) + ceil-mode 3x3/s2 avg-pool (k/v) ----
    # Every tap (dh, dw) is a contiguous static window of one parity plane, so
    # x is streamed HBM->VMEM exactly once (no 9x im2col blow-up).
    q_acc = jnp.zeros((oh_q, ow_q, C), jnp.float32)
    kv_acc = jnp.zeros((oh_kv, ow_kv, C), jnp.float32)
    for dh in range(3):
        for dw in range(3):
            p = (dh % 2) * 2 + (dw % 2)
            r0, c0 = dh // 2, dw // 2
            tap_kv = xpar_ref[0, p, r0:r0 + oh_kv, c0:c0 + ow_kv, :]   # (oh_kv, ow_kv, C)
            tap_q = xpar_ref[0, p, r0:r0 + oh_q, c0:c0 + ow_q, :]      # (oh_q,  ow_q,  C)
            kv_acc = kv_acc + tap_kv
            q_acc = q_acc + tap_q * convw_ref[dh * 3 + dw]

    # ---- flatten the spatial grids to token-major (T, C) via VMEM scratch ----
    # (row-wise stores avoid in-kernel vector reshapes across sublane tiles)
    for i in range(oh_q):
        q_scr[pl.ds(i * ow_q, ow_q), :] = q_acc[i]
    for i in range(oh_kv):
        kv_scr[pl.ds(i * ow_kv, ow_kv), :] = kv_acc[i]

    q_tok = q_scr[...]                       # (Tq, C); BN + scale folded into wq/bq
    kv_tok = kv_scr[...] * inv_ref[...]      # (Tkv, C); pool divisor applied once

    # ---- projections (MXU, f32 accumulate) + per-head QK^T ----
    v = jnp.dot(kv_tok, wv_ref[...], preferred_element_type=jnp.float32) + bv_ref[...]
    vout_ref[0] = v                          # lane-dense (Tkv, D) store

    for hh in range(num_heads):              # static unroll; weights pre-split per head
        qh = jnp.dot(q_tok, wq_ref[hh], preferred_element_type=jnp.float32) + bq_ref[hh]
        kh = jnp.dot(kv_tok, wk_ref[hh], preferred_element_type=jnp.float32) + bk_ref[hh]
        # contract over the head feature dim; scale already folded into wq/bq
        attn_ref[0, hh] = lax.dot_general(
            qh, kh, (((1,), (1,)), ((), ())), preferred_element_type=jnp.float32)


# --------------------------------------------------------------------------- #
# Wrapper: layout prep + constant folding + pallas_call                       #
# --------------------------------------------------------------------------- #
def self_attention_forward(x, h, w, params, num_heads,
                           kernel_size=3, padding=1, stride=2):
    assert kernel_size == 3 and stride == 2 and padding == 1, \
        "parity (space-to-depth) layout below is specialized to k=3, s=2, p=1"
    B, T, C = x.shape
    D = params["wq"].shape[1]
    head_dim = D // num_heads
    scale = float(D) ** -0.5

    oh_q = conv_out_size(h, kernel_size, padding, stride)
    ow_q = conv_out_size(w, kernel_size, padding, stride)
    oh_kv = avgpool_out_size(h, kernel_size, padding, stride)
    ow_kv = avgpool_out_size(w, kernel_size, padding, stride)
    tq, tkv = oh_q * ow_q, oh_kv * ow_kv

    # ---- fold eval-mode BN affine + attention scale into the q projection ----
    eps = 1e-5
    bn_scale = params["bn_gamma"] / jnp.sqrt(params["bn_var"] + eps)
    bn_shift = params["bn_beta"] - params["bn_mean"] * bn_scale
    wq_f = (bn_scale[:, None] * params["wq"]) * scale            # (C, D)
    bq_f = (params["bq"] + bn_shift @ params["wq"]) * scale      # (D,)

    # per-head weight layout (H, C, hd): kernel indexes the head axis, never
    # slices the lane dimension.
    def per_head(wmat, bvec):
        wh = wmat.reshape(C, num_heads, head_dim).transpose(1, 0, 2)
        bh = bvec.reshape(num_heads, 1, head_dim)
        return wh, bh

    wq_h, bq_h = per_head(wq_f, bq_f)
    wk_h, bk_h = per_head(params["wk"], params["bk"])

    # ---- stride-2 space-to-depth ("parity") layout of the zero-padded image --
    # Same total bytes as x; gives every conv/pool tap as a contiguous window.
    hh_par, wh_par = oh_kv + 1, ow_kv + 1
    pad_h_after = 2 * hh_par - h - padding
    pad_w_after = 2 * wh_par - w - padding
    x_nhwc = x.reshape(B, h, w, C)
    xpad = jnp.pad(x_nhwc, ((0, 0), (padding, pad_h_after),
                            (padding, pad_w_after), (0, 0)))
    xpar = (xpad.reshape(B, hh_par, 2, wh_par, 2, C)
                .transpose(0, 2, 4, 1, 3, 5)
                .reshape(B, 4, hh_par, wh_par, C))

    inv_div = avg_inv_divisor(h, w, kernel_size, padding, stride, oh_kv, ow_kv)
    convw = params["conv_w"].reshape(kernel_size * kernel_size, 1, 1, C)
    bv = params["bv"].reshape(1, D)

    kern = functools.partial(fused_self_attn_kernel,
                             oh_q=oh_q, ow_q=ow_q, oh_kv=oh_kv, ow_kv=ow_kv,
                             num_heads=num_heads)

    # NOTE: attn's last dim (Tkv) is not a 128-multiple for typical CvT token
    # counts; padding it to 128 lanes would require an extra full pass over the
    # largest output, so it is written in its natural layout here.
    attn, v_dense = pl.pallas_call(
        kern,
        out_shape=(jax.ShapeDtypeStruct((B, num_heads, tq, tkv), jnp.float32),
                   jax.ShapeDtypeStruct((B, tkv, D), jnp.float32)),
        grid=(B,),
        in_specs=[
            pl.BlockSpec((1, 4, hh_par, wh_par, C), lambda b: (b, 0, 0, 0, 0)),
            pl.BlockSpec((kernel_size * kernel_size, 1, 1, C), lambda b: (0, 0, 0, 0)),
            pl.BlockSpec((tkv, 1), lambda b: (0, 0)),
            pl.BlockSpec((num_heads, C, head_dim), lambda b: (0, 0, 0)),
            pl.BlockSpec((num_heads, 1, head_dim), lambda b: (0, 0, 0)),
            pl.BlockSpec((num_heads, C, head_dim), lambda b: (0, 0, 0)),
            pl.BlockSpec((num_heads, 1, head_dim), lambda b: (0, 0, 0)),
            pl.BlockSpec((C, D), lambda b: (0, 0)),
            pl.BlockSpec((1, D), lambda b: (0, 0)),
        ],
        out_specs=(pl.BlockSpec((1, num_heads, tq, tkv), lambda b: (b, 0, 0, 0)),
                   pl.BlockSpec((1, tkv, D), lambda b: (b, 0, 0))),
        scratch_shapes=[pltpu.VMEM((tq, C), jnp.float32),
                        pltpu.VMEM((tkv, C), jnp.float32)],
        compiler_params=pltpu.CompilerParams(dimension_semantics=("parallel",)),
    )(xpar, convw, inv_div, wq_h, bq_h, wk_h, bk_h, params["wv"], bv)

    # head split of v is pure layout plumbing -> done here so the kernel stores
    # a lane-dense (Tkv, D) slab instead of per-head (Tkv, head_dim) slivers.
    v = v_dense.reshape(B, tkv, num_heads, head_dim).transpose(0, 2, 1, 3)
    return attn, v


# --------------------------------------------------------------------------- #
# Pure-JAX reference (independent of the kernel's parity/fold tricks)         #
# --------------------------------------------------------------------------- #
def reference_forward(x, h, w, params, num_heads,
                      kernel_size=3, padding=1, stride=2):
    B, T, C = x.shape
    D = params["wq"].shape[1]
    hd = D // num_heads
    scale = float(D) ** -0.5
    x_nhwc = x.reshape(B, h, w, C)

    oh_q = conv_out_size(h, kernel_size, padding, stride)
    ow_q = conv_out_size(w, kernel_size, padding, stride)
    oh_kv = avgpool_out_size(h, kernel_size, padding, stride)
    ow_kv = avgpool_out_size(w, kernel_size, padding, stride)

    # depthwise conv + eval-mode BN
    xc = jnp.pad(x_nhwc, ((0, 0), (padding, padding), (padding, padding), (0, 0)))
    conv = jnp.zeros((B, oh_q, ow_q, C), jnp.float32)
    for dh in range(kernel_size):
        for dw in range(kernel_size):
            conv = conv + (xc[:, dh:dh + stride * (oh_q - 1) + 1:stride,
                              dw:dw + stride * (ow_q - 1) + 1:stride, :]
                           * params["conv_w"][dh, dw])
    eps = 1e-5
    bn_scale = params["bn_gamma"] / jnp.sqrt(params["bn_var"] + eps)
    bn_shift = params["bn_beta"] - params["bn_mean"] * bn_scale
    q_tok = (conv * bn_scale + bn_shift).reshape(B, oh_q * ow_q, C)

    # ceil-mode avg pool, count_include_pad=True
    need_h = stride * (oh_kv - 1) + kernel_size
    need_w = stride * (ow_kv - 1) + kernel_size
    xp = jnp.pad(x_nhwc, ((0, 0), (padding, need_h - h - padding),
                          (padding, need_w - w - padding), (0, 0)))
    pool = jnp.zeros((B, oh_kv, ow_kv, C), jnp.float32)
    for dh in range(kernel_size):
        for dw in range(kernel_size):
            pool = pool + xp[:, dh:dh + stride * (oh_kv - 1) + 1:stride,
                             dw:dw + stride * (ow_kv - 1) + 1:stride, :]
    kv_tok = pool.reshape(B, oh_kv * ow_kv, C) * avg_inv_divisor(
        h, w, kernel_size, padding, stride, oh_kv, ow_kv)

    def proj(tok, wn, bn_):
        y = tok @ params[wn] + params[bn_]
        return y.reshape(B, -1, num_heads, hd).transpose(0, 2, 1, 3)

    q = proj(q_tok, "wq", "bq")
    k = proj(kv_tok, "wk", "bk")
    v = proj(kv_tok, "wv", "bv")
    attn = jnp.einsum("bhld,bhtd->bhlt", q, k) * scale
    return attn, v


# --------------------------------------------------------------------------- #
if __name__ == "__main__":
    key = jax.random.PRNGKey(0)
    B, dim_in, dim_out, num_heads = 2, 16, 32, 4
    h = w = 16
    T = h * w

    ks = jax.random.split(key, 14)
    x = jax.random.normal(ks[0], (B, T, dim_in), jnp.float32)

    params = {
        # depthwise conv weight, stored as (kh, kw, C)   (PyTorch: (C, 1, kh, kw))
        "conv_w": 0.2 * jax.random.normal(ks[1], (3, 3, dim_in), jnp.float32),
        "bn_gamma": 1.0 + 0.1 * jax.random.normal(ks[2], (dim_in,), jnp.float32),
        "bn_beta": 0.1 * jax.random.normal(ks[3], (dim_in,), jnp.float32),
        "bn_mean": 0.1 * jax.random.normal(ks[4], (dim_in,), jnp.float32),
        "bn_var": jnp.abs(jax.random.normal(ks[5], (dim_in,), jnp.float32)) + 0.5,
        # Linear weights stored as (in, out) = W_pytorch.T
        "wq": (dim_in ** -0.5) * jax.random.normal(ks[6], (dim_in, dim_out), jnp.float32),
        "bq": 0.1 * jax.random.normal(ks[7], (dim_out,), jnp.float32),
        "wk": (dim_in ** -0.5) * jax.random.normal(ks[8], (dim_in, dim_out), jnp.float32),
        "bk": 0.1 * jax.random.normal(ks[9], (dim_out,), jnp.float32),
        "wv": (dim_in ** -0.5) * jax.random.normal(ks[10], (dim_in, dim_out), jnp.float32),
        "bv": 0.1 * jax.random.normal(ks[11], (dim_out,), jnp.float32),
    }

    attn, v = self_attention_forward(x, h, w, params, num_heads)
    jax.block_until_ready((attn, v))

    attn_ref, v_ref = reference_forward(x, h, w, params, num_heads)
    np.testing.assert_allclose(np.asarray(attn), np.asarray(attn_ref),
                               rtol=1e-3, atol=1e-3)
    np.testing.assert_allclose(np.asarray(v), np.asarray(v_ref),
                               rtol=1e-3, atol=1e-3)

    print("KERNEL_OK")
</pallas_src>

<mosaic_0001>
module attributes {stable_mosaic.version = 11 : i64} {
  func.func @fused_self_attn_kernel(%arg0: i32, %arg1: memref<1x4x10x10x16xf32, #tpu.memory_space<vmem>>, %arg2: memref<9x1x1x16xf32, #tpu.memory_space<vmem>>, %arg3: memref<81x1xf32, #tpu.memory_space<vmem>>, %arg4: memref<4x16x8xf32, #tpu.memory_space<vmem>>, %arg5: memref<4x1x8xf32, #tpu.memory_space<vmem>>, %arg6: memref<4x16x8xf32, #tpu.memory_space<vmem>>, %arg7: memref<4x1x8xf32, #tpu.memory_space<vmem>>, %arg8: memref<16x32xf32, #tpu.memory_space<vmem>>, %arg9: memref<1x32xf32, #tpu.memory_space<vmem>>, %arg10: memref<1x4x64x81xf32, #tpu.memory_space<vmem>>, %arg11: memref<1x81x32xf32, #tpu.memory_space<vmem>>, %arg12: memref<64x16xf32, #tpu.memory_space<vmem>>, %arg13: memref<81x16xf32, #tpu.memory_space<vmem>>) attributes {dimension_semantics = [#tpu.dimension_semantics<parallel>], iteration_bounds = array<i64: 2>, scalar_prefetch = 0 : i64, scratch_operands = 2 : i64, tpu.core_type = #tpu.core_type<tc>, window_params = [{transform_indices = @transform_0, window_bounds = array<i64: 1, 4, 10, 10, 16>}, {pipeline_mode = #tpu.pipeline_mode<synchronous>, transform_indices = @transform_1, window_bounds = array<i64: 9, 1, 1, 16>}, {pipeline_mode = #tpu.pipeline_mode<synchronous>, transform_indices = @transform_2, window_bounds = array<i64: 81, 1>}, {pipeline_mode = #tpu.pipeline_mode<synchronous>, transform_indices = @transform_3, window_bounds = array<i64: 4, 16, 8>}, {pipeline_mode = #tpu.pipeline_mode<synchronous>, transform_indices = @transform_4, window_bounds = array<i64: 4, 1, 8>}, {pipeline_mode = #tpu.pipeline_mode<synchronous>, transform_indices = @transform_5, window_bounds = array<i64: 4, 16, 8>}, {pipeline_mode = #tpu.pipeline_mode<synchronous>, transform_indices = @transform_6, window_bounds = array<i64: 4, 1, 8>}, {pipeline_mode = #tpu.pipeline_mode<synchronous>, transform_indices = @transform_7, window_bounds = array<i64: 16, 32>}, {pipeline_mode = #tpu.pipeline_mode<synchronous>, transform_indices = @transform_8, window_bounds = array<i64: 1, 32>}, {transform_indices = @transform_9, window_bounds = array<i64: 1, 4, 64, 81>}, {transform_indices = @transform_10, window_bounds = array<i64: 1, 81, 32>}]} {
    %cst = arith.constant 0.000000e+00 : f32
    %0 = vector.broadcast %cst : f32 to vector<8x8x16xf32>
    %cst_0 = arith.constant 0.000000e+00 : f32
    %1 = vector.broadcast %cst_0 : f32 to vector<9x9x16xf32>
    %c0 = arith.constant 0 : index
    %c0_1 = arith.constant 0 : index
    %c0_2 = arith.constant 0 : index
    %c0_3 = arith.constant 0 : index
    %c0_4 = arith.constant 0 : index
    %2 = vector.load %arg1[%c0, %c0_1, %c0_2, %c0_3, %c0_4] : memref<1x4x10x10x16xf32, #tpu.memory_space<vmem>>, vector<1x1x9x9x16xf32>
    %3 = vector.shape_cast %2 : vector<1x1x9x9x16xf32> to vector<9x9x16xf32>
    %c0_5 = arith.constant 0 : index
    %c0_6 = arith.constant 0 : index
    %c0_7 = arith.constant 0 : index
    %c0_8 = arith.constant 0 : index
    %c0_9 = arith.constant 0 : index
    %4 = vector.load %arg1[%c0_5, %c0_6, %c0_7, %c0_8, %c0_9] : memref<1x4x10x10x16xf32, #tpu.memory_space<vmem>>, vector<1x1x8x8x16xf32>
    %5 = vector.shape_cast %4 : vector<1x1x8x8x16xf32> to vector<8x8x16xf32>
    %6 = arith.addf %1, %3 : vector<9x9x16xf32>
    %c0_10 = arith.constant 0 : index
    %c0_11 = arith.constant 0 : index
    %c0_12 = arith.constant 0 : index
    %c0_13 = arith.constant 0 : index
    %7 = vector.load %arg2[%c0_10, %c0_11, %c0_12, %c0_13] : memref<9x1x1x16xf32, #tpu.memory_space<vmem>>, vector<1x1x1x16xf32>
    %8 = vector.shape_cast %7 : vector<1x1x1x16xf32> to vector<1x1x16xf32>
    %9 = vector.broadcast %8 : vector<1x1x16xf32> to vector<8x8x16xf32>
    %10 = arith.mulf %5, %9 : vector<8x8x16xf32>
    %11 = arith.addf %0, %10 : vector<8x8x16xf32>
    %c0_14 = arith.constant 0 : index
    %c1 = arith.constant 1 : index
    %c0_15 = arith.constant 0 : index
    %c0_16 = arith.constant 0 : index
    %c0_17 = arith.constant 0 : index
    %12 = vector.load %arg1[%c0_14, %c1, %c0_15, %c0_16, %c0_17] : memref<1x4x10x10x16xf32, #tpu.memory_space<vmem>>, vector<1x1x9x9x16xf32>
    %13 = vector.shape_cast %12 : vector<1x1x9x9x16xf32> to vector<9x9x16xf32>
    %c0_18 = arith.constant 0 : index
    %c1_19 = arith.constant 1 : index
    %c0_20 = arith.constant 0 : index
    %c0_21 = arith.constant 0 : index
    %c0_22 = arith.constant 0 : index
    %14 = vector.load %arg1[%c0_18, %c1_19, %c0_20, %c0_21, %c0_22] : memref<1x4x10x10x16xf32, #tpu.memory_space<vmem>>, vector<1x1x8x8x16xf32>
    %15 = vector.shape_cast %14 : vector<1x1x8x8x16xf32> to vector<8x8x16xf32>
    %16 = arith.addf %6, %13 : vector<9x9x16xf32>
    %c1_23 = arith.constant 1 : index
    %c0_24 = arith.constant 0 : index
    %c0_25 = arith.constant 0 : index
    %c0_26 = arith.constant 0 : index
    %17 = vector.load %arg2[%c1_23, %c0_24, %c0_25, %c0_26] : memref<9x1x1x16xf32, #tpu.memory_space<vmem>>, vector<1x1x1x16xf32>
    %18 = vector.shape_cast %17 : vector<1x1x1x16xf32> to vector<1x1x16xf32>
    %19 = vector.broadcast %18 : vector<1x1x16xf32> to vector<8x8x16xf32>
    %20 = arith.mulf %15, %19 : vector<8x8x16xf32>
    %21 = arith.addf %11, %20 : vector<8x8x16xf32>
    %c0_27 = arith.constant 0 : index
    %c0_28 = arith.constant 0 : index
    %c0_29 = arith.constant 0 : index
    %c1_30 = arith.constant 1 : index
    %c0_31 = arith.constant 0 : index
    %22 = vector.load %arg1[%c0_27, %c0_28, %c0_29, %c1_30, %c0_31] : memref<1x4x10x10x16xf32, #tpu.memory_space<vmem>>, vector<1x1x9x9x16xf32>
    %23 = vector.shape_cast %22 : vector<1x1x9x9x16xf32> to vector<9x9x16xf32>
    %c0_32 = arith.constant 0 : index
    %c0_33 = arith.constant 0 : index
    %c0_34 = arith.constant 0 : index
    %c1_35 = arith.constant 1 : index
    %c0_36 = arith.constant 0 : index
    %24 = vector.load %arg1[%c0_32, %c0_33, %c0_34, %c1_35, %c0_36] : memref<1x4x10x10x16xf32, #tpu.memory_space<vmem>>, vector<1x1x8x8x16xf32>
    %25 = vector.shape_cast %24 : vector<1x1x8x8x16xf32> to vector<8x8x16xf32>
    %26 = arith.addf %16, %23 : vector<9x9x16xf32>
    %c2 = arith.constant 2 : index
    %c0_37 = arith.constant 0 : index
    %c0_38 = arith.constant 0 : index
    %c0_39 = arith.constant 0 : index
    %27 = vector.load %arg2[%c2, %c0_37, %c0_38, %c0_39] : memref<9x1x1x16xf32, #tpu.memory_space<vmem>>, vector<1x1x1x16xf32>
    %28 = vector.shape_cast %27 : vector<1x1x1x16xf32> to vector<1x1x16xf32>
    %29 = vector.broadcast %28 : vector<1x1x16xf32> to vector<8x8x16xf32>
    %30 = arith.mulf %25, %29 : vector<8x8x16xf32>
    %31 = arith.addf %21, %30 : vector<8x8x16xf32>
    %c0_40 = arith.constant 0 : index
    %c2_41 = arith.constant 2 : index
    %c0_42 = arith.constant 0 : index
    %c0_43 = arith.constant 0 : index
    %c0_44 = arith.constant 0 : index
    %32 = vector.load %arg1[%c0_40, %c2_41, %c0_42, %c0_43, %c0_44] : memref<1x4x10x10x16xf32, #tpu.memory_space<vmem>>, vector<1x1x9x9x16xf32>
    %33 = vector.shape_cast %32 : vector<1x1x9x9x16xf32> to vector<9x9x16xf32>
    %c0_45 = arith.constant 0 : index
    %c2_46 = arith.constant 2 : index
    %c0_47 = arith.constant 0 : index
    %c0_48 = arith.constant 0 : index
    %c0_49 = arith.constant 0 : index
    %34 = vector.load %arg1[%c0_45, %c2_46, %c0_47, %c0_48, %c0_49] : memref<1x4x10x10x16xf32, #tpu.memory_space<vmem>>, vector<1x1x8x8x16xf32>
    %35 = vector.shape_cast %34 : vector<1x1x8x8x16xf32> to vector<8x8x16xf32>
    %36 = arith.addf %26, %33 : vector<9x9x16xf32>
    %c3 = arith.constant 3 : index
    %c0_50 = arith.constant 0 : index
    %c0_51 = arith.constant 0 : index
    %c0_52 = arith.constant 0 : index
    %37 = vector.load %arg2[%c3, %c0_50, %c0_51, %c0_52] : memref<9x1x1x16xf32, #tpu.memory_space<vmem>>, vector<1x1x1x16xf32>
    %38 = vector.shape_cast %37 : vector<1x1x1x16xf32> to vector<1x1x16xf32>
    %39 = vector.broadcast %38 : vector<1x1x16xf32> to vector<8x8x16xf32>
    %40 = arith.mulf %35, %39 : vector<8x8x16xf32>
    %41 = arith.addf %31, %40 : vector<8x8x16xf32>
    %c0_53 = arith.constant 0 : index
    %c3_54 = arith.constant 3 : index
    %c0_55 = arith.constant 0 : index
    %c0_56 = arith.constant 0 : index
    %c0_57 = arith.constant 0 : index
    %42 = vector.load %arg1[%c0_53, %c3_54, %c0_55, %c0_56, %c0_57] : memref<1x4x10x10x16xf32, #tpu.memory_space<vmem>>, vector<1x1x9x9x16xf32>
    %43 = vector.shape_cast %42 : vector<1x1x9x9x16xf32> to vector<9x9x16xf32>
    %c0_58 = arith.constant 0 : index
    %c3_59 = arith.constant 3 : index
    %c0_60 = arith.constant 0 : index
    %c0_61 = arith.constant 0 : index
    %c0_62 = arith.constant 0 : index
    %44 = vector.load %arg1[%c0_58, %c3_59, %c0_60, %c0_61, %c0_62] : memref<1x4x10x10x16xf32, #tpu.memory_space<vmem>>, vector<1x1x8x8x16xf32>
    %45 = vector.shape_cast %44 : vector<1x1x8x8x16xf32> to vector<8x8x16xf32>
    %46 = arith.addf %36, %43 : vector<9x9x16xf32>
    %c4 = arith.constant 4 : index
    %c0_63 = arith.constant 0 : index
    %c0_64 = arith.constant 0 : index
    %c0_65 = arith.constant 0 : index
    %47 = vector.load %arg2[%c4, %c0_63, %c0_64, %c0_65] : memref<9x1x1x16xf32, #tpu.memory_space<vmem>>, vector<1x1x1x16xf32>
    %48 = vector.shape_cast %47 : vector<1x1x1x16xf32> to vector<1x1x16xf32>
    %49 = vector.broadcast %48 : vector<1x1x16xf32> to vector<8x8x16xf32>
    %50 = arith.mulf %45, %49 : vector<8x8x16xf32>
    %51 = arith.addf %41, %50 : vector<8x8x16xf32>
    %c0_66 = arith.constant 0 : index
    %c2_67 = arith.constant 2 : index
    %c0_68 = arith.constant 0 : index
    %c1_69 = arith.constant 1 : index
    %c0_70 = arith.constant 0 : index
    %52 = vector.load %arg1[%c0_66, %c2_67, %c0_68, %c1_69, %c0_70] : memref<1x4x10x10x16xf32, #tpu.memory_space<vmem>>, vector<1x1x9x9x16xf32>
    %53 = vector.shape_cast %52 : vector<1x1x9x9x16xf32> to vector<9x9x16xf32>
    %c0_71 = arith.constant 0 : index
    %c2_72 = arith.constant 2 : index
    %c0_73 = arith.constant 0 : index
    %c1_74 = arith.constant 1 : index
    %c0_75 = arith.constant 0 : index
    %54 = vector.load %arg1[%c0_71, %c2_72, %c0_73, %c1_74, %c0_75] : memref<1x4x10x10x16xf32, #tpu.memory_space<vmem>>, vector<1x1x8x8x16xf32>
    %55 = vector.shape_cast %54 : vector<1x1x8x8x16xf32> to vector<8x8x16xf32>
    %56 = arith.addf %46, %53 : vector<9x9x16xf32>
    %c5 = arith.constant 5 : index
    %c0_76 = arith.constant 0 : index
    %c0_77 = arith.constant 0 : index
    %c0_78 = arith.constant 0 : index
    %57 = vector.load %arg2[%c5, %c0_76, %c0_77, %c0_78] : memref<9x1x1x16xf32, #tpu.memory_space<vmem>>, vector<1x1x1x16xf32>
    %58 = vector.shape_cast %57 : vector<1x1x1x16xf32> to vector<1x1x16xf32>
    %59 = vector.broadcast %58 : vector<1x1x16xf32> to vector<8x8x16xf32>
    %60 = arith.mulf %55, %59 : vector<8x8x16xf32>
    %61 = arith.addf %51, %60 : vector<8x8x16xf32>
    %c0_79 = arith.constant 0 : index
    %c0_80 = arith.constant 0 : index
    %c1_81 = arith.constant 1 : index
    %c0_82 = arith.constant 0 : index
    %c0_83 = arith.constant 0 : index
    %62 = vector.load %arg1[%c0_79, %c0_80, %c1_81, %c0_82, %c0_83] : memref<1x4x10x10x16xf32, #tpu.memory_space<vmem>>, vector<1x1x9x9x16xf32>
    %63 = vector.shape_cast %62 : vector<1x1x9x9x16xf32> to vector<9x9x16xf32>
    %c0_84 = arith.constant 0 : index
    %c0_85 = arith.constant 0 : index
    %c1_86 = arith.constant 1 : index
    %c0_87 = arith.constant 0 : index
    %c0_88 = arith.constant 0 : index
    %64 = vector.load %arg1[%c0_84, %c0_85, %c1_86, %c0_87, %c0_88] : memref<1x4x10x10x16xf32, #tpu.memory_space<vmem>>, vector<1x1x8x8x16xf32>
    %65 = vector.shape_cast %64 : vector<1x1x8x8x16xf32> to vector<8x8x16xf32>
    %66 = arith.addf %56, %63 : vector<9x9x16xf32>
    %c6 = arith.constant 6 : index
    %c0_89 = arith.constant 0 : index
    %c0_90 = arith.constant 0 : index
    %c0_91 = arith.constant 0 : index
    %67 = vector.load %arg2[%c6, %c0_89, %c0_90, %c0_91] : memref<9x1x1x16xf32, #tpu.memory_space<vmem>>, vector<1x1x1x16xf32>
    %68 = vector.shape_cast %67 : vector<1x1x1x16xf32> to vector<1x1x16xf32>
    %69 = vector.broadcast %68 : vector<1x1x16xf32> to vector<8x8x16xf32>
    %70 = arith.mulf %65, %69 : vector<8x8x16xf32>
    %71 = arith.addf %61, %70 : vector<8x8x16xf32>
    %c0_92 = arith.constant 0 : index
    %c1_93 = arith.constant 1 : index
    %c1_94 = arith.constant 1 : index
    %c0_95 = arith.constant 0 : index
    %c0_96 = arith.constant 0 : index
    %72 = vector.load %arg1[%c0_92, %c1_93, %c1_94, %c0_95, %c0_96] : memref<1x4x10x10x16xf32, #tpu.memory_space<vmem>>, vector<1x1x9x9x16xf32>
    %73 = vector.shape_cast %72 : vector<1x1x9x9x16xf32> to vector<9x9x16xf32>
    %c0_97 = arith.constant 0 : index
    %c1_98 = arith.constant 1 : index
    %c1_99 = arith.constant 1 : index
    %c0_100 = arith.constant 0 : index
    %c0_101 = arith.constant 0 : index
    %74 = vector.load %arg1[%c0_97, %c1_98, %c1_99, %c0_100, %c0_101] : memref<1x4x10x10x16xf32, #tpu.memory_space<vmem>>, vector<1x1x8x8x16xf32>
    %75 = vector.shape_cast %74 : vector<1x1x8x8x16xf32> to vector<8x8x16xf32>
    %76 = arith.addf %66, %73 : vector<9x9x16xf32>
    %c7 = arith.constant 7 : index
    %c0_102 = arith.constant 0 : index
    %c0_103 = arith.constant 0 : index
    %c0_104 = arith.constant 0 : index
    %77 = vector.load %arg2[%c7, %c0_102, %c0_103, %c0_104] : memref<9x1x1x16xf32, #tpu.memory_space<vmem>>, vector<1x1x1x16xf32>
    %78 = vector.shape_cast %77 : vector<1x1x1x16xf32> to vector<1x1x16xf32>
    %79 = vector.broadcast %78 : vector<1x1x16xf32> to vector<8x8x16xf32>
    %80 = arith.mulf %75, %79 : vector<8x8x16xf32>
    %81 = arith.addf %71, %80 : vector<8x8x16xf32>
    %c0_105 = arith.constant 0 : index
    %c0_106 = arith.constant 0 : index
    %c1_107 = arith.constant 1 : index
    %c1_108 = arith.constant 1 : index
    %c0_109 = arith.constant 0 : index
    %82 = vector.load %arg1[%c0_105, %c0_106, %c1_107, %c1_108, %c0_109] : memref<1x4x10x10x16xf32, #tpu.memory_space<vmem>>, vector<1x1x9x9x16xf32>
    %83 = vector.shape_cast %82 : vector<1x1x9x9x16xf32> to vector<9x9x16xf32>
    %c0_110 = arith.constant 0 : index
    %c0_111 = arith.constant 0 : index
    %c1_112 = arith.constant 1 : index
    %c1_113 = arith.constant 1 : index
    %c0_114 = arith.constant 0 : index
    %84 = vector.load %arg1[%c0_110, %c0_111, %c1_112, %c1_113, %c0_114] : memref<1x4x10x10x16xf32, #tpu.memory_space<vmem>>, vector<1x1x8x8x16xf32>
    %85 = vector.shape_cast %84 : vector<1x1x8x8x16xf32> to vector<8x8x16xf32>
    %86 = arith.addf %76, %83 : vector<9x9x16xf32>
    %c8 = arith.constant 8 : index
    %c0_115 = arith.constant 0 : index
    %c0_116 = arith.constant 0 : index
    %c0_117 = arith.constant 0 : index
    %87 = vector.load %arg2[%c8, %c0_115, %c0_116, %c0_117] : memref<9x1x1x16xf32, #tpu.memory_space<vmem>>, vector<1x1x1x16xf32>
    %88 = vector.shape_cast %87 : vector<1x1x1x16xf32> to vector<1x1x16xf32>
    %89 = vector.broadcast %88 : vector<1x1x16xf32> to vector<8x8x16xf32>
    %90 = arith.mulf %85, %89 : vector<8x8x16xf32>
    %91 = arith.addf %81, %90 : vector<8x8x16xf32>
    %92 = vector.extract_strided_slice %91 {offsets = [0, 0, 0], sizes = [1, 8, 16], strides = [1, 1, 1]} : vector<8x8x16xf32> to vector<1x8x16xf32>
    %93 = vector.shape_cast %92 : vector<1x8x16xf32> to vector<8x16xf32>
    %c0_118 = arith.constant 0 : index
    %c0_119 = arith.constant 0 : index
    %94 = vector.load %arg12[%c0_118, %c0_119] : memref<64x16xf32, #tpu.memory_space<vmem>>, vector<8x16xf32>
    tpu.vector_store %arg12[%c0_118, %c0_119], %93 {strides = array<i32>} : memref<64x16xf32, #tpu.memory_space<vmem>>, vector<8x16xf32>,
    %95 = vector.extract_strided_slice %91 {offsets = [1, 0, 0], sizes = [1, 8, 16], strides = [1, 1, 1]} : vector<8x8x16xf32> to vector<1x8x16xf32>
    %96 = vector.shape_cast %95 : vector<1x8x16xf32> to vector<8x16xf32>
    %c8_120 = arith.constant 8 : index
    %c0_121 = arith.constant 0 : index
    %97 = vector.load %arg12[%c8_120, %c0_121] : memref<64x16xf32, #tpu.memory_space<vmem>>, vector<8x16xf32>
    tpu.vector_store %arg12[%c8_120, %c0_121], %96 {strides = array<i32>} : memref<64x16xf32, #tpu.memory_space<vmem>>, vector<8x16xf32>,
    %98 = vector.extract_strided_slice %91 {offsets = [2, 0, 0], sizes = [1, 8, 16], strides = [1, 1, 1]} : vector<8x8x16xf32> to vector<1x8x16xf32>
    %99 = vector.shape_cast %98 : vector<1x8x16xf32> to vector<8x16xf32>
    %c16 = arith.constant 16 : index
    %c0_122 = arith.constant 0 : index
    %100 = vector.load %arg12[%c16, %c0_122] : memref<64x16xf32, #tpu.memory_space<vmem>>, vector<8x16xf32>
    tpu.vector_store %arg12[%c16, %c0_122], %99 {strides = array<i32>} : memref<64x16xf32, #tpu.memory_space<vmem>>, vector<8x16xf32>,
    %101 = vector.extract_strided_slice %91 {offsets = [3, 0, 0], sizes = [1, 8, 16], strides = [1, 1, 1]} : vector<8x8x16xf32> to vector<1x8x16xf32>
    %102 = vector.shape_cast %101 : vector<1x8x16xf32> to vector<8x16xf32>
    %c24 = arith.constant 24 : index
    %c0_123 = arith.constant 0 : index
    %103 = vector.load %arg12[%c24, %c0_123] : memref<64x16xf32, #tpu.memory_space<vmem>>, vector<8x16xf32>
    tpu.vector_store %arg12[%c24, %c0_123], %102 {strides = array<i32>} : memref<64x16xf32, #tpu.memory_space<vmem>>, vector<8x16xf32>,
    %104 = vector.extract_strided_slice %91 {offsets = [4, 0, 0], sizes = [1, 8, 16], strides = [1, 1, 1]} : vector<8x8x16xf32> to vector<1x8x16xf32>
    %105 = vector.shape_cast %104 : vector<1x8x16xf32> to vector<8x16xf32>
    %c32 = arith.constant 32 : index
    %c0_124 = arith.constant 0 : index
    %106 = vector.load %arg12[%c32, %c0_124] : memref<64x16xf32, #tpu.memory_space<vmem>>, vector<8x16xf32>
    tpu.vector_store %arg12[%c32, %c0_124], %105 {strides = array<i32>} : memref<64x16xf32, #tpu.memory_space<vmem>>, vector<8x16xf32>,
    %107 = vector.extract_strided_slice %91 {offsets = [5, 0, 0], sizes = [1, 8, 16], strides = [1, 1, 1]} : vector<8x8x16xf32> to vector<1x8x16xf32>
    %108 = vector.shape_cast %107 : vector<1x8x16xf32> to vector<8x16xf32>
    %c40 = arith.constant 40 : index
    %c0_125 = arith.constant 0 : index
    %109 = vector.load %arg12[%c40, %c0_125] : memref<64x16xf32, #tpu.memory_space<vmem>>, vector<8x16xf32>
    tpu.vector_store %arg12[%c40, %c0_125], %108 {strides = array<i32>} : memref<64x16xf32, #tpu.memory_space<vmem>>, vector<8x16xf32>,
    %110 = vector.extract_strided_slice %91 {offsets = [6, 0, 0], sizes = [1, 8, 16], strides = [1, 1, 1]} : vector<8x8x16xf32> to vector<1x8x16xf32>
    %111 = vector.shape_cast %110 : vector<1x8x16xf32> to vector<8x16xf32>
    %c48 = arith.constant 48 : index
    %c0_126 = arith.constant 0 : index
    %112 = vector.load %arg12[%c48, %c0_126] : memref<64x16xf32, #tpu.memory_space<vmem>>, vector<8x16xf32>
    tpu.vector_store %arg12[%c48, %c0_126], %111 {strides = array<i32>} : memref<64x16xf32, #tpu.memory_space<vmem>>, vector<8x16xf32>,
    %113 = vector.extract_strided_slice %91 {offsets = [7, 0, 0], sizes = [1, 8, 16], strides = [1, 1, 1]} : vector<8x8x16xf32> to vector<1x8x16xf32>
    %114 = vector.shape_cast %113 : vector<1x8x16xf32> to vector<8x16xf32>
    %c56 = arith.constant 56 : index
    %c0_127 = arith.constant 0 : index
    %115 = vector.load %arg12[%c56, %c0_127] : memref<64x16xf32, #tpu.memory_space<vmem>>, vector<8x16xf32>
    tpu.vector_store %arg12[%c56, %c0_127], %114 {strides = array<i32>} : memref<64x16xf32, #tpu.memory_space<vmem>>, vector<8x16xf32>,
    %116 = vector.extract_strided_slice %86 {offsets = [0, 0, 0], sizes = [1, 9, 16], strides = [1, 1, 1]} : vector<9x9x16xf32> to vector<1x9x16xf32>
    %117 = vector.shape_cast %116 : vector<1x9x16xf32> to vector<9x16xf32>
    %c0_128 = arith.constant 0 : index
    %c0_129 = arith.constant 0 : index
    %118 = vector.load %arg13[%c0_128, %c0_129] : memref<81x16xf32, #tpu.memory_space<vmem>>, vector<9x16xf32>
    tpu.vector_store %arg13[%c0_128, %c0_129], %117 {strides = array<i32>} : memref<81x16xf32, #tpu.memory_space<vmem>>, vector<9x16xf32>,
    %119 = vector.extract_strided_slice %86 {offsets = [1, 0, 0], sizes = [1, 9, 16], strides = [1, 1, 1]} : vector<9x9x16xf32> to vector<1x9x16xf32>
    %120 = vector.shape_cast %119 : vector<1x9x16xf32> to vector<9x16xf32>
    %c9 = arith.constant 9 : index
    %c0_130 = arith.constant 0 : index
    %121 = vector.load %arg13[%c9, %c0_130] : memref<81x16xf32, #tpu.memory_space<vmem>>, vector<9x16xf32>
    tpu.vector_store %arg13[%c9, %c0_130], %120 {strides = array<i32>} : memref<81x16xf32, #tpu.memory_space<vmem>>, vector<9x16xf32>,
    %122 = vector.extract_strided_slice %86 {offsets = [2, 0, 0], sizes = [1, 9, 16], strides = [1, 1, 1]} : vector<9x9x16xf32> to vector<1x9x16xf32>
    %123 = vector.shape_cast %122 : vector<1x9x16xf32> to vector<9x16xf32>
    %c18 = arith.constant 18 : index
    %c0_131 = arith.constant 0 : index
    %124 = vector.load %arg13[%c18, %c0_131] : memref<81x16xf32, #tpu.memory_space<vmem>>, vector<9x16xf32>
    tpu.vector_store %arg13[%c18, %c0_131], %123 {strides = array<i32>} : memref<81x16xf32, #tpu.memory_space<vmem>>, vector<9x16xf32>,
    %125 = vector.extract_strided_slice %86 {offsets = [3, 0, 0], sizes = [1, 9, 16], strides = [1, 1, 1]} : vector<9x9x16xf32> to vector<1x9x16xf32>
    %126 = vector.shape_cast %125 : vector<1x9x16xf32> to vector<9x16xf32>
    %c27 = arith.constant 27 : index
    %c0_132 = arith.constant 0 : index
    %127 = vector.load %arg13[%c27, %c0_132] : memref<81x16xf32, #tpu.memory_space<vmem>>, vector<9x16xf32>
    tpu.vector_store %arg13[%c27, %c0_132], %126 {strides = array<i32>} : memref<81x16xf32, #tpu.memory_space<vmem>>, vector<9x16xf32>,
    %128 = vector.extract_strided_slice %86 {offsets = [4, 0, 0], sizes = [1, 9, 16], strides = [1, 1, 1]} : vector<9x9x16xf32> to vector<1x9x16xf32>
    %129 = vector.shape_cast %128 : vector<1x9x16xf32> to vector<9x16xf32>
    %c36 = arith.constant 36 : index
    %c0_133 = arith.constant 0 : index
    %130 = vector.load %arg13[%c36, %c0_133] : memref<81x16xf32, #tpu.memory_space<vmem>>, vector<9x16xf32>
    tpu.vector_store %arg13[%c36, %c0_133], %129 {strides = array<i32>} : memref<81x16xf32, #tpu.memory_space<vmem>>, vector<9x16xf32>,
    %131 = vector.extract_strided_slice %86 {offsets = [5, 0, 0], sizes = [1, 9, 16], strides = [1, 1, 1]} : vector<9x9x16xf32> to vector<1x9x16xf32>
    %132 = vector.shape_cast %131 : vector<1x9x16xf32> to vector<9x16xf32>
    %c45 = arith.constant 45 : index
    %c0_134 = arith.constant 0 : index
    %133 = vector.load %arg13[%c45, %c0_134] : memref<81x16xf32, #tpu.memory_space<vmem>>, vector<9x16xf32>
    tpu.vector_store %arg13[%c45, %c0_134], %132 {strides = array<i32>} : memref<81x16xf32, #tpu.memory_space<vmem>>, vector<9x16xf32>,
    %134 = vector.extract_strided_slice %86 {offsets = [6, 0, 0], sizes = [1, 9, 16], strides = [1, 1, 1]} : vector<9x9x16xf32> to vector<1x9x16xf32>
    %135 = vector.shape_cast %134 : vector<1x9x16xf32> to vector<9x16xf32>
    %c54 = arith.constant 54 : index
    %c0_135 = arith.constant 0 : index
    %136 = vector.load %arg13[%c54, %c0_135] : memref<81x16xf32, #tpu.memory_space<vmem>>, vector<9x16xf32>
    tpu.vector_store %arg13[%c54, %c0_135], %135 {strides = array<i32>} : memref<81x16xf32, #tpu.memory_space<vmem>>, vector<9x16xf32>,
    %137 = vector.extract_strided_slice %86 {offsets = [7, 0, 0], sizes = [1, 9, 16], strides = [1, 1, 1]} : vector<9x9x16xf32> to vector<1x9x16xf32>
    %138 = vector.shape_cast %137 : vector<1x9x16xf32> to vector<9x16xf32>
    %c63 = arith.constant 63 : index
    %c0_136 = arith.constant 0 : index
    %139 = vector.load %arg13[%c63, %c0_136] : memref<81x16xf32, #tpu.memory_space<vmem>>, vector<9x16xf32>
    tpu.vector_store %arg13[%c63, %c0_136], %138 {strides = array<i32>} : memref<81x16xf32, #tpu.memory_space<vmem>>, vector<9x16xf32>,
    %140 = vector.extract_strided_slice %86 {offsets = [8, 0, 0], sizes = [1, 9, 16], strides = [1, 1, 1]} : vector<9x9x16xf32> to vector<1x9x16xf32>
    %141 = vector.shape_cast %140 : vector<1x9x16xf32> to vector<9x16xf32>
    %c72 = arith.constant 72 : index
    %c0_137 = arith.constant 0 : index
    %142 = vector.load %arg13[%c72, %c0_137] : memref<81x16xf32, #tpu.memory_space<vmem>>, vector<9x16xf32>
    tpu.vector_store %arg13[%c72, %c0_137], %141 {strides = array<i32>} : memref<81x16xf32, #tpu.memory_space<vmem>>, vector<9x16xf32>,
    %c0_138 = arith.constant 0 : index
    %c0_139 = arith.constant 0 : index
    %143 = vector.load %arg12[%c0_138, %c0_139] : memref<64x16xf32, #tpu.memory_space<vmem>>, vector<64x16xf32>
    %c0_140 = arith.constant 0 : index
    %c0_141 = arith.constant 0 : index
    %144 = vector.load %arg13[%c0_140, %c0_141] : memref<81x16xf32, #tpu.memory_space<vmem>>, vector<81x16xf32>
    %c0_142 = arith.constant 0 : index
    %c0_143 = arith.constant 0 : index
    %145 = vector.load %arg3[%c0_142, %c0_143] : memref<81x1xf32, #tpu.memory_space<vmem>>, vector<81x1xf32>
    %146 = vector.broadcast %145 : vector<81x1xf32> to vector<81x16xf32>
    %147 = arith.mulf %144, %146 : vector<81x16xf32>
    %c0_144 = arith.constant 0 : index
    %c0_145 = arith.constant 0 : index
    %148 = vector.load %arg8[%c0_144, %c0_145] : memref<16x32xf32, #tpu.memory_space<vmem>>, vector<16x32xf32>
    %cst_146 = arith.constant dense<0.000000e+00> : vector<81x32xf32>
    %149 = tpu.matmul %147, %148, %cst_146 {dimension_numbers = #tpu.dot_dimension_numbers<[1], [0], [0], [1], [0, 0, 1, 1], [], []>} : vector<81x16xf32>, vector<16x32xf32>, vector<81x32xf32> -> vector<81x32xf32>
    %c0_147 = arith.constant 0 : index
    %c0_148 = arith.constant 0 : index
    %150 = vector.load %arg9[%c0_147, %c0_148] : memref<1x32xf32, #tpu.memory_space<vmem>>, vector<1x32xf32>
    %151 = vector.broadcast %150 : vector<1x32xf32> to vector<81x32xf32>
    %152 = arith.addf %149, %151 : vector<81x32xf32>
    %c0_149 = arith.constant 0 : index
    %c0_150 = arith.constant 0 : index
    %c0_151 = arith.constant 0 : index
    %153 = vector.load %arg11[%c0_149, %c0_150, %c0_151] : memref<1x81x32xf32, #tpu.memory_space<vmem>>, vector<1x81x32xf32>
    %154 = vector.shape_cast %153 : vector<1x81x32xf32> to vector<81x32xf32>
    %155 = vector.shape_cast %152 : vector<81x32xf32> to vector<1x81x32xf32>
    tpu.vector_store %arg11[%c0_149, %c0_150, %c0_151], %155 {strides = array<i32>} : memref<1x81x32xf32, #tpu.memory_space<vmem>>, vector<1x81x32xf32>,
    %c0_152 = arith.constant 0 : index
    %c0_153 = arith.constant 0 : index
    %c0_154 = arith.constant 0 : index
    %156 = vector.load %arg4[%c0_152, %c0_153, %c0_154] : memref<4x16x8xf32, #tpu.memory_space<vmem>>, vector<1x16x8xf32>
    %157 = vector.shape_cast %156 : vector<1x16x8xf32> to vector<16x8xf32>
    %cst_155 = arith.constant dense<0.000000e+00> : vector<64x8xf32>
    %158 = tpu.matmul %143, %157, %cst_155 {dimension_numbers = #tpu.dot_dimension_numbers<[1], [0], [0], [1], [0, 0, 1, 1], [], []>} : vector<64x16xf32>, vector<16x8xf32>, vector<64x8xf32> -> vector<64x8xf32>
    %c0_156 = arith.constant 0 : index
    %c0_157 = arith.constant 0 : index
    %c0_158 = arith.constant 0 : index
    %159 = vector.load %arg5[%c0_156, %c0_157, %c0_158] : memref<4x1x8xf32, #tpu.memory_space<vmem>>, vector<1x1x8xf32>
    %160 = vector.shape_cast %159 : vector<1x1x8xf32> to vector<1x8xf32>
    %161 = vector.broadcast %160 : vector<1x8xf32> to vector<64x8xf32>
    %162 = arith.addf %158, %161 : vector<64x8xf32>
    %c0_159 = arith.constant 0 : index
    %c0_160 = arith.constant 0 : index
    %c0_161 = arith.constant 0 : index
    %163 = vector.load %arg6[%c0_159, %c0_160, %c0_161] : memref<4x16x8xf32, #tpu.memory_space<vmem>>, vector<1x16x8xf32>
    %164 = vector.shape_cast %163 : vector<1x16x8xf32> to vector<16x8xf32>
    %cst_162 = arith.constant dense<0.000000e+00> : vector<81x8xf32>
    %165 = tpu.matmul %147, %164, %cst_162 {dimension_numbers = #tpu.dot_dimension_numbers<[1], [0], [0], [1], [0, 0, 1, 1], [], []>} : vector<81x16xf32>, vector<16x8xf32>, vector<81x8xf32> -> vector<81x8xf32>
    %c0_163 = arith.constant 0 : index
    %c0_164 = arith.constant 0 : index
    %c0_165 = arith.constant 0 : index
    %166 = vector.load %arg7[%c0_163, %c0_164, %c0_165] : memref<4x1x8xf32, #tpu.memory_space<vmem>>, vector<1x1x8xf32>
    %167 = vector.shape_cast %166 : vector<1x1x8xf32> to vector<1x8xf32>
    %168 = vector.broadcast %167 : vector<1x8xf32> to vector<81x8xf32>
    %169 = arith.addf %165, %168 : vector<81x8xf32>
    %cst_166 = arith.constant dense<0.000000e+00> : vector<64x81xf32>
    %170 = tpu.matmul %162, %169, %cst_166 {dimension_numbers = #tpu.dot_dimension_numbers<[1], [1], [0], [0], [0, 0, 1, 0], [], []>} : vector<64x8xf32>, vector<81x8xf32>, vector<64x81xf32> -> vector<64x81xf32>
    %c0_167 = arith.constant 0 : index
    %c0_168 = arith.constant 0 : index
    %c0_169 = arith.constant 0 : index
    %c0_170 = arith.constant 0 : index
    %171 = vector.load %arg10[%c0_167, %c0_168, %c0_169, %c0_170] : memref<1x4x64x81xf32, #tpu.memory_space<vmem>>, vector<1x1x64x81xf32>
    %172 = vector.shape_cast %171 : vector<1x1x64x81xf32> to vector<64x81xf32>
    %173 = vector.shape_cast %170 : vector<64x81xf32> to vector<1x1x64x81xf32>
    tpu.vector_store %arg10[%c0_167, %c0_168, %c0_169, %c0_170], %173 {strides = array<i32>} : memref<1x4x64x81xf32, #tpu.memory_space<vmem>>, vector<1x1x64x81xf32>,
    %c1_171 = arith.constant 1 : index
    %c0_172 = arith.constant 0 : index
    %c0_173 = arith.constant 0 : index
    %174 = vector.load %arg4[%c1_171, %c0_172, %c0_173] : memref<4x16x8xf32, #tpu.memory_space<vmem>>, vector<1x16x8xf32>
    %175 = vector.shape_cast %174 : vector<1x16x8xf32> to vector<16x8xf32>
    %cst_174 = arith.constant dense<0.000000e+00> : vector<64x8xf32>
    %176 = tpu.matmul %143, %175, %cst_174 {dimension_numbers = #tpu.dot_dimension_numbers<[1], [0], [0], [1], [0, 0, 1, 1], [], []>} : vector<64x16xf32>, vector<16x8xf32>, vector<64x8xf32> -> vector<64x8xf32>
    %c1_175 = arith.constant 1 : index
    %c0_176 = arith.constant 0 : index
    %c0_177 = arith.constant 0 : index
    %177 = vector.load %arg5[%c1_175, %c0_176, %c0_177] : memref<4x1x8xf32, #tpu.memory_space<vmem>>, vector<1x1x8xf32>
    %178 = vector.shape_cast %177 : vector<1x1x8xf32> to vector<1x8xf32>
    %179 = vector.broadcast %178 : vector<1x8xf32> to vector<64x8xf32>
    %180 = arith.addf %176, %179 : vector<64x8xf32>
    %c1_178 = arith.constant 1 : index
    %c0_179 = arith.constant 0 : index
    %c0_180 = arith.constant 0 : index
    %181 = vector.load %arg6[%c1_178, %c0_179, %c0_180] : memref<4x16x8xf32, #tpu.memory_space<vmem>>, vector<1x16x8xf32>
    %182 = vector.shape_cast %181 : vector<1x16x8xf32> to vector<16x8xf32>
    %cst_181 = arith.constant dense<0.000000e+00> : vector<81x8xf32>
    %183 = tpu.matmul %147, %182, %cst_181 {dimension_numbers = #tpu.dot_dimension_numbers<[1], [0], [0], [1], [0, 0, 1, 1], [], []>} : vector<81x16xf32>, vector<16x8xf32>, vector<81x8xf32> -> vector<81x8xf32>
    %c1_182 = arith.constant 1 : index
    %c0_183 = arith.constant 0 : index
    %c0_184 = arith.constant 0 : index
    %184 = vector.load %arg7[%c1_182, %c0_183, %c0_184] : memref<4x1x8xf32, #tpu.memory_space<vmem>>, vector<1x1x8xf32>
    %185 = vector.shape_cast %184 : vector<1x1x8xf32> to vector<1x8xf32>
    %186 = vector.broadcast %185 : vector<1x8xf32> to vector<81x8xf32>
    %187 = arith.addf %183, %186 : vector<81x8xf32>
    %cst_185 = arith.constant dense<0.000000e+00> : vector<64x81xf32>
    %188 = tpu.matmul %180, %187, %cst_185 {dimension_numbers = #tpu.dot_dimension_numbers<[1], [1], [0], [0], [0, 0, 1, 0], [], []>} : vector<64x8xf32>, vector<81x8xf32>, vector<64x81xf32> -> vector<64x81xf32>
    %c0_186 = arith.constant 0 : index
    %c1_187 = arith.constant 1 : index
    %c0_188 = arith.constant 0 : index
    %c0_189 = arith.constant 0 : index
    %189 = vector.load %arg10[%c0_186, %c1_187, %c0_188, %c0_189] : memref<1x4x64x81xf32, #tpu.memory_space<vmem>>, vector<1x1x64x81xf32>
    %190 = vector.shape_cast %189 : vector<1x1x64x81xf32> to vector<64x81xf32>
    %191 = vector.shape_cast %188 : vector<64x81xf32> to vector<1x1x64x81xf32>
    tpu.vector_store %arg10[%c0_186, %c1_187, %c0_188, %c0_189], %191 {strides = array<i32>} : memref<1x4x64x81xf32, #tpu.memory_space<vmem>>, vector<1x1x64x81xf32>,
    %c2_190 = arith.constant 2 : index
    %c0_191 = arith.constant 0 : index
    %c0_192 = arith.constant 0 : index
    %192 = vector.load %arg4[%c2_190, %c0_191, %c0_192] : memref<4x16x8xf32, #tpu.memory_space<vmem>>, vector<1x16x8xf32>
    %193 = vector.shape_cast %192 : vector<1x16x8xf32> to vector<16x8xf32>
    %cst_193 = arith.constant dense<0.000000e+00> : vector<64x8xf32>
    %194 = tpu.matmul %143, %193, %cst_193 {dimension_numbers = #tpu.dot_dimension_numbers<[1], [0], [0], [1], [0, 0, 1, 1], [], []>} : vector<64x16xf32>, vector<16x8xf32>, vector<64x8xf32> -> vector<64x8xf32>
    %c2_194 = arith.constant 2 : index
    %c0_195 = arith.constant 0 : index
    %c0_196 = arith.constant 0 : index
    %195 = vector.load %arg5[%c2_194, %c0_195, %c0_196] : memref<4x1x8xf32, #tpu.memory_space<vmem>>, vector<1x1x8xf32>
    %196 = vector.shape_cast %195 : vector<1x1x8xf32> to vector<1x8xf32>
    %197 = vector.broadcast %196 : vector<1x8xf32> to vector<64x8xf32>
    %198 = arith.addf %194, %197 : vector<64x8xf32>
    %c2_197 = arith.constant 2 : index
    %c0_198 = arith.constant 0 : index
    %c0_199 = arith.constant 0 : index
    %199 = vector.load %arg6[%c2_197, %c0_198, %c0_199] : memref<4x16x8xf32, #tpu.memory_space<vmem>>, vector<1x16x8xf32>
    %200 = vector.shape_cast %199 : vector<1x16x8xf32> to vector<16x8xf32>
    %cst_200 = arith.constant dense<0.000000e+00> : vector<81x8xf32>
    %201 = tpu.matmul %147, %200, %cst_200 {dimension_numbers = #tpu.dot_dimension_numbers<[1], [0], [0], [1], [0, 0, 1, 1], [], []>} : vector<81x16xf32>, vector<16x8xf32>, vector<81x8xf32> -> vector<81x8xf32>
    %c2_201 = arith.constant 2 : index
    %c0_202 = arith.constant 0 : index
    %c0_203 = arith.constant 0 : index
    %202 = vector.load %arg7[%c2_201, %c0_202, %c0_203] : memref<4x1x8xf32, #tpu.memory_space<vmem>>, vector<1x1x8xf32>
    %203 = vector.shape_cast %202 : vector<1x1x8xf32> to vector<1x8xf32>
    %204 = vector.broadcast %203 : vector<1x8xf32> to vector<81x8xf32>
    %205 = arith.addf %201, %204 : vector<81x8xf32>
    %cst_204 = arith.constant dense<0.000000e+00> : vector<64x81xf32>
    %206 = tpu.matmul %198, %205, %cst_204 {dimension_numbers = #tpu.dot_dimension_numbers<[1], [1], [0], [0], [0, 0, 1, 0], [], []>} : vector<64x8xf32>, vector<81x8xf32>, vector<64x81xf32> -> vector<64x81xf32>
    %c0_205 = arith.constant 0 : index
    %c2_206 = arith.constant 2 : index
    %c0_207 = arith.constant 0 : index
    %c0_208 = arith.constant 0 : index
    %207 = vector.load %arg10[%c0_205, %c2_206, %c0_207, %c0_208] : memref<1x4x64x81xf32, #tpu.memory_space<vmem>>, vector<1x1x64x81xf32>
    %208 = vector.shape_cast %207 : vector<1x1x64x81xf32> to vector<64x81xf32>
    %209 = vector.shape_cast %206 : vector<64x81xf32> to vector<1x1x64x81xf32>
    tpu.vector_store %arg10[%c0_205, %c2_206, %c0_207, %c0_208], %209 {strides = array<i32>} : memref<1x4x64x81xf32, #tpu.memory_space<vmem>>, vector<1x1x64x81xf32>,
    %c3_209 = arith.constant 3 : index
    %c0_210 = arith.constant 0 : index
    %c0_211 = arith.constant 0 : index
    %210 = vector.load %arg4[%c3_209, %c0_210, %c0_211] : memref<4x16x8xf32, #tpu.memory_space<vmem>>, vector<1x16x8xf32>
    %211 = vector.shape_cast %210 : vector<1x16x8xf32> to vector<16x8xf32>
    %cst_212 = arith.constant dense<0.000000e+00> : vector<64x8xf32>
    %212 = tpu.matmul %143, %211, %cst_212 {dimension_numbers = #tpu.dot_dimension_numbers<[1], [0], [0], [1], [0, 0, 1, 1], [], []>} : vector<64x16xf32>, vector<16x8xf32>, vector<64x8xf32> -> vector<64x8xf32>
    %c3_213 = arith.constant 3 : index
    %c0_214 = arith.constant 0 : index
    %c0_215 = arith.constant 0 : index
    %213 = vector.load %arg5[%c3_213, %c0_214, %c0_215] : memref<4x1x8xf32, #tpu.memory_space<vmem>>, vector<1x1x8xf32>
    %214 = vector.shape_cast %213 : vector<1x1x8xf32> to vector<1x8xf32>
    %215 = vector.broadcast %214 : vector<1x8xf32> to vector<64x8xf32>
    %216 = arith.addf %212, %215 : vector<64x8xf32>
    %c3_216 = arith.constant 3 : index
    %c0_217 = arith.constant 0 : index
    %c0_218 = arith.constant 0 : index
    %217 = vector.load %arg6[%c3_216, %c0_217, %c0_218] : memref<4x16x8xf32, #tpu.memory_space<vmem>>, vector<1x16x8xf32>
    %218 = vector.shape_cast %217 : vector<1x16x8xf32> to vector<16x8xf32>
    %cst_219 = arith.constant dense<0.000000e+00> : vector<81x8xf32>
    %219 = tpu.matmul %147, %218, %cst_219 {dimension_numbers = #tpu.dot_dimension_numbers<[1], [0], [0], [1], [0, 0, 1, 1], [], []>} : vector<81x16xf32>, vector<16x8xf32>, vector<81x8xf32> -> vector<81x8xf32>
    %c3_220 = arith.constant 3 : index
    %c0_221 = arith.constant 0 : index
    %c0_222 = arith.constant 0 : index
    %220 = vector.load %arg7[%c3_220, %c0_221, %c0_222] : memref<4x1x8xf32, #tpu.memory_space<vmem>>, vector<1x1x8xf32>
    %221 = vector.shape_cast %220 : vector<1x1x8xf32> to vector<1x8xf32>
    %222 = vector.broadcast %221 : vector<1x8xf32> to vector<81x8xf32>
    %223 = arith.addf %219, %222 : vector<81x8xf32>
    %cst_223 = arith.constant dense<0.000000e+00> : vector<64x81xf32>
    %224 = tpu.matmul %216, %223, %cst_223 {dimension_numbers = #tpu.dot_dimension_numbers<[1], [1], [0], [0], [0, 0, 1, 0], [], []>} : vector<64x8xf32>, vector<81x8xf32>, vector<64x81xf32> -> vector<64x81xf32>
    %c0_224 = arith.constant 0 : index
    %c3_225 = arith.constant 3 : index
    %c0_226 = arith.constant 0 : index
    %c0_227 = arith.constant 0 : index
    %225 = vector.load %arg10[%c0_224, %c3_225, %c0_226, %c0_227] : memref<1x4x64x81xf32, #tpu.memory_space<vmem>>, vector<1x1x64x81xf32>
    %226 = vector.shape_cast %225 : vector<1x1x64x81xf32> to vector<64x81xf32>
    %227 = vector.shape_cast %224 : vector<64x81xf32> to vector<1x1x64x81xf32>
    tpu.vector_store %arg10[%c0_224, %c3_225, %c0_226, %c0_227], %227 {strides = array<i32>} : memref<1x4x64x81xf32, #tpu.memory_space<vmem>>, vector<1x1x64x81xf32>,
    return
  }
  func.func @transform_0(%arg0: i32) -> (i32, i32, i32, i32, i32) {
    %c0_i32 = arith.constant 0 : i32
    %c0_i32_0 = arith.constant 0 : i32
    %c0_i32_1 = arith.constant 0 : i32
    %c0_i32_2 = arith.constant 0 : i32
    %c0_i32_3 = arith.constant 0 : i32
    return %arg0, %c0_i32, %c0_i32_0, %c0_i32_1, %c0_i32_2 : i32, i32, i32, i32, i32
  }
  func.func @transform_1(%arg0: i32) -> (i32, i32, i32, i32) {
    %c0_i32 = arith.constant 0 : i32
    %c0_i32_0 = arith.constant 0 : i32
    %c0_i32_1 = arith.constant 0 : i32
    %c0_i32_2 = arith.constant 0 : i32
    %c0_i32_3 = arith.constant 0 : i32
    return %c0_i32, %c0_i32_0, %c0_i32_1, %c0_i32_2 : i32, i32, i32, i32
  }
  func.func @transform_2(%arg0: i32) -> (i32, i32) {
    %c0_i32 = arith.constant 0 : i32
    %c0_i32_0 = arith.constant 0 : i32
    %c0_i32_1 = arith.constant 0 : i32
    return %c0_i32, %c0_i32_0 : i32, i32
  }
  func.func @transform_3(%arg0: i32) -> (i32, i32, i32) {
    %c0_i32 = arith.constant 0 : i32
    %c0_i32_0 = arith.constant 0 : i32
    %c0_i32_1 = arith.constant 0 : i32
    %c0_i32_2 = arith.constant 0 : i32
    return %c0_i32, %c0_i32_0, %c0_i32_1 : i32, i32, i32
  }
  func.func @transform_4(%arg0: i32) -> (i32, i32, i32) {
    %c0_i32 = arith.constant 0 : i32
    %c0_i32_0 = arith.constant 0 : i32
    %c0_i32_1 = arith.constant 0 : i32
    %c0_i32_2 = arith.constant 0 : i32
    return %c0_i32, %c0_i32_0, %c0_i32_1 : i32, i32, i32
  }
  func.func @transform_5(%arg0: i32) -> (i32, i32, i32) {
    %c0_i32 = arith.constant 0 : i32
    %c0_i32_0 = arith.constant 0 : i32
    %c0_i32_1 = arith.constant 0 : i32
    %c0_i32_2 = arith.constant 0 : i32
    return %c0_i32, %c0_i32_0, %c0_i32_1 : i32, i32, i32
  }
  func.func @transform_6(%arg0: i32) -> (i32, i32, i32) {
    %c0_i32 = arith.constant 0 : i32
    %c0_i32_0 = arith.constant 0 : i32
    %c0_i32_1 = arith.constant 0 : i32
    %c0_i32_2 = arith.constant 0 : i32
    return %c0_i32, %c0_i32_0, %c0_i32_1 : i32, i32, i32
  }
  func.func @transform_7(%arg0: i32) -> (i32, i32) {
    %c0_i32 = arith.constant 0 : i32
    %c0_i32_0 = arith.constant 0 : i32
    %c0_i32_1 = arith.constant 0 : i32
    return %c0_i32, %c0_i32_0 : i32, i32
  }
  func.func @transform_8(%arg0: i32) -> (i32, i32) {
    %c0_i32 = arith.constant 0 : i32
    %c0_i32_0 = arith.constant 0 : i32
    %c0_i32_1 = arith.constant 0 : i32
    return %c0_i32, %c0_i32_0 : i32, i32
  }
  func.func @transform_9(%arg0: i32) -> (i32, i32, i32, i32) {
    %c0_i32 = arith.constant 0 : i32
    %c0_i32_0 = arith.constant 0 : i32
    %c0_i32_1 = arith.constant 0 : i32
    %c0_i32_2 = arith.constant 0 : i32
    return %arg0, %c0_i32, %c0_i32_0, %c0_i32_1 : i32, i32, i32, i32
  }
  func.func @transform_10(%arg0: i32) -> (i32, i32, i32) {
    %c0_i32 = arith.constant 0 : i32
    %c0_i32_0 = arith.constant 0 : i32
    %c0_i32_1 = arith.constant 0 : i32
    return %arg0, %c0_i32, %c0_i32_0 : i32, i32, i32
  }
}

</mosaic_0001>

<llo_original>
// kernel: tpu_custom_call.1
$region0: #{tpu_custom_call.1}
  #allocation0 [shape = 'u32[]', space=smem, size = 0x4, offset = 0x4, fixed_abs, tag = 'smem constant byte address 0x4 - core index']
  #allocation1 [shape = 'u32[144,128]{1,0:T(1,128)}', space=vmem, size = 0x12000, scoped, tag = 'internal scratch']
  #allocation2 [shape = 'f32[64,16]{1,0:T(8,128)}', space=vmem, size = 0x8000, scoped, tag = 'scratch operand']
  #allocation3 [shape = 'f32[81,16]{1,0:T(8,128)}', space=vmem, size = 0xb000, scoped, tag = 'scratch operand']
  %s0 = inlined_call_operand.vmem [shape: f32[2,4,10,10,16], index: 0, kind: input, shape index: {}]
  %s1 = inlined_call_operand.vmem [shape: f32[9,1,1,16], index: 1, kind: input, shape index: {}]
  %s2 = inlined_call_operand.vmem [shape: f32[81,1], index: 2, kind: input, shape index: {}]
  %s3 = inlined_call_operand.vmem [shape: f32[4,16,8], index: 3, kind: input, shape index: {}]
  %s4 = inlined_call_operand.vmem [shape: f32[4,1,8], index: 4, kind: input, shape index: {}]
  %s5 = inlined_call_operand.vmem [shape: f32[4,16,8], index: 5, kind: input, shape index: {}]
  %s6 = inlined_call_operand.vmem [shape: f32[4,1,8], index: 6, kind: input, shape index: {}]
  %s7 = inlined_call_operand.vmem [shape: f32[16,32], index: 7, kind: input, shape index: {}]
  %s8 = inlined_call_operand.vmem [shape: f32[1,32], index: 8, kind: input, shape index: {}]
  %s9 = inlined_call_operand.hbm [shape: f32[2,4,64,81], index: 9, kind: output, shape index: {0}]
  %s10 = inlined_call_operand.vmem [shape: f32[2,81,32], index: 10, kind: output, shape index: {1}]
  %11 = xla_tuple %s9, %s10
  %s12 = sld [smem:[#allocation0]]
  $region77: #{tpu_custom_call.1} parent=0
    _
  %s14 = ssub.s32 1, %s12
  %s15 = scalar_select 0, %s14, %s12
  $region1: #{tpu_custom_call.1} parent=0
    #allocation4 [shape = 'u8[262144]{0}', space=vmem, size = 0x40000, scoped, tag = 'output window, operand 0']
    #allocation5 [shape = 's32[2]{0}', space=sflag, size = 0x8, scoped, tag = 'scoped memory for tpu_custom_call.1']
    %16 = vsyncpa [#allocation5], 0
    %s17 = scalar_lea.sflag [#allocation5], 1
    %18 = vsyncpa %s17, 0
    loop: start=0, step=1, limit=4
    $region2: #{tpu_custom_call.1} parent=1 // loop_pre_header
      _
    $region3: #{tpu_custom_call.1} parent=1 // loop_header
      %s20 = sphi 0, %s24
      %p21 = scmp.ge.s32.totalorder %s20, 4
      %s30 = sphi 0, %s32
      %s33 = sphi 0, %s30
      %s34 = sphi 0, %s33
      %s50 = sphi 0, %s34
      %s54 = sphi 0, %s54
      %s56 = sphi 0, %s54
      %s57 = sphi 0, %s56
      %s71 = sphi 0, %s57
      %s75 = sphi 0, %s75
      %s77 = sphi 0, %s75
      %s78 = sphi 0, %s77
      %s92 = sphi 0, %s78
      %s96 = sphi 0, %s96
      %s98 = sphi 0, %s96
      %s99 = sphi 0, %s98
      %s113 = sphi 0, %s99
      %s117 = sphi 0, %s117
      %s119 = sphi 0, %s117
      %s120 = sphi 0, %s119
      %s134 = sphi 0, %s120
      %s138 = sphi 0, %s138
      %s140 = sphi 0, %s138
      %s141 = sphi 0, %s140
      %s155 = sphi 0, %s141
      %s159 = sphi 0, %s159
      %s161 = sphi 0, %s159
      %s162 = sphi 0, %s161
      %s176 = sphi 0, %s162
      %s180 = sphi 0, %s180
      %s182 = sphi 0, %s180
      %s183 = sphi 0, %s182
      %s197 = sphi 0, %s183
      %s201 = sphi 0, %s201
      %s203 = sphi 0, %s201
      %s204 = sphi 0, %s203
      %s218 = sphi 0, %s204
      %s224 = sphi 0, %s226
      %s227 = sphi 0, %s224
      %s228 = sphi 0, %s227
      %s244 = sphi 0, %s228
      %s250 = sphi 0, %s252
      %s253 = sphi 0, %s250
      %s254 = sphi 0, %s253
      %s270 = sphi 0, %s254
    $region4: #{tpu_custom_call.1} parent=1 // loop_header_branch
      %23 = sbr.rel (%p21) target = $region8
    $region5: #{tpu_custom_call.1} parent=1 // loop_body
      %s25 = ssub.s32 %s20, 1
      %s26 = ssub.s32 %s20, 2
      %s27 = sadd.s32 %s20, 1
      %s28 = ssub.s32 %s20, %s27
      %p29 = scmp.eq.s32.totalorder %s28, 0
      %s31 = sadd.s32 %s30, 1
      %s32 = scalar_select %p29, %s30, %s31
      %p35 = pneg %p29
      %p36 = scmp.eq.s32.totalorder %s20, 1
      %p37 = por %p35, %p36
      %p38 = scmp.ne.s32.totalorder %s30, %s33
      %p39 = scmp.eq.s32.totalorder %s20, 0
      %p40 = por %p38, %p39
      %p41 = scmp.ne.s32.totalorder %s30, %s33
      %p42 = scmp.eq.s32.totalorder %s25, 1
      %p43 = por %p41, %p42
      %p44 = scmp.ne.s32.totalorder %s33, %s34
      %p45 = scmp.eq.s32.totalorder %s25, 0
      %p46 = por %p44, %p45
      %p47 = scmp.ne.s32.totalorder %s33, %s34
      %p48 = scmp.eq.s32.totalorder %s26, 1
      %p49 = por %p47, %p48
      %p51 = scmp.ne.s32.totalorder %s34, %s50
      %p52 = scmp.eq.s32.totalorder %s26, 0
      %p53 = por %p51, %p52
      %s55 = sadd.s32 %s54, 1
      %p58 = scmp.eq.s32.totalorder %s20, 1
      %p59 = scmp.ne.s32.totalorder %s54, %s56
      %p60 = scmp.eq.s32.totalorder %s20, 0
      %p61 = por %p59, %p60
      %p62 = scmp.ne.s32.totalorder %s54, %s56
      %p63 = scmp.eq.s32.totalorder %s25, 1
      %p64 = por %p62, %p63
      %p65 = scmp.ne.s32.totalorder %s56, %s57
      %p66 = scmp.eq.s32.totalorder %s25, 0
      %p67 = por %p65, %p66
      %p68 = scmp.ne.s32.totalorder %s56, %s57
      %p69 = scmp.eq.s32.totalorder %s26, 1
      %p70 = por %p68, %p69
      %p72 = scmp.ne.s32.totalorder %s57, %s71
      %p73 = scmp.eq.s32.totalorder %s26, 0
      %p74 = por %p72, %p73
      %s76 = sadd.s32 %s75, 1
      %p79 = scmp.eq.s32.totalorder %s20, 1
      %p80 = scmp.ne.s32.totalorder %s75, %s77
      %p81 = scmp.eq.s32.totalorder %s20, 0
      %p82 = por %p80, %p81
      %p83 = scmp.ne.s32.totalorder %s75, %s77
      %p84 = scmp.eq.s32.totalorder %s25, 1
      %p85 = por %p83, %p84
      %p86 = scmp.ne.s32.totalorder %s77, %s78
      %p87 = scmp.eq.s32.totalorder %s25, 0
      %p88 = por %p86, %p87
      %p89 = scmp.ne.s32.totalorder %s77, %s78
      %p90 = scmp.eq.s32.totalorder %s26, 1
      %p91 = por %p89, %p90
      %p93 = scmp.ne.s32.totalorder %s78, %s92
      %p94 = scmp.eq.s32.totalorder %s26, 0
      %p95 = por %p93, %p94
      %s97 = sadd.s32 %s96, 1
      %p100 = scmp.eq.s32.totalorder %s20, 1
      %p101 = scmp.ne.s32.totalorder %s96, %s98
      %p102 = scmp.eq.s32.totalorder %s20, 0
      %p103 = por %p101, %p102
      %p104 = scmp.ne.s32.totalorder %s96, %s98
      %p105 = scmp.eq.s32.totalorder %s25, 1
      %p106 = por %p104, %p105
      %p107 = scmp.ne.s32.totalorder %s98, %s99
      %p108 = scmp.eq.s32.totalorder %s25, 0
      %p109 = por %p107, %p108
      %p110 = scmp.ne.s32.totalorder %s98, %s99
      %p111 = scmp.eq.s32.totalorder %s26, 1
      %p112 = por %p110, %p111
      %p114 = scmp.ne.s32.totalorder %s99, %s113
      %p115 = scmp.eq.s32.totalorder %s26, 0
      %p116 = por %p114, %p115
      %s118 = sadd.s32 %s117, 1
      %p121 = scmp.eq.s32.totalorder %s20, 1
      %p122 = scmp.ne.s32.totalorder %s117, %s119
      %p123 = scmp.eq.s32.totalorder %s20, 0
      %p124 = por %p122, %p123
      %p125 = scmp.ne.s32.totalorder %s117, %s119
      %p126 = scmp.eq.s32.totalorder %s25, 1
      %p127 = por %p125, %p126
      %p128 = scmp.ne.s32.totalorder %s119, %s120
      %p129 = scmp.eq.s32.totalorder %s25, 0
      %p130 = por %p128, %p129
      %p131 = scmp.ne.s32.totalorder %s119, %s120
      %p132 = scmp.eq.s32.totalorder %s26, 1
      %p133 = por %p131, %p132
      %p135 = scmp.ne.s32.totalorder %s120, %s134
      %p136 = scmp.eq.s32.totalorder %s26, 0
      %p137 = por %p135, %p136
      %s139 = sadd.s32 %s138, 1
      %p142 = scmp.eq.s32.totalorder %s20, 1
      %p143 = scmp.ne.s32.totalorder %s138, %s140
      %p144 = scmp.eq.s32.totalorder %s20, 0
      %p145 = por %p143, %p144
      %p146 = scmp.ne.s32.totalorder %s138, %s140
      %p147 = scmp.eq.s32.totalorder %s25, 1
      %p148 = por %p146, %p147
      %p149 = scmp.ne.s32.totalorder %s140, %s141
      %p150 = scmp.eq.s32.totalorder %s25, 0
      %p151 = por %p149, %p150
      %p152 = scmp.ne.s32.totalorder %s140, %s141
      %p153 = scmp.eq.s32.totalorder %s26, 1
      %p154 = por %p152, %p153
      %p156 = scmp.ne.s32.totalorder %s141, %s155
      %p157 = scmp.eq.s32.totalorder %s26, 0
      %p158 = por %p156, %p157
      %s160 = sadd.s32 %s159, 1
      %p163 = scmp.eq.s32.totalorder %s20, 1
      %p164 = scmp.ne.s32.totalorder %s159, %s161
      %p165 = scmp.eq.s32.totalorder %s20, 0
      %p166 = por %p164, %p165
      %p167 = scmp.ne.s32.totalorder %s159, %s161
      %p168 = scmp.eq.s32.totalorder %s25, 1
      %p169 = por %p167, %p168
      %p170 = scmp.ne.s32.totalorder %s161, %s162
      %p171 = scmp.eq.s32.totalorder %s25, 0
      %p172 = por %p170, %p171
      %p173 = scmp.ne.s32.totalorder %s161, %s162
      %p174 = scmp.eq.s32.totalorder %s26, 1
      %p175 = por %p173, %p174
      %p177 = scmp.ne.s32.totalorder %s162, %s176
      %p178 = scmp.eq.s32.totalorder %s26, 0
      %p179 = por %p177, %p178
      %s181 = sadd.s32 %s180, 1
      %p184 = scmp.eq.s32.totalorder %s20, 1
      %p185 = scmp.ne.s32.totalorder %s180, %s182
      %p186 = scmp.eq.s32.totalorder %s20, 0
      %p187 = por %p185, %p186
      %p188 = scmp.ne.s32.totalorder %s180, %s182
      %p189 = scmp.eq.s32.totalorder %s25, 1
      %p190 = por %p188, %p189
      %p191 = scmp.ne.s32.totalorder %s182, %s183
      %p192 = scmp.eq.s32.totalorder %s25, 0
      %p193 = por %p191, %p192
      %p194 = scmp.ne.s32.totalorder %s182, %s183
      %p195 = scmp.eq.s32.totalorder %s26, 1
      %p196 = por %p194, %p195
      %p198 = scmp.ne.s32.totalorder %s183, %s197
      %p199 = scmp.eq.s32.totalorder %s26, 0
      %p200 = por %p198, %p199
      %s202 = sadd.s32 %s201, 1
      %p205 = scmp.eq.s32.totalorder %s20, 1
      %p206 = scmp.ne.s32.totalorder %s201, %s203
      %p207 = scmp.eq.s32.totalorder %s20, 0
      %p208 = por %p206, %p207
      %p209 = scmp.ne.s32.totalorder %s201, %s203
      %p210 = scmp.eq.s32.totalorder %s25, 1
      %p211 = por %p209, %p210
      %p212 = scmp.ne.s32.totalorder %s203, %s204
      %p213 = scmp.eq.s32.totalorder %s25, 0
      %p214 = por %p212, %p213
      %p215 = scmp.ne.s32.totalorder %s203, %s204
      %p216 = scmp.eq.s32.totalorder %s26, 1
      %p217 = por %p215, %p216
      %p219 = scmp.ne.s32.totalorder %s204, %s218
      %p220 = scmp.eq.s32.totalorder %s26, 0
      %p221 = por %p219, %p220
      %s222 = ssub.s32 %s20, %s27
      %p223 = scmp.eq.s32.totalorder %s222, 0
      %s225 = sadd.s32 %s224, 1
      %s226 = scalar_select %p223, %s224, %s225
      %p229 = pneg %p223
      %p230 = scmp.eq.s32.totalorder %s20, 1
      %p231 = por %p229, %p230
      %p232 = scmp.ne.s32.totalorder %s224, %s227
      %p233 = scmp.eq.s32.totalorder %s20, 0
      %p234 = por %p232, %p233
      %p235 = scmp.ne.s32.totalorder %s224, %s227
      %p236 = scmp.eq.s32.totalorder %s25, 1
      %p237 = por %p235, %p236
      %p238 = scmp.ne.s32.totalorder %s227, %s228
      %p239 = scmp.eq.s32.totalorder %s25, 0
      %p240 = por %p238, %p239
      %p241 = scmp.ne.s32.totalorder %s227, %s228
      %p242 = scmp.eq.s32.totalorder %s26, 1
      %p243 = por %p241, %p242
      %p245 = scmp.ne.s32.totalorder %s228, %s244
      %p246 = scmp.eq.s32.totalorder %s26, 0
      %p247 = por %p245, %p246
      %s248 = ssub.s32 %s20, %s27
      %p249 = scmp.eq.s32.totalorder %s248, 0
      %s251 = sadd.s32 %s250, 1
      %s252 = scalar_select %p249, %s250, %s251
      %p255 = pneg %p249
      %p256 = scmp.eq.s32.totalorder %s20, 1
      %p257 = por %p255, %p256
      %p258 = scmp.ne.s32.totalorder %s250, %s253
      %p259 = scmp.eq.s32.totalorder %s20, 0
      %p260 = por %p258, %p259
      %p261 = scmp.ne.s32.totalorder %s250, %s253
      %p262 = scmp.eq.s32.totalorder %s25, 1
      %p263 = por %p261, %p262
      %p264 = scmp.ne.s32.totalorder %s253, %s254
      %p265 = scmp.eq.s32.totalorder %s25, 0
      %p266 = por %p264, %p265
      %p267 = scmp.ne.s32.totalorder %s253, %s254
      %p268 = scmp.eq.s32.totalorder %s26, 1
      %p269 = por %p267, %p268
      %p271 = scmp.ne.s32.totalorder %s254, %s270
      %p272 = scmp.eq.s32.totalorder %s26, 0
      %p273 = por %p271, %p272
      %p274 = scmp.le.s32.totalorder 1, %s20
      %p275 = scmp.lt.s32.totalorder %s20, 3
      %p276 = pnand %p274, %p275
      %p277 = pneg %p276
      // Predicated region
      $region9: #{tpu_custom_call.1} parent=5 // pred_check
        _
      $region10: #{tpu_custom_call.1} parent=5 // pred_check_branch
        %279 = sbr.rel (%p276) target = $region12
      $region11: #{tpu_custom_call.1} parent=5 // pred_region
        %s280 = ssub.s32 %s20, 1
        // Predicated region
        $region13: #{tpu_custom_call.1} parent=11 // pred_check
          %p281 = pneg %p67
        $region14: #{tpu_custom_call.1} parent=11 // pred_check_branch
          %283 = sbr.rel (%p281) target = $region16
        $region15: #{tpu_custom_call.1} parent=11 // pred_region
          _
        $region16: #{tpu_custom_call.1} parent=11 // pred_fallthru
          _
        // Predicated region
        $region17: #{tpu_custom_call.1} parent=11 // pred_check
          %p284 = pneg %p88
        $region18: #{tpu_custom_call.1} parent=11 // pred_check_branch
          %286 = sbr.rel (%p284) target = $region20
        $region19: #{tpu_custom_call.1} parent=11 // pred_region
          _
        $region20: #{tpu_custom_call.1} parent=11 // pred_fallthru
          _
        // Predicated region
        $region21: #{tpu_custom_call.1} parent=11 // pred_check
          %p287 = pneg %p109
        $region22: #{tpu_custom_call.1} parent=11 // pred_check_branch
          %289 = sbr.rel (%p287) target = $region24
        $region23: #{tpu_custom_call.1} parent=11 // pred_region
          _
        $region24: #{tpu_custom_call.1} parent=11 // pred_fallthru
          _
        // Predicated region
        $region25: #{tpu_custom_call.1} parent=11 // pred_check
          %p290 = pneg %p130
        $region26: #{tpu_custom_call.1} parent=11 // pred_check_branch
          %292 = sbr.rel (%p290) target = $region28
        $region27: #{tpu_custom_call.1} parent=11 // pred_region
          _
        $region28: #{tpu_custom_call.1} parent=11 // pred_fallthru
          _
        // Predicated region
        $region29: #{tpu_custom_call.1} parent=11 // pred_check
          %p293 = pneg %p151
        $region30: #{tpu_custom_call.1} parent=11 // pred_check_branch
          %295 = sbr.rel (%p293) target = $region32
        $region31: #{tpu_custom_call.1} parent=11 // pred_region
          _
        $region32: #{tpu_custom_call.1} parent=11 // pred_fallthru
          _
        // Predicated region
        $region33: #{tpu_custom_call.1} parent=11 // pred_check
          %p296 = pneg %p172
        $region34: #{tpu_custom_call.1} parent=11 // pred_check_branch
          %298 = sbr.rel (%p296) target = $region36
        $region35: #{tpu_custom_call.1} parent=11 // pred_region
          _
        $region36: #{tpu_custom_call.1} parent=11 // pred_fallthru
          _
        // Predicated region
        $region37: #{tpu_custom_call.1} parent=11 // pred_check
          %p299 = pneg %p193
        $region38: #{tpu_custom_call.1} parent=11 // pred_check_branch
          %301 = sbr.rel (%p299) target = $region40
        $region39: #{tpu_custom_call.1} parent=11 // pred_region
          _
        $region40: #{tpu_custom_call.1} parent=11 // pred_fallthru
          _
        // Predicated region
        $region41: #{tpu_custom_call.1} parent=11 // pred_check
          %p302 = pneg %p214
        $region42: #{tpu_custom_call.1} parent=11 // pred_check_branch
          %304 = sbr.rel (%p302) target = $region44
        $region43: #{tpu_custom_call.1} parent=11 // pred_region
          _
        $region44: #{tpu_custom_call.1} parent=11 // pred_fallthru
          _
      $region12: #{tpu_custom_call.1} parent=5 // pred_fallthru
        _
      %p305 = scmp.lt.s32.totalorder %s20, 2
      // Predicated region
      $region45: #{tpu_custom_call.1} parent=5 // pred_check
        %p306 = pneg %p305
      $region46: #{tpu_custom_call.1} parent=5 // pred_check_branch
        %308 = sbr.rel (%p306) target = $region48
      $region47: #{tpu_custom_call.1} parent=5 // pred_region
        // Predicated region
        $region49: #{tpu_custom_call.1} parent=47 // pred_check
          %p309 = pneg %p40
        $region50: #{tpu_custom_call.1} parent=47 // pred_check_branch
          %311 = sbr.rel (%p309) target = $region52
        $region51: #{tpu_custom_call.1} parent=47 // pred_region
          %p312 = scmp.lt.s32.totalorder %s20, 1
          %s313 = scalar_select %p312, %s20, 1
          %s314 = smul.addr %s313, 80
          %s315 = smul.addr %s314, 8
          %s316 = scalar_lea.vmem %s0, %s315
        $region52: #{tpu_custom_call.1} parent=47 // pred_fallthru
          _
      $region48: #{tpu_custom_call.1} parent=5 // pred_fallthru
        _
      %p317 = scmp.le.s32.totalorder 1, %s20
      %p318 = scmp.lt.s32.totalorder %s20, 3
      %p319 = pnand %p317, %p318
      %p320 = pneg %p319
      // Predicated region
      $region53: #{tpu_custom_call.1} parent=5 // pred_check
        _
      $region54: #{tpu_custom_call.1} parent=5 // pred_check_branch
        %322 = sbr.rel (%p319) target = $region56
      $region55: #{tpu_custom_call.1} parent=5 // pred_region
        %s323 = ssub.s32 %s20, 1
        %p324 = scmp.lt.s32.totalorder %s25, 1
        %s325 = scalar_select %p324, %s25, 1
        %s326 = smul.addr %s325, 80
        %s327 = smul.addr %s326, 8
        %s328 = scalar_lea.vmem %s0, %s327
        %p329 = pneg %p46
        %p330 = pneg %p43
        %p331 = pneg %p67
        %p332 = pneg %p64
        %p333 = pneg %p88
        %p334 = pneg %p85
        %p335 = pneg %p109
        %p336 = pneg %p106
        %p337 = pneg %p130
        %p338 = pneg %p127
        %p339 = pneg %p151
        %p340 = pneg %p148
        %p341 = pneg %p172
        %p342 = pneg %p169
        %p343 = pneg %p193
        %p344 = pneg %p190
        %p345 = pneg %p214
        %p346 = pneg %p211
        %p347 = pneg %p240
        %p348 = pneg %p237
        %s349 = sand.u32 %s227, 1
        %s350 = scalar_lea.sflag [#allocation5], %s349
        %s351 = sand.u32 %s227, 1
        %s352 = smul.addr %s351, 256
        %s353 = scalar_lea.vmem [#allocation4], %s352
        %p354 = pneg %p266
        %p355 = pneg %p263
        %p356 = scmp.lt.s32.totalorder %s25, 1
        %s357 = scalar_select %p356, %s25, 1
        %s358 = smul.addr %s357, 11
        %s359 = smul.addr %s358, 8
        %s360 = scalar_lea.vmem %s10, %s359
        %p361 = scmp.lt.s32.totalorder %s25, 1
        %s362 = scalar_select %p361, %s25, 1
        %s363 = smul.addr %s362, 80
        %s364 = smul.addr %s363, 8
        %s365 = scalar_lea.vmem %s0, %s364
        %p366 = scmp.lt.s32.totalorder %s25, 1
        %s367 = scalar_select %p366, %s25, 1
        %s368 = smul.addr %s367, 11
        %s369 = smul.addr %s368, 8
        %s370 = scalar_lea.vmem %s10, %s369
        %v371 = vld [vmem:[%s365] sm:$0xff]
        %v372 = vld [vmem:[%s365 + $0x8] sm:$0x1]
        %v373 = vld [vmem:[%s365 + $0x10] sm:$0xff]
        %v374 = vld [vmem:[%s365 + $0x18] sm:$0x1]
        %v375 = vld [vmem:[%s365 + $0x20] sm:$0xff]
        %v376 = vld [vmem:[%s365 + $0x28] sm:$0x1]
        %v377 = vld [vmem:[%s365 + $0x30] sm:$0xff]
        %v378 = vld [vmem:[%s365 + $0x38] sm:$0x1]
        %v379 = vld [vmem:[%s365 + $0x40] sm:$0xff]
        %v380 = vld [vmem:[%s365 + $0x48] sm:$0x1]
        %v381 = vld [vmem:[%s365 + $0x50] sm:$0xff]
        %v382 = vld [vmem:[%s365 + $0x58] sm:$0x1]
        %v383 = vld [vmem:[%s365 + $0x60] sm:$0xff]
        %v384 = vld [vmem:[%s365 + $0x68] sm:$0x1]
        %v385 = vld [vmem:[%s365 + $0x70] sm:$0xff]
        %v386 = vld [vmem:[%s365 + $0x78] sm:$0x1]
        %v387 = vld [vmem:[%s365 + $0x80] sm:$0xff]
        %v388 = vld [vmem:[%s365 + $0x88] sm:$0x1]
        %v389 = vadd.f32 %v371, 0.0
        %v390 = vadd.f32 %v372, 0.0
        %v391 = vadd.f32 %v373, 0.0
        %v392 = vadd.f32 %v374, 0.0
        %v393 = vadd.f32 %v375, 0.0
        %v394 = vadd.f32 %v376, 0.0
        %v395 = vadd.f32 %v377, 0.0
        %v396 = vadd.f32 %v378, 0.0
        %v397 = vadd.f32 %v379, 0.0
        %v398 = vadd.f32 %v380, 0.0
        %v399 = vadd.f32 %v381, 0.0
        %v400 = vadd.f32 %v382, 0.0
        %v401 = vadd.f32 %v383, 0.0
        %v402 = vadd.f32 %v384, 0.0
        %v403 = vadd.f32 %v385, 0.0
        %v404 = vadd.f32 %v386, 0.0
        %v405 = vadd.f32 %v387, 0.0
        %v406 = vadd.f32 %v388, 0.0
        %v407 = vld [vmem:[%s1] sm:$0x1]
        %v409 = vlaneseq
        %v410 = vshrl.u32 %v409, 7
        %v411 = vsub.s32 0, %v410
        %v412 = vrot.slane %v407, %v411
        %v414 = vmul.f32 %v371, %v412
        %v415 = vmul.f32 %v373, %v412
        %v416 = vmul.f32 %v375, %v412
        %v417 = vmul.f32 %v377, %v412
        %v418 = vmul.f32 %v379, %v412
        %v419 = vmul.f32 %v381, %v412
        %v420 = vmul.f32 %v383, %v412
        %v421 = vmul.f32 %v385, %v412
        %v422 = vadd.f32 %v414, 0.0
        %v423 = vadd.f32 %v415, 0.0
        %v424 = vadd.f32 %v416, 0.0
        %v425 = vadd.f32 %v417, 0.0
        %v426 = vadd.f32 %v418, 0.0
        %v427 = vadd.f32 %v419, 0.0
        %v428 = vadd.f32 %v420, 0.0
        %v429 = vadd.f32 %v421, 0.0
        %s430 = scalar_lea.vmem %s365, 160
        %v431 = vld [vmem:[%s430] sm:$0xff]
        %v432 = vld [vmem:[%s430 + $0x8] sm:$0x1]
        %v433 = vld [vmem:[%s430 + $0x10] sm:$0xff]
        %v434 = vld [vmem:[%s430 + $0x18] sm:$0x1]
        %v435 = vld [vmem:[%s430 + $0x20] sm:$0xff]
        %v436 = vld [vmem:[%s430 + $0x28] sm:$0x1]
        %v437 = vld [vmem:[%s430 + $0x30] sm:$0xff]
        %v438 = vld [vmem:[%s430 + $0x38] sm:$0x1]
        %v439 = vld [vmem:[%s430 + $0x40] sm:$0xff]
        %v440 = vld [vmem:[%s430 + $0x48] sm:$0x1]
        %v441 = vld [vmem:[%s430 + $0x50] sm:$0xff]
        %v442 = vld [vmem:[%s430 + $0x58] sm:$0x1]
        %v443 = vld [vmem:[%s430 + $0x60] sm:$0xff]
        %v444 = vld [vmem:[%s430 + $0x68] sm:$0x1]
        %v445 = vld [vmem:[%s430 + $0x70] sm:$0xff]
        %v446 = vld [vmem:[%s430 + $0x78] sm:$0x1]
        %v447 = vld [vmem:[%s430 + $0x80] sm:$0xff]
        %v448 = vld [vmem:[%s430 + $0x88] sm:$0x1]
        %v449 = vadd.f32 %v389, %v431
        %v450 = vadd.f32 %v390, %v432
        %v451 = vadd.f32 %v391, %v433
        %v452 = vadd.f32 %v392, %v434
        %v453 = vadd.f32 %v393, %v435
        %v454 = vadd.f32 %v394, %v436
        %v455 = vadd.f32 %v395, %v437
        %v456 = vadd.f32 %v396, %v438
        %v457 = vadd.f32 %v397, %v439
        %v458 = vadd.f32 %v398, %v440
        %v459 = vadd.f32 %v399, %v441
        %v460 = vadd.f32 %v400, %v442
        %v461 = vadd.f32 %v401, %v443
        %v462 = vadd.f32 %v402, %v444
        %v463 = vadd.f32 %v403, %v445
        %v464 = vadd.f32 %v404, %v446
        %v465 = vadd.f32 %v405, %v447
        %v466 = vadd.f32 %v406, %v448
        %s467 = scalar_lea.vmem %s1, 1
        %v468 = vld [vmem:[%s467] sm:$0x1]
        %v470 = vlaneseq
        %v471 = vshrl.u32 %v470, 7
        %v472 = vsub.s32 0, %v471
        %v473 = vrot.slane %v468, %v472
        %v475 = vmul.f32 %v431, %v473
        %v476 = vmul.f32 %v433, %v473
        %v477 = vmul.f32 %v435, %v473
        %v478 = vmul.f32 %v437, %v473
        %v479 = vmul.f32 %v439, %v473
        %v480 = vmul.f32 %v441, %v473
        %v481 = vmul.f32 %v443, %v473
        %v482 = vmul.f32 %v445, %v473
        %v483 = vadd.f32 %v422, %v475
        %v484 = vadd.f32 %v423, %v476
        %v485 = vadd.f32 %v424, %v477
        %v486 = vadd.f32 %v425, %v478
        %v487 = vadd.f32 %v426, %v479
        %v488 = vadd.f32 %v427, %v480
        %v489 = vadd.f32 %v428, %v481
        %v490 = vadd.f32 %v429, %v482
        %v491 = vld [vmem:[%s365 + $0x1] sm:$0xff]
        %v492 = vld [vmem:[%s365 + $0x9] sm:$0x1]
        %v493 = vld [vmem:[%s365 + $0x11] sm:$0xff]
        %v494 = vld [vmem:[%s365 + $0x19] sm:$0x1]
        %v495 = vld [vmem:[%s365 + $0x21] sm:$0xff]
        %v496 = vld [vmem:[%s365 + $0x29] sm:$0x1]
        %v497 = vld [vmem:[%s365 + $0x31] sm:$0xff]
        %v498 = vld [vmem:[%s365 + $0x39] sm:$0x1]
        %v499 = vld [vmem:[%s365 + $0x41] sm:$0xff]
        %v500 = vld [vmem:[%s365 + $0x49] sm:$0x1]
        %v501 = vld [vmem:[%s365 + $0x51] sm:$0xff]
        %v502 = vld [vmem:[%s365 + $0x59] sm:$0x1]
        %v503 = vld [vmem:[%s365 + $0x61] sm:$0xff]
        %v504 = vld [vmem:[%s365 + $0x69] sm:$0x1]
        %v505 = vld [vmem:[%s365 + $0x71] sm:$0xff]
        %v506 = vld [vmem:[%s365 + $0x79] sm:$0x1]
        %v507 = vld [vmem:[%s365 + $0x81] sm:$0xff]
        %v508 = vld [vmem:[%s365 + $0x89] sm:$0x1]
        %v509 = vadd.f32 %v449, %v491
        %v510 = vadd.f32 %v450, %v492
        %v511 = vadd.f32 %v451, %v493
        %v512 = vadd.f32 %v452, %v494
        %v513 = vadd.f32 %v453, %v495
        %v514 = vadd.f32 %v454, %v496
        %v515 = vadd.f32 %v455, %v497
        %v516 = vadd.f32 %v456, %v498
        %v517 = vadd.f32 %v457, %v499
        %v518 = vadd.f32 %v458, %v500
        %v519 = vadd.f32 %v459, %v501
        %v520 = vadd.f32 %v460, %v502
        %v521 = vadd.f32 %v461, %v503
        %v522 = vadd.f32 %v462, %v504
        %v523 = vadd.f32 %v463, %v505
        %v524 = vadd.f32 %v464, %v506
        %v525 = vadd.f32 %v465, %v507
        %v526 = vadd.f32 %v466, %v508
        %s527 = scalar_lea.vmem %s1, 2
        %v528 = vld [vmem:[%s527] sm:$0x1]
        %v530 = vlaneseq
        %v531 = vshrl.u32 %v530, 7
        %v532 = vsub.s32 0, %v531
        %v533 = vrot.slane %v528, %v532
        %v535 = vmul.f32 %v491, %v533
        %v536 = vmul.f32 %v493, %v533
        %v537 = vmul.f32 %v495, %v533
        %v538 = vmul.f32 %v497, %v533
        %v539 = vmul.f32 %v499, %v533
        %v540 = vmul.f32 %v501, %v533
        %v541 = vmul.f32 %v503, %v533
        %v542 = vmul.f32 %v505, %v533
        %v543 = vadd.f32 %v483, %v535
        %v544 = vadd.f32 %v484, %v536
        %v545 = vadd.f32 %v485, %v537
        %v546 = vadd.f32 %v486, %v538
        %v547 = vadd.f32 %v487, %v539
        %v548 = vadd.f32 %v488, %v540
        %v549 = vadd.f32 %v489, %v541
        %v550 = vadd.f32 %v490, %v542
        %s551 = scalar_lea.vmem %s365, 320
        %v552 = vld [vmem:[%s551] sm:$0xff]
        %v553 = vld [vmem:[%s551 + $0x8] sm:$0x1]
        %v554 = vld [vmem:[%s551 + $0x10] sm:$0xff]
        %v555 = vld [vmem:[%s551 + $0x18] sm:$0x1]
        %v556 = vld [vmem:[%s551 + $0x20] sm:$0xff]
        %v557 = vld [vmem:[%s551 + $0x28] sm:$0x1]
        %v558 = vld [vmem:[%s551 + $0x30] sm:$0xff]
        %v559 = vld [vmem:[%s551 + $0x38] sm:$0x1]
        %v560 = vld [vmem:[%s551 + $0x40] sm:$0xff]
        %v561 = vld [vmem:[%s551 + $0x48] sm:$0x1]
        %v562 = vld [vmem:[%s551 + $0x50] sm:$0xff]
        %v563 = vld [vmem:[%s551 + $0x58] sm:$0x1]
        %v564 = vld [vmem:[%s551 + $0x60] sm:$0xff]
        %v565 = vld [vmem:[%s551 + $0x68] sm:$0x1]
        %v566 = vld [vmem:[%s551 + $0x70] sm:$0xff]
        %v567 = vld [vmem:[%s551 + $0x78] sm:$0x1]
        %v568 = vld [vmem:[%s551 + $0x80] sm:$0xff]
        %v569 = vld [vmem:[%s551 + $0x88] sm:$0x1]
        %v570 = vadd.f32 %v509, %v552
        %v571 = vadd.f32 %v510, %v553
        %v572 = vadd.f32 %v511, %v554
        %v573 = vadd.f32 %v512, %v555
        %v574 = vadd.f32 %v513, %v556
        %v575 = vadd.f32 %v514, %v557
        %v576 = vadd.f32 %v515, %v558
        %v577 = vadd.f32 %v516, %v559
        %v578 = vadd.f32 %v517, %v560
        %v579 = vadd.f32 %v518, %v561
        %v580 = vadd.f32 %v519, %v562
        %v581 = vadd.f32 %v520, %v563
        %v582 = vadd.f32 %v521, %v564
        %v583 = vadd.f32 %v522, %v565
        %v584 = vadd.f32 %v523, %v566
        %v585 = vadd.f32 %v524, %v567
        %v586 = vadd.f32 %v525, %v568
        %v587 = vadd.f32 %v526, %v569
        %s588 = scalar_lea.vmem %s1, 3
        %v589 = vld [vmem:[%s588] sm:$0x1]
        %v591 = vlaneseq
        %v592 = vshrl.u32 %v591, 7
        %v593 = vsub.s32 0, %v592
        %v594 = vrot.slane %v589, %v593
        %v596 = vmul.f32 %v552, %v594
        %v597 = vmul.f32 %v554, %v594
        %v598 = vmul.f32 %v556, %v594
        %v599 = vmul.f32 %v558, %v594
        %v600 = vmul.f32 %v560, %v594
        %v601 = vmul.f32 %v562, %v594
        %v602 = vmul.f32 %v564, %v594
        %v603 = vmul.f32 %v566, %v594
        %v604 = vadd.f32 %v543, %v596
        %v605 = vadd.f32 %v544, %v597
        %v606 = vadd.f32 %v545, %v598
        %v607 = vadd.f32 %v546, %v599
        %v608 = vadd.f32 %v547, %v600
        %v609 = vadd.f32 %v548, %v601
        %v610 = vadd.f32 %v549, %v602
        %v611 = vadd.f32 %v550, %v603
        %s612 = scalar_lea.vmem %s365, 480
        %v613 = vld [vmem:[%s612] sm:$0xff]
        %v614 = vld [vmem:[%s612 + $0x8] sm:$0x1]
        %v615 = vld [vmem:[%s612 + $0x10] sm:$0xff]
        %v616 = vld [vmem:[%s612 + $0x18] sm:$0x1]
        %v617 = vld [vmem:[%s612 + $0x20] sm:$0xff]
        %v618 = vld [vmem:[%s612 + $0x28] sm:$0x1]
        %v619 = vld [vmem:[%s612 + $0x30] sm:$0xff]
        %v620 = vld [vmem:[%s612 + $0x38] sm:$0x1]
        %v621 = vld [vmem:[%s612 + $0x40] sm:$0xff]
        %v622 = vld [vmem:[%s612 + $0x48] sm:$0x1]
        %v623 = vld [vmem:[%s612 + $0x50] sm:$0xff]
        %v624 = vld [vmem:[%s612 + $0x58] sm:$0x1]
        %v625 = vld [vmem:[%s612 + $0x60] sm:$0xff]
        %v626 = vld [vmem:[%s612 + $0x68] sm:$0x1]
        %v627 = vld [vmem:[%s612 + $0x70] sm:$0xff]
        %v628 = vld [vmem:[%s612 + $0x78] sm:$0x1]
        %v629 = vld [vmem:[%s612 + $0x80] sm:$0xff]
        %v630 = vld [vmem:[%s612 + $0x88] sm:$0x1]
        %v631 = vadd.f32 %v570, %v613
        %v632 = vadd.f32 %v571, %v614
        %v633 = vadd.f32 %v572, %v615
        %v634 = vadd.f32 %v573, %v616
        %v635 = vadd.f32 %v574, %v617
        %v636 = vadd.f32 %v575, %v618
        %v637 = vadd.f32 %v576, %v619
        %v638 = vadd.f32 %v577, %v620
        %v639 = vadd.f32 %v578, %v621
        %v640 = vadd.f32 %v579, %v622
        %v641 = vadd.f32 %v580, %v623
        %v642 = vadd.f32 %v581, %v624
        %v643 = vadd.f32 %v582, %v625
        %v644 = vadd.f32 %v583, %v626
        %v645 = vadd.f32 %v584, %v627
        %v646 = vadd.f32 %v585, %v628
        %v647 = vadd.f32 %v586, %v629
        %v648 = vadd.f32 %v587, %v630
        %s649 = scalar_lea.vmem %s1, 4
        %v650 = vld [vmem:[%s649] sm:$0x1]
        %v652 = vlaneseq
        %v653 = vshrl.u32 %v652, 7
        %v654 = vsub.s32 0, %v653
        %v655 = vrot.slane %v650, %v654
        %v657 = vmul.f32 %v613, %v655
        %v658 = vmul.f32 %v615, %v655
        %v659 = vmul.f32 %v617, %v655
        %v660 = vmul.f32 %v619, %v655
        %v661 = vmul.f32 %v621, %v655
        %v662 = vmul.f32 %v623, %v655
        %v663 = vmul.f32 %v625, %v655
        %v664 = vmul.f32 %v627, %v655
        %v665 = vadd.f32 %v604, %v657
        %v666 = vadd.f32 %v605, %v658
        %v667 = vadd.f32 %v606, %v659
        %v668 = vadd.f32 %v607, %v660
        %v669 = vadd.f32 %v608, %v661
        %v670 = vadd.f32 %v609, %v662
        %v671 = vadd.f32 %v610, %v663
        %v672 = vadd.f32 %v611, %v664
        %v673 = vld [vmem:[%s551 + $0x1] sm:$0xff]
        %v674 = vld [vmem:[%s551 + $0x9] sm:$0x1]
        %v675 = vld [vmem:[%s551 + $0x11] sm:$0xff]
        %v676 = vld [vmem:[%s551 + $0x19] sm:$0x1]
        %v677 = vld [vmem:[%s551 + $0x21] sm:$0xff]
        %v678 = vld [vmem:[%s551 + $0x29] sm:$0x1]
        %v679 = vld [vmem:[%s551 + $0x31] sm:$0xff]
        %v680 = vld [vmem:[%s551 + $0x39] sm:$0x1]
        %v681 = vld [vmem:[%s551 + $0x41] sm:$0xff]
        %v682 = vld [vmem:[%s551 + $0x49] sm:$0x1]
        %v683 = vld [vmem:[%s551 + $0x51] sm:$0xff]
        %v684 = vld [vmem:[%s551 + $0x59] sm:$0x1]
        %v685 = vld [vmem:[%s551 + $0x61] sm:$0xff]
        %v686 = vld [vmem:[%s551 + $0x69] sm:$0x1]
        %v687 = vld [vmem:[%s551 + $0x71] sm:$0xff]
        %v688 = vld [vmem:[%s551 + $0x79] sm:$0x1]
        %v689 = vld [vmem:[%s551 + $0x81] sm:$0xff]
        %v690 = vld [vmem:[%s551 + $0x89] sm:$0x1]
        %v691 = vadd.f32 %v631, %v673
        %v692 = vadd.f32 %v632, %v674
        %v693 = vadd.f32 %v633, %v675
        %v694 = vadd.f32 %v634, %v676
        %v695 = vadd.f32 %v635, %v677
        %v696 = vadd.f32 %v636, %v678
        %v697 = vadd.f32 %v637, %v679
        %v698 = vadd.f32 %v638, %v680
        %v699 = vadd.f32 %v639, %v681
        %v700 = vadd.f32 %v640, %v682
        %v701 = vadd.f32 %v641, %v683
        %v702 = vadd.f32 %v642, %v684
        %v703 = vadd.f32 %v643, %v685
        %v704 = vadd.f32 %v644, %v686
        %v705 = vadd.f32 %v645, %v687
        %v706 = vadd.f32 %v646, %v688
        %v707 = vadd.f32 %v647, %v689
        %v708 = vadd.f32 %v648, %v690
        %s709 = scalar_lea.vmem %s1, 5
        %v710 = vld [vmem:[%s709] sm:$0x1]
        %v712 = vlaneseq
        %v713 = vshrl.u32 %v712, 7
        %v714 = vsub.s32 0, %v713
        %v715 = vrot.slane %v710, %v714
        %v717 = vmul.f32 %v673, %v715
        %v718 = vmul.f32 %v675, %v715
        %v719 = vmul.f32 %v677, %v715
        %v720 = vmul.f32 %v679, %v715
        %v721 = vmul.f32 %v681, %v715
        %v722 = vmul.f32 %v683, %v715
        %v723 = vmul.f32 %v685, %v715
        %v724 = vmul.f32 %v687, %v715
        %v725 = vadd.f32 %v665, %v717
        %v726 = vadd.f32 %v666, %v718
        %v727 = vadd.f32 %v667, %v719
        %v728 = vadd.f32 %v668, %v720
        %v729 = vadd.f32 %v669, %v721
        %v730 = vadd.f32 %v670, %v722
        %v731 = vadd.f32 %v671, %v723
        %v732 = vadd.f32 %v672, %v724
        %s733 = scalar_lea.vmem %s365, 16
        %v734 = vld [vmem:[%s733] sm:$0xff]
        %v735 = vld [vmem:[%s733 + $0x8] sm:$0x1]
        %v736 = vld [vmem:[%s733 + $0x10] sm:$0xff]
        %v737 = vld [vmem:[%s733 + $0x18] sm:$0x1]
        %v738 = vld [vmem:[%s733 + $0x20] sm:$0xff]
        %v739 = vld [vmem:[%s733 + $0x28] sm:$0x1]
        %v740 = vld [vmem:[%s733 + $0x30] sm:$0xff]
        %v741 = vld [vmem:[%s733 + $0x38] sm:$0x1]
        %v742 = vld [vmem:[%s733 + $0x40] sm:$0xff]
        %v743 = vld [vmem:[%s733 + $0x48] sm:$0x1]
        %v744 = vld [vmem:[%s733 + $0x50] sm:$0xff]
        %v745 = vld [vmem:[%s733 + $0x58] sm:$0x1]
        %v746 = vld [vmem:[%s733 + $0x60] sm:$0xff]
        %v747 = vld [vmem:[%s733 + $0x68] sm:$0x1]
        %v748 = vld [vmem:[%s733 + $0x70] sm:$0xff]
        %v749 = vld [vmem:[%s733 + $0x78] sm:$0x1]
        %v750 = vld [vmem:[%s733 + $0x80] sm:$0xff]
        %v751 = vld [vmem:[%s733 + $0x88] sm:$0x1]
        %v752 = vadd.f32 %v691, %v734
        %v753 = vadd.f32 %v692, %v735
        %v754 = vadd.f32 %v693, %v736
        %v755 = vadd.f32 %v694, %v737
        %v756 = vadd.f32 %v695, %v738
        %v757 = vadd.f32 %v696, %v739
        %v758 = vadd.f32 %v697, %v740
        %v759 = vadd.f32 %v698, %v741
        %v760 = vadd.f32 %v699, %v742
        %v761 = vadd.f32 %v700, %v743
        %v762 = vadd.f32 %v701, %v744
        %v763 = vadd.f32 %v702, %v745
        %v764 = vadd.f32 %v703, %v746
        %v765 = vadd.f32 %v704, %v747
        %v766 = vadd.f32 %v705, %v748
        %v767 = vadd.f32 %v706, %v749
        %v768 = vadd.f32 %v707, %v750
        %v769 = vadd.f32 %v708, %v751
        %s770 = scalar_lea.vmem %s1, 6
        %v771 = vld [vmem:[%s770] sm:$0x1]
        %v773 = vlaneseq
        %v774 = vshrl.u32 %v773, 7
        %v775 = vsub.s32 0, %v774
        %v776 = vrot.slane %v771, %v775
        %v778 = vmul.f32 %v734, %v776
        %v779 = vmul.f32 %v736, %v776
        %v780 = vmul.f32 %v738, %v776
        %v781 = vmul.f32 %v740, %v776
        %v782 = vmul.f32 %v742, %v776
        %v783 = vmul.f32 %v744, %v776
        %v784 = vmul.f32 %v746, %v776
        %v785 = vmul.f32 %v748, %v776
        %v786 = vadd.f32 %v725, %v778
        %v787 = vadd.f32 %v726, %v779
        %v788 = vadd.f32 %v727, %v780
        %v789 = vadd.f32 %v728, %v781
        %v790 = vadd.f32 %v729, %v782
        %v791 = vadd.f32 %v730, %v783
        %v792 = vadd.f32 %v731, %v784
        %v793 = vadd.f32 %v732, %v785
        %s794 = scalar_lea.vmem %s365, 176
        %v795 = vld [vmem:[%s794] sm:$0xff]
        %v796 = vld [vmem:[%s794 + $0x8] sm:$0x1]
        %v797 = vld [vmem:[%s794 + $0x10] sm:$0xff]
        %v798 = vld [vmem:[%s794 + $0x18] sm:$0x1]
        %v799 = vld [vmem:[%s794 + $0x20] sm:$0xff]
        %v800 = vld [vmem:[%s794 + $0x28] sm:$0x1]
        %v801 = vld [vmem:[%s794 + $0x30] sm:$0xff]
        %v802 = vld [vmem:[%s794 + $0x38] sm:$0x1]
        %v803 = vld [vmem:[%s794 + $0x40] sm:$0xff]
        %v804 = vld [vmem:[%s794 + $0x48] sm:$0x1]
        %v805 = vld [vmem:[%s794 + $0x50] sm:$0xff]
        %v806 = vld [vmem:[%s794 + $0x58] sm:$0x1]
        %v807 = vld [vmem:[%s794 + $0x60] sm:$0xff]
        %v808 = vld [vmem:[%s794 + $0x68] sm:$0x1]
        %v809 = vld [vmem:[%s794 + $0x70] sm:$0xff]
        %v810 = vld [vmem:[%s794 + $0x78] sm:$0x1]
        %v811 = vld [vmem:[%s794 + $0x80] sm:$0xff]
        %v812 = vld [vmem:[%s794 + $0x88] sm:$0x1]
        %v813 = vadd.f32 %v752, %v795
        %v814 = vadd.f32 %v753, %v796
        %v815 = vadd.f32 %v754, %v797
        %v816 = vadd.f32 %v755, %v798
        %v817 = vadd.f32 %v756, %v799
        %v818 = vadd.f32 %v757, %v800
        %v819 = vadd.f32 %v758, %v801
        %v820 = vadd.f32 %v759, %v802
        %v821 = vadd.f32 %v760, %v803
        %v822 = vadd.f32 %v761, %v804
        %v823 = vadd.f32 %v762, %v805
        %v824 = vadd.f32 %v763, %v806
        %v825 = vadd.f32 %v764, %v807
        %v826 = vadd.f32 %v765, %v808
        %v827 = vadd.f32 %v766, %v809
        %v828 = vadd.f32 %v767, %v810
        %v829 = vadd.f32 %v768, %v811
        %v830 = vadd.f32 %v769, %v812
        %s831 = scalar_lea.vmem %s1, 7
        %v832 = vld [vmem:[%s831] sm:$0x1]
        %v834 = vlaneseq
        %v835 = vshrl.u32 %v834, 7
        %v836 = vsub.s32 0, %v835
        %v837 = vrot.slane %v832, %v836
        %v839 = vmul.f32 %v795, %v837
        %v840 = vmul.f32 %v797, %v837
        %v841 = vmul.f32 %v799, %v837
        %v842 = vmul.f32 %v801, %v837
        %v843 = vmul.f32 %v803, %v837
        %v844 = vmul.f32 %v805, %v837
        %v845 = vmul.f32 %v807, %v837
        %v846 = vmul.f32 %v809, %v837
        %v847 = vadd.f32 %v786, %v839
        %v848 = vadd.f32 %v787, %v840
        %v849 = vadd.f32 %v788, %v841
        %v850 = vadd.f32 %v789, %v842
        %v851 = vadd.f32 %v790, %v843
        %v852 = vadd.f32 %v791, %v844
        %v853 = vadd.f32 %v792, %v845
        %v854 = vadd.f32 %v793, %v846
        %v855 = vld [vmem:[%s733 + $0x1] sm:$0xff]
        %v856 = vld [vmem:[%s733 + $0x9] sm:$0x1]
        %v857 = vld [vmem:[%s733 + $0x11] sm:$0xff]
        %v858 = vld [vmem:[%s733 + $0x19] sm:$0x1]
        %v859 = vld [vmem:[%s733 + $0x21] sm:$0xff]
        %v860 = vld [vmem:[%s733 + $0x29] sm:$0x1]
        %v861 = vld [vmem:[%s733 + $0x31] sm:$0xff]
        %v862 = vld [vmem:[%s733 + $0x39] sm:$0x1]
        %v863 = vld [vmem:[%s733 + $0x41] sm:$0xff]
        %v864 = vld [vmem:[%s733 + $0x49] sm:$0x1]
        %v865 = vld [vmem:[%s733 + $0x51] sm:$0xff]
        %v866 = vld [vmem:[%s733 + $0x59] sm:$0x1]
        %v867 = vld [vmem:[%s733 + $0x61] sm:$0xff]
        %v868 = vld [vmem:[%s733 + $0x69] sm:$0x1]
        %v869 = vld [vmem:[%s733 + $0x71] sm:$0xff]
        %v870 = vld [vmem:[%s733 + $0x79] sm:$0x1]
        %v871 = vld [vmem:[%s733 + $0x81] sm:$0xff]
        %v872 = vld [vmem:[%s733 + $0x89] sm:$0x1]
        %v873 = vadd.f32 %v813, %v855
        %v874 = vadd.f32 %v814, %v856
        %v875 = vadd.f32 %v815, %v857
        %v876 = vadd.f32 %v816, %v858
        %v877 = vadd.f32 %v817, %v859
        %v878 = vadd.f32 %v818, %v860
        %v879 = vadd.f32 %v819, %v861
        %v880 = vadd.f32 %v820, %v862
        %v881 = vadd.f32 %v821, %v863
        %v882 = vadd.f32 %v822, %v864
        %v883 = vadd.f32 %v823, %v865
        %v884 = vadd.f32 %v824, %v866
        %v885 = vadd.f32 %v825, %v867
        %v886 = vadd.f32 %v826, %v868
        %v887 = vadd.f32 %v827, %v869
        %v888 = vadd.f32 %v828, %v870
        %v889 = vadd.f32 %v829, %v871
        %v890 = vadd.f32 %v830, %v872
        %s891 = scalar_lea.vmem %s1, 8
        %v892 = vld [vmem:[%s891] sm:$0x1]
        %v894 = vlaneseq
        %v895 = vshrl.u32 %v894, 7
        %v896 = vsub.s32 0, %v895
        %v897 = vrot.slane %v892, %v896
        %v899 = vmul.f32 %v855, %v897
        %v900 = vmul.f32 %v857, %v897
        %v901 = vmul.f32 %v859, %v897
        %v902 = vmul.f32 %v861, %v897
        %v903 = vmul.f32 %v863, %v897
        %v904 = vmul.f32 %v865, %v897
        %v905 = vmul.f32 %v867, %v897
        %v906 = vmul.f32 %v869, %v897
        %v907 = vadd.f32 %v847, %v899
        %v908 = vadd.f32 %v848, %v900
        %v909 = vadd.f32 %v849, %v901
        %v910 = vadd.f32 %v850, %v902
        %v911 = vadd.f32 %v851, %v903
        %v912 = vadd.f32 %v852, %v904
        %v913 = vadd.f32 %v853, %v905
        %v914 = vadd.f32 %v854, %v906
        %vm915 = vcmask 130048
        %916 = vst.msk [vmem:[#allocation2] sm:$0xff] %vm915, %v907
        %917 = vst.msk [vmem:[#allocation2 + $0x8] sm:$0xff] %vm915, %v908
        %918 = vst.msk [vmem:[#allocation2 + $0x10] sm:$0xff] %vm915, %v909
        %919 = vst.msk [vmem:[#allocation2 + $0x18] sm:$0xff] %vm915, %v910
        %920 = vst.msk [vmem:[#allocation2 + $0x20] sm:$0xff] %vm915, %v911
        %921 = vst.msk [vmem:[#allocation2 + $0x28] sm:$0xff] %vm915, %v912
        %922 = vst.msk [vmem:[#allocation2 + $0x30] sm:$0xff] %vm915, %v913
        %923 = vst.msk [vmem:[#allocation2 + $0x38] sm:$0xff] %vm915, %v914
        %924 = vst.msk [vmem:[#allocation3] sm:$0xff] %vm915, %v873
        %vm925 = vcmask 122880
        %926 = vst.msk [vmem:[#allocation3 + $0x8] sm:$0x1] %vm925, %v874
        %927 = vst.msk [vmem:[#allocation3 + $0x9] sm:$0xff] %vm915, %v875
        %928 = vst.msk [vmem:[#allocation3 + $0x11] sm:$0x1] %vm925, %v876
        %929 = vst.msk [vmem:[#allocation3 + $0x12] sm:$0xff] %vm915, %v877
        %930 = vst.msk [vmem:[#allocation3 + $0x1a] sm:$0x1] %vm925, %v878
        %931 = vst.msk [vmem:[#allocation3 + $0x1b] sm:$0xff] %vm915, %v879
        %932 = vst.msk [vmem:[#allocation3 + $0x23] sm:$0x1] %vm925, %v880
        %933 = vst.msk [vmem:[#allocation3 + $0x24] sm:$0xff] %vm915, %v881
        %934 = vst.msk [vmem:[#allocation3 + $0x2c] sm:$0x1] %vm925, %v882
        %935 = vst.msk [vmem:[#allocation3 + $0x2d] sm:$0xff] %vm915, %v883
        %936 = vst.msk [vmem:[#allocation3 + $0x35] sm:$0x1] %vm925, %v884
        %937 = vst.msk [vmem:[#allocation3 + $0x36] sm:$0xff] %vm915, %v885
        %938 = vst.msk [vmem:[#allocation3 + $0x3e] sm:$0x1] %vm925, %v886
        %939 = vst.msk [vmem:[#allocation3 + $0x3f] sm:$0xff] %vm915, %v887
        %940 = vst.msk [vmem:[#allocation3 + $0x47] sm:$0x1] %vm925, %v888
        %941 = vst.msk [vmem:[#allocation3 + $0x48] sm:$0xff] %vm915, %v889
        %942 = vst.msk [vmem:[#allocation3 + $0x50] sm:$0x1] %vm925, %v890
        %v943 = vld [vmem:[#allocation2] sm:$0xff]
        %v944 = vld [vmem:[#allocation2 + $0x8] sm:$0xff]
        %v945 = vld [vmem:[#allocation2 + $0x10] sm:$0xff]
        %v946 = vld [vmem:[#allocation2 + $0x18] sm:$0xff]
        %v947 = vld [vmem:[#allocation2 + $0x20] sm:$0xff]
        %v948 = vld [vmem:[#allocation2 + $0x28] sm:$0xff]
        %v949 = vld [vmem:[#allocation2 + $0x30] sm:$0xff]
        %v950 = vld [vmem:[#allocation2 + $0x38] sm:$0xff]
        %v951 = vld [vmem:[#allocation3] sm:$0xff]
        %v952 = vld [vmem:[#allocation3 + $0x8] sm:$0xff]
        %v953 = vld [vmem:[#allocation3 + $0x10] sm:$0xff]
        %v954 = vld [vmem:[#allocation3 + $0x18] sm:$0xff]
        %v955 = vld [vmem:[#allocation3 + $0x20] sm:$0xff]
        %v956 = vld [vmem:[#allocation3 + $0x28] sm:$0xff]
        %v957 = vld [vmem:[#allocation3 + $0x30] sm:$0xff]
        %v958 = vld [vmem:[#allocation3 + $0x38] sm:$0xff]
        %v959 = vld [vmem:[#allocation3 + $0x40] sm:$0xff]
        %v960 = vld [vmem:[#allocation3 + $0x48] sm:$0xff]
        %v961 = vld [vmem:[#allocation3 + $0x50] sm:$0x1]
        %v962 = vld [vmem:[%s2] sm:$0xff]
        %v963 = vld [vmem:[%s2 + $0x8] sm:$0xff]
        %v964 = vld [vmem:[%s2 + $0x10] sm:$0xff]
        %v965 = vld [vmem:[%s2 + $0x18] sm:$0xff]
        %v966 = vld [vmem:[%s2 + $0x20] sm:$0xff]
        %v967 = vld [vmem:[%s2 + $0x28] sm:$0xff]
        %v968 = vld [vmem:[%s2 + $0x30] sm:$0xff]
        %v969 = vld [vmem:[%s2 + $0x38] sm:$0xff]
        %v970 = vld [vmem:[%s2 + $0x40] sm:$0xff]
        %v971 = vld [vmem:[%s2 + $0x48] sm:$0xff]
        %v972 = vld [vmem:[%s2 + $0x50] sm:$0x1]
        %974 = vset.pattern.permute.xlu0 0
        %975 = vperm.xlu0 %974, %v962
        %v976 = vpop.permute.xlu0 %975
        %979 = vset.pattern.permute.xlu0 0
        %980 = vperm.xlu0 %979, %v963
        %v981 = vpop.permute.xlu0 %980
        %984 = vset.pattern.permute.xlu0 0
        %985 = vperm.xlu0 %984, %v964
        %v986 = vpop.permute.xlu0 %985
        %989 = vset.pattern.permute.xlu0 0
        %990 = vperm.xlu0 %989, %v965
        %v991 = vpop.permute.xlu0 %990
        %994 = vset.pattern.permute.xlu0 0
        %995 = vperm.xlu0 %994, %v966
        %v996 = vpop.permute.xlu0 %995
        %999 = vset.pattern.permute.xlu0 0
        %1000 = vperm.xlu0 %999, %v967
        %v1001 = vpop.permute.xlu0 %1000
        %1004 = vset.pattern.permute.xlu0 0
        %1005 = vperm.xlu0 %1004, %v968
        %v1006 = vpop.permute.xlu0 %1005
        %1009 = vset.pattern.permute.xlu0 0
        %1010 = vperm.xlu0 %1009, %v969
        %v1011 = vpop.permute.xlu0 %1010
        %1014 = vset.pattern.permute.xlu0 0
        %1015 = vperm.xlu0 %1014, %v970
        %v1016 = vpop.permute.xlu0 %1015
        %1019 = vset.pattern.permute.xlu0 0
        %1020 = vperm.xlu0 %1019, %v971
        %v1021 = vpop.permute.xlu0 %1020
        %1024 = vset.pattern.permute.xlu0 0
        %1025 = vperm.xlu0 %1024, %v972
        %v1026 = vpop.permute.xlu0 %1025
        %v1028 = vmul.f32 %v951, %v976
        %v1029 = vmul.f32 %v952, %v981
        %v1030 = vmul.f32 %v953, %v986
        %v1031 = vmul.f32 %v954, %v991
        %v1032 = vmul.f32 %v955, %v996
        %v1033 = vmul.f32 %v956, %v1001
        %v1034 = vmul.f32 %v957, %v1006
        %v1035 = vmul.f32 %v958, %v1011
        %v1036 = vmul.f32 %v959, %v1016
        %v1037 = vmul.f32 %v960, %v1021
        %v1038 = vmul.f32 %v961, %v1026
        %v1039 = vld [vmem:[%s7] sm:$0xff]
        %v1040 = vld [vmem:[%s7 + $0x8] sm:$0xff]
        %v1041 = vld [vmem:[%s8] sm:$0x1]
        %v1043 = vlaneseq
        %v1044 = vshrl.u32 %v1043, 7
        %v1045 = vsub.s32 0, %v1044
        %v1046 = vrot.slane %v1041, %v1045
        %v1049 = vsel %vm915, %v1028, 0
        %v1052 = vsel %vm915, %v1029, 0
        %v1055 = vsel %vm915, %v1030, 0
        %v1058 = vsel %vm915, %v1031, 0
        %v1061 = vsel %vm915, %v1032, 0
        %v1064 = vsel %vm915, %v1033, 0
        %v1067 = vsel %vm915, %v1034, 0
        %v1070 = vsel %vm915, %v1035, 0
        %v1073 = vsel %vm915, %v1036, 0
        %v1076 = vsel %vm915, %v1037, 0
        %v1079 = vsel %vm915, %v1038, 0
        %1081 = vmatprep.subr.mxu0 0.0
        %1082 = vmatpush1.msra.mxu0 %v1039
        %1083 = vmatprep.subr.mxu0 0.0
        %1084 = vmatpush1.msra.mxu0 %v1040
        %1085 = vmatprep.subr.mxu0 0.0
        %1086 = vmatpush1.msra.mxu0 0.0
        %1087 = vmatprep.subr.mxu0 0.0
        %1088 = vmatpush1.msra.mxu0 0.0
        %1089 = vmatprep.subr.mxu0 0.0
        %1090 = vmatpush1.msra.mxu0 0.0
        %1091 = vmatprep.subr.mxu0 0.0
        %1092 = vmatpush1.msra.mxu0 0.0
        %1093 = vmatprep.subr.mxu0 0.0
        %1094 = vmatpush1.msra.mxu0 0.0
        %1095 = vmatprep.subr.mxu0 0.0
        %1096 = vmatpush1.msra.mxu0 0.0
        %1097 = vmatprep.subr.mxu0 0.0
        %1098 = vmatpush1.msra.mxu0 0.0
        %1099 = vmatprep.subr.mxu0 0.0
        %1100 = vmatpush1.msra.mxu0 0.0
        %1101 = vmatprep.subr.mxu0 0.0
        %1102 = vmatpush1.msra.mxu0 0.0
        %1103 = vmatprep.subr.mxu0 0.0
        %1104 = vmatpush1.msra.mxu0 0.0
        %1105 = vmatprep.subr.mxu0 0.0
        %1106 = vmatpush1.msra.mxu0 0.0
        %1107 = vmatprep.subr.mxu0 0.0
        %1108 = vmatpush1.msra.mxu0 0.0
        %1109 = vmatprep.subr.mxu0 0.0
        %1110 = vmatpush1.msra.mxu0 0.0
        %1111 = vmatprep.subr.mxu0 0.0
        %1112 = vmatpush1.msra.mxu0 0.0
        %1113 = vmatprep.subr.mxu0 0.0
        %1114 = vmatpush1.msra.mxu0 0.0
        %1115 = vmatprep.subr.mxu0 0.0
        %1116 = vmatpush1.msra.mxu0 0.0
        %1117 = vmatprep.subr.mxu0 0.0
        %1118 = vmatpush1.msra.mxu0 0.0
        %1119 = vmatprep.subr.mxu0 0.0
        %1120 = vmatpush1.msra.mxu0 0.0
        %1121 = vmatprep.subr.mxu0 0.0
        %1122 = vmatpush1.msra.mxu0 0.0
        %1123 = vmatprep.subr.mxu0 0.0
        %1124 = vmatpush1.msra.mxu0 0.0
        %1125 = vmatprep.subr.mxu0 0.0
        %1126 = vmatpush1.msra.mxu0 0.0
        %1127 = vmatprep.subr.mxu0 0.0
        %1128 = vmatpush1.msra.mxu0 0.0
        %1129 = vmatprep.subr.mxu0 0.0
        %1130 = vmatpush1.msra.mxu0 0.0
        %1131 = vmatprep.subr.mxu0 0.0
        %1132 = vmatpush1.msra.mxu0 0.0
        %1133 = vmatprep.subr.mxu0 0.0
        %1134 = vmatpush1.msra.mxu0 0.0
        %1135 = vmatprep.subr.mxu0 0.0
        %1136 = vmatpush1.msra.mxu0 0.0
        %1137 = vmatprep.subr.mxu0 0.0
        %1138 = vmatpush1.msra.mxu0 0.0
        %1139 = vmatprep.subr.mxu0 0.0
        %1140 = vmatpush1.msra.mxu0 0.0
        %1141 = vmatprep.subr.mxu0 0.0
        %1142 = vmatpush1.msra.mxu0 0.0
        %1143 = vmatprep.subr.mxu0 0.0
        %1144 = vmatpush1.msra.mxu0 0.0
        %1145 = vmatprep.mubr.f32.mxu0 0.0
        %1146 = vmatmul.mubr.f32.gmra.mrb[0].mxu0 %v1049
        %v1147 = vpop.f32.mrb[0].mxu0
        %v1148 = vadd.f32 %v1046, %v1147
        %v1149 = vpop.f32.mrb[0].mxu0
        %1150 = vmatprep.mubr.f32.mxu0 0.0
        %1151 = vmatmul.mubr.f32.gmra.mrb[0].mxu0 %v1052
        %v1152 = vpop.f32.mrb[0].mxu0
        %v1153 = vadd.f32 %v1046, %v1152
        %v1154 = vpop.f32.mrb[0].mxu0
        %1155 = vmatprep.mubr.f32.mxu0 0.0
        %1156 = vmatmul.mubr.f32.gmra.mrb[0].mxu0 %v1055
        %v1157 = vpop.f32.mrb[0].mxu0
        %v1158 = vadd.f32 %v1046, %v1157
        %v1159 = vpop.f32.mrb[0].mxu0
        %1160 = vmatprep.mubr.f32.mxu0 0.0
        %1161 = vmatmul.mubr.f32.gmra.mrb[0].mxu0 %v1058
        %v1162 = vpop.f32.mrb[0].mxu0
        %v1163 = vadd.f32 %v1046, %v1162
        %v1164 = vpop.f32.mrb[0].mxu0
        %1165 = vmatprep.mubr.f32.mxu0 0.0
        %1166 = vmatmul.mubr.f32.gmra.mrb[0].mxu0 %v1061
        %v1167 = vpop.f32.mrb[0].mxu0
        %v1168 = vadd.f32 %v1046, %v1167
        %v1169 = vpop.f32.mrb[0].mxu0
        %1170 = vmatprep.mubr.f32.mxu0 0.0
        %1171 = vmatmul.mubr.f32.gmra.mrb[0].mxu0 %v1064
        %v1172 = vpop.f32.mrb[0].mxu0
        %v1173 = vadd.f32 %v1046, %v1172
        %v1174 = vpop.f32.mrb[0].mxu0
        %1175 = vmatprep.mubr.f32.mxu0 0.0
        %1176 = vmatmul.mubr.f32.gmra.mrb[0].mxu0 %v1067
        %v1177 = vpop.f32.mrb[0].mxu0
        %v1178 = vadd.f32 %v1046, %v1177
        %v1179 = vpop.f32.mrb[0].mxu0
        %1180 = vmatprep.mubr.f32.mxu0 0.0
        %1181 = vmatmul.mubr.f32.gmra.mrb[0].mxu0 %v1070
        %v1182 = vpop.f32.mrb[0].mxu0
        %v1183 = vadd.f32 %v1046, %v1182
        %v1184 = vpop.f32.mrb[0].mxu0
        %1185 = vmatprep.mubr.f32.mxu0 0.0
        %1186 = vmatmul.mubr.f32.gmra.mrb[0].mxu0 %v1073
        %v1187 = vpop.f32.mrb[0].mxu0
        %v1188 = vadd.f32 %v1046, %v1187
        %v1189 = vpop.f32.mrb[0].mxu0
        %1190 = vmatprep.mubr.f32.mxu0 0.0
        %1191 = vmatmul.mubr.f32.gmra.mrb[0].mxu0 %v1076
        %v1192 = vpop.f32.mrb[0].mxu0
        %v1193 = vadd.f32 %v1046, %v1192
        %v1194 = vpop.f32.mrb[0].mxu0
        %1195 = vmatprep.mubr.f32.mxu0 0.0
        %1196 = vmatmul.mubr.f32.gmra.mrb[0].mxu0 %v1079
        %v1197 = vpop.f32.mrb[0].mxu0
        %v1198 = vadd.f32 %v1046, %v1197
        %v1199 = vpop.f32.mrb[0].mxu0
        %1200 = vdwg.mxu0
        %vm1201 = vcmask 261120
        %1202 = vst.msk [vmem:[%s370] sm:$0xff] %vm1201, %v1148
        %1203 = vst.msk [vmem:[%s370 + $0x8] sm:$0xff] %vm1201, %v1153
        %1204 = vst.msk [vmem:[%s370 + $0x10] sm:$0xff] %vm1201, %v1158
        %1205 = vst.msk [vmem:[%s370 + $0x18] sm:$0xff] %vm1201, %v1163
        %1206 = vst.msk [vmem:[%s370 + $0x20] sm:$0xff] %vm1201, %v1168
        %1207 = vst.msk [vmem:[%s370 + $0x28] sm:$0xff] %vm1201, %v1173
        %1208 = vst.msk [vmem:[%s370 + $0x30] sm:$0xff] %vm1201, %v1178
        %1209 = vst.msk [vmem:[%s370 + $0x38] sm:$0xff] %vm1201, %v1183
        %1210 = vst.msk [vmem:[%s370 + $0x40] sm:$0xff] %vm1201, %v1188
        %1211 = vst.msk [vmem:[%s370 + $0x48] sm:$0xff] %vm1201, %v1193
        %vm1212 = vcmask 253952
        %1213 = vst.msk [vmem:[%s370 + $0x50] sm:$0x1] %vm1212, %v1198
        %v1214 = vld [vmem:[%s3] sm:$0xff]
        %v1215 = vld [vmem:[%s3 + $0x8] sm:$0xff]
        %v1216 = vld [vmem:[%s4] sm:$0x1]
        %v1218 = vlaneseq
        %v1219 = vshrl.u32 %v1218, 7
        %v1220 = vsub.s32 0, %v1219
        %v1221 = vrot.slane %v1216, %v1220
        %v1224 = vsel %vm915, %v943, 0
        %v1227 = vsel %vm915, %v944, 0
        %v1230 = vsel %vm915, %v945, 0
        %v1233 = vsel %vm915, %v946, 0
        %v1236 = vsel %vm915, %v947, 0
        %v1239 = vsel %vm915, %v948, 0
        %v1242 = vsel %vm915, %v949, 0
        %v1245 = vsel %vm915, %v950, 0
        %1247 = vmatprep.subr.mxu0 0.0
        %1248 = vmatpush1.msra.mxu0 %v1214
        %1249 = vmatprep.subr.mxu0 0.0
        %1250 = vmatpush1.msra.mxu0 %v1215
        %1251 = vmatprep.subr.mxu0 0.0
        %1252 = vmatpush1.msra.mxu0 0.0
        %1253 = vmatprep.subr.mxu0 0.0
        %1254 = vmatpush1.msra.mxu0 0.0
        %1255 = vmatprep.subr.mxu0 0.0
        %1256 = vmatpush1.msra.mxu0 0.0
        %1257 = vmatprep.subr.mxu0 0.0
        %1258 = vmatpush1.msra.mxu0 0.0
        %1259 = vmatprep.subr.mxu0 0.0
        %1260 = vmatpush1.msra.mxu0 0.0
        %1261 = vmatprep.subr.mxu0 0.0
        %1262 = vmatpush1.msra.mxu0 0.0
        %1263 = vmatprep.subr.mxu0 0.0
        %1264 = vmatpush1.msra.mxu0 0.0
        %1265 = vmatprep.subr.mxu0 0.0
        %1266 = vmatpush1.msra.mxu0 0.0
        %1267 = vmatprep.subr.mxu0 0.0
        %1268 = vmatpush1.msra.mxu0 0.0
        %1269 = vmatprep.subr.mxu0 0.0
        %1270 = vmatpush1.msra.mxu0 0.0
        %1271 = vmatprep.subr.mxu0 0.0
        %1272 = vmatpush1.msra.mxu0 0.0
        %1273 = vmatprep.subr.mxu0 0.0
        %1274 = vmatpush1.msra.mxu0 0.0
        %1275 = vmatprep.subr.mxu0 0.0
        %1276 = vmatpush1.msra.mxu0 0.0
        %1277 = vmatprep.subr.mxu0 0.0
        %1278 = vmatpush1.msra.mxu0 0.0
        %1279 = vmatprep.subr.mxu0 0.0
        %1280 = vmatpush1.msra.mxu0 0.0
        %1281 = vmatprep.subr.mxu0 0.0
        %1282 = vmatpush1.msra.mxu0 0.0
        %1283 = vmatprep.subr.mxu0 0.0
        %1284 = vmatpush1.msra.mxu0 0.0
        %1285 = vmatprep.subr.mxu0 0.0
        %1286 = vmatpush1.msra.mxu0 0.0
        %1287 = vmatprep.subr.mxu0 0.0
        %1288 = vmatpush1.msra.mxu0 0.0
        %1289 = vmatprep.subr.mxu0 0.0
        %1290 = vmatpush1.msra.mxu0 0.0
        %1291 = vmatprep.subr.mxu0 0.0
        %1292 = vmatpush1.msra.mxu0 0.0
        %1293 = vmatprep.subr.mxu0 0.0
        %1294 = vmatpush1.msra.mxu0 0.0
        %1295 = vmatprep.subr.mxu0 0.0
        %1296 = vmatpush1.msra.mxu0 0.0
        %1297 = vmatprep.subr.mxu0 0.0
        %1298 = vmatpush1.msra.mxu0 0.0
        %1299 = vmatprep.subr.mxu0 0.0
        %1300 = vmatpush1.msra.mxu0 0.0
        %1301 = vmatprep.subr.mxu0 0.0
        %1302 = vmatpush1.msra.mxu0 0.0
        %1303 = vmatprep.subr.mxu0 0.0
        %1304 = vmatpush1.msra.mxu0 0.0
        %1305 = vmatprep.subr.mxu0 0.0
        %1306 = vmatpush1.msra.mxu0 0.0
        %1307 = vmatprep.subr.mxu0 0.0
        %1308 = vmatpush1.msra.mxu0 0.0
        %1309 = vmatprep.subr.mxu0 0.0
        %1310 = vmatpush1.msra.mxu0 0.0
        %1311 = vmatprep.mubr.f32.mxu0 0.0
        %1312 = vmatmul.mubr.f32.gmra.mrb[0].mxu0 %v1224
        %v1313 = vpop.f32.mrb[0].mxu0
        %v1314 = vadd.f32 %v1221, %v1313
        %v1315 = vpop.f32.mrb[0].mxu0
        %1316 = vmatprep.mubr.f32.mxu0 0.0
        %1317 = vmatmul.mubr.f32.gmra.mrb[0].mxu0 %v1227
        %v1318 = vpop.f32.mrb[0].mxu0
        %v1319 = vadd.f32 %v1221, %v1318
        %v1320 = vpop.f32.mrb[0].mxu0
        %1321 = vmatprep.mubr.f32.mxu0 0.0
        %1322 = vmatmul.mubr.f32.gmra.mrb[0].mxu0 %v1230
        %v1323 = vpop.f32.mrb[0].mxu0
        %v1324 = vadd.f32 %v1221, %v1323
        %v1325 = vpop.f32.mrb[0].mxu0
        %1326 = vmatprep.mubr.f32.mxu0 0.0
        %1327 = vmatmul.mubr.f32.gmra.mrb[0].mxu0 %v1233
        %v1328 = vpop.f32.mrb[0].mxu0
        %v1329 = vadd.f32 %v1221, %v1328
        %v1330 = vpop.f32.mrb[0].mxu0
        %1331 = vmatprep.mubr.f32.mxu0 0.0
        %1332 = vmatmul.mubr.f32.gmra.mrb[0].mxu0 %v1236
        %v1333 = vpop.f32.mrb[0].mxu0
        %v1334 = vadd.f32 %v1221, %v1333
        %v1335 = vpop.f32.mrb[0].mxu0
        %1336 = vmatprep.mubr.f32.mxu0 0.0
        %1337 = vmatmul.mubr.f32.gmra.mrb[0].mxu0 %v1239
        %v1338 = vpop.f32.mrb[0].mxu0
        %v1339 = vadd.f32 %v1221, %v1338
        %v1340 = vpop.f32.mrb[0].mxu0
        %1341 = vmatprep.mubr.f32.mxu0 0.0
        %1342 = vmatmul.mubr.f32.gmra.mrb[0].mxu0 %v1242
        %v1343 = vpop.f32.mrb[0].mxu0
        %v1344 = vadd.f32 %v1221, %v1343
        %v1345 = vpop.f32.mrb[0].mxu0
        %1346 = vmatprep.mubr.f32.mxu0 0.0
        %1347 = vmatmul.mubr.f32.gmra.mrb[0].mxu0 %v1245
        %v1348 = vpop.f32.mrb[0].mxu0
        %v1349 = vadd.f32 %v1221, %v1348
        %v1350 = vpop.f32.mrb[0].mxu0
        %1351 = vdwg.mxu0
        %v1352 = vld [vmem:[%s5] sm:$0xff]
        %v1353 = vld [vmem:[%s5 + $0x8] sm:$0xff]
        %v1354 = vld [vmem:[%s6] sm:$0x1]
        %v1356 = vlaneseq
        %v1357 = vshrl.u32 %v1356, 7
        %v1358 = vsub.s32 0, %v1357
        %v1359 = vrot.slane %v1354, %v1358
        %1361 = vmatprep.subr.mxu0 0.0
        %1362 = vmatpush1.msra.mxu0 %v1352
        %1363 = vmatprep.subr.mxu0 0.0
        %1364 = vmatpush1.msra.mxu0 %v1353
        %1365 = vmatprep.subr.mxu0 0.0
        %1366 = vmatpush1.msra.mxu0 0.0
        %1367 = vmatprep.subr.mxu0 0.0
        %1368 = vmatpush1.msra.mxu0 0.0
        %1369 = vmatprep.subr.mxu0 0.0
        %1370 = vmatpush1.msra.mxu0 0.0
        %1371 = vmatprep.subr.mxu0 0.0
        %1372 = vmatpush1.msra.mxu0 0.0
        %1373 = vmatprep.subr.mxu0 0.0
        %1374 = vmatpush1.msra.mxu0 0.0
        %1375 = vmatprep.subr.mxu0 0.0
        %1376 = vmatpush1.msra.mxu0 0.0
        %1377 = vmatprep.subr.mxu0 0.0
        %1378 = vmatpush1.msra.mxu0 0.0
        %1379 = vmatprep.subr.mxu0 0.0
        %1380 = vmatpush1.msra.mxu0 0.0
        %1381 = vmatprep.subr.mxu0 0.0
        %1382 = vmatpush1.msra.mxu0 0.0
        %1383 = vmatprep.subr.mxu0 0.0
        %1384 = vmatpush1.msra.mxu0 0.0
        %1385 = vmatprep.subr.mxu0 0.0
        %1386 = vmatpush1.msra.mxu0 0.0
        %1387 = vmatprep.subr.mxu0 0.0
        %1388 = vmatpush1.msra.mxu0 0.0
        %1389 = vmatprep.subr.mxu0 0.0
        %1390 = vmatpush1.msra.mxu0 0.0
        %1391 = vmatprep.subr.mxu0 0.0
        %1392 = vmatpush1.msra.mxu0 0.0
        %1393 = vmatprep.subr.mxu0 0.0
        %1394 = vmatpush1.msra.mxu0 0.0
        %1395 = vmatprep.subr.mxu0 0.0
        %1396 = vmatpush1.msra.mxu0 0.0
        %1397 = vmatprep.subr.mxu0 0.0
        %1398 = vmatpush1.msra.mxu0 0.0
        %1399 = vmatprep.subr.mxu0 0.0
        %1400 = vmatpush1.msra.mxu0 0.0
        %1401 = vmatprep.subr.mxu0 0.0
        %1402 = vmatpush1.msra.mxu0 0.0
        %1403 = vmatprep.subr.mxu0 0.0
        %1404 = vmatpush1.msra.mxu0 0.0
        %1405 = vmatprep.subr.mxu0 0.0
        %1406 = vmatpush1.msra.mxu0 0.0
        %1407 = vmatprep.subr.mxu0 0.0
        %1408 = vmatpush1.msra.mxu0 0.0
        %1409 = vmatprep.subr.mxu0 0.0
        %1410 = vmatpush1.msra.mxu0 0.0
        %1411 = vmatprep.subr.mxu0 0.0
        %1412 = vmatpush1.msra.mxu0 0.0
        %1413 = vmatprep.subr.mxu0 0.0
        %1414 = vmatpush1.msra.mxu0 0.0
        %1415 = vmatprep.subr.mxu0 0.0
        %1416 = vmatpush1.msra.mxu0 0.0
        %1417 = vmatprep.subr.mxu0 0.0
        %1418 = vmatpush1.msra.mxu0 0.0
        %1419 = vmatprep.subr.mxu0 0.0
        %1420 = vmatpush1.msra.mxu0 0.0
        %1421 = vmatprep.subr.mxu0 0.0
        %1422 = vmatpush1.msra.mxu0 0.0
        %1423 = vmatprep.subr.mxu0 0.0
        %1424 = vmatpush1.msra.mxu0 0.0
        %1425 = vmatprep.mubr.f32.mxu0 0.0
        %1426 = vmatmul.mubr.f32.gmra.mrb[0].mxu0 %v1049
        %v1427 = vpop.f32.mrb[0].mxu0
        %v1428 = vadd.f32 %v1359, %v1427
        %v1429 = vpop.f32.mrb[0].mxu0
        %1430 = vmatprep.mubr.f32.mxu0 0.0
        %1431 = vmatmul.mubr.f32.gmra.mrb[0].mxu0 %v1052
        %v1432 = vpop.f32.mrb[0].mxu0
        %v1433 = vadd.f32 %v1359, %v1432
        %v1434 = vpop.f32.mrb[0].mxu0
        %1435 = vmatprep.mubr.f32.mxu0 0.0
        %1436 = vmatmul.mubr.f32.gmra.mrb[0].mxu0 %v1055
        %v1437 = vpop.f32.mrb[0].mxu0
        %v1438 = vadd.f32 %v1359, %v1437
        %v1439 = vpop.f32.mrb[0].mxu0
        %1440 = vmatprep.mubr.f32.mxu0 0.0
        %1441 = vmatmul.mubr.f32.gmra.mrb[0].mxu0 %v1058
        %v1442 = vpop.f32.mrb[0].mxu0
        %v1443 = vadd.f32 %v1359, %v1442
        %v1444 = vpop.f32.mrb[0].mxu0
        %1445 = vmatprep.mubr.f32.mxu0 0.0
        %1446 = vmatmul.mubr.f32.gmra.mrb[0].mxu0 %v1061
        %v1447 = vpop.f32.mrb[0].mxu0
        %v1448 = vadd.f32 %v1359, %v1447
        %v1449 = vpop.f32.mrb[0].mxu0
        %1450 = vmatprep.mubr.f32.mxu0 0.0
        %1451 = vmatmul.mubr.f32.gmra.mrb[0].mxu0 %v1064
        %v1452 = vpop.f32.mrb[0].mxu0
        %v1453 = vadd.f32 %v1359, %v1452
        %v1454 = vpop.f32.mrb[0].mxu0
        %1455 = vmatprep.mubr.f32.mxu0 0.0
        %1456 = vmatmul.mubr.f32.gmra.mrb[0].mxu0 %v1067
        %v1457 = vpop.f32.mrb[0].mxu0
        %v1458 = vadd.f32 %v1359, %v1457
        %v1459 = vpop.f32.mrb[0].mxu0
        %1460 = vmatprep.mubr.f32.mxu0 0.0
        %1461 = vmatmul.mubr.f32.gmra.mrb[0].mxu0 %v1070
        %v1462 = vpop.f32.mrb[0].mxu0
        %v1463 = vadd.f32 %v1359, %v1462
        %v1464 = vpop.f32.mrb[0].mxu0
        %1465 = vmatprep.mubr.f32.mxu0 0.0
        %1466 = vmatmul.mubr.f32.gmra.mrb[0].mxu0 %v1073
        %v1467 = vpop.f32.mrb[0].mxu0
        %v1468 = vadd.f32 %v1359, %v1467
        %v1469 = vpop.f32.mrb[0].mxu0
        %1470 = vmatprep.mubr.f32.mxu0 0.0
        %1471 = vmatmul.mubr.f32.gmra.mrb[0].mxu0 %v1076
        %v1472 = vpop.f32.mrb[0].mxu0
        %v1473 = vadd.f32 %v1359, %v1472
        %v1474 = vpop.f32.mrb[0].mxu0
        %1475 = vmatprep.mubr.f32.mxu0 0.0
        %1476 = vmatmul.mubr.f32.gmra.mrb[0].mxu0 %v1079
        %v1477 = vpop.f32.mrb[0].mxu0
        %v1478 = vadd.f32 %v1359, %v1477
        %v1479 = vpop.f32.mrb[0].mxu0
        %1480 = vdwg.mxu0
        %vm1481 = vcmask 64512
        %v1483 = vsel %vm1481, %v1314, 0
        %v1486 = vsel %vm1481, %v1319, 0
        %v1489 = vsel %vm1481, %v1324, 0
        %v1492 = vsel %vm1481, %v1329, 0
        %v1495 = vsel %vm1481, %v1334, 0
        %v1498 = vsel %vm1481, %v1339, 0
        %v1501 = vsel %vm1481, %v1344, 0
        %v1504 = vsel %vm1481, %v1349, 0
        %v1507 = vsel %vm1481, %v1428, 0
        %v1510 = vsel %vm1481, %v1433, 0
        %v1513 = vsel %vm1481, %v1438, 0
        %v1516 = vsel %vm1481, %v1443, 0
        %v1519 = vsel %vm1481, %v1448, 0
        %v1522 = vsel %vm1481, %v1453, 0
        %v1525 = vsel %vm1481, %v1458, 0
        %v1528 = vsel %vm1481, %v1463, 0
        %v1531 = vsel %vm1481, %v1468, 0
        %v1534 = vsel %vm1481, %v1473, 0
        %v1537 = vsel %vm1481, %v1478, 0
        %1539 = vmatprep.subr.mxu0 0.0
        %1540 = vmatpush1.xpose.msra.mxu0 %v1507
        %1541 = vmatprep.subr.mxu0 0.0
        %1542 = vmatpush1.xpose.msra.mxu0 %v1510
        %1543 = vmatprep.subr.mxu0 0.0
        %1544 = vmatpush1.xpose.msra.mxu0 %v1513
        %1545 = vmatprep.subr.mxu0 0.0
        %1546 = vmatpush1.xpose.msra.mxu0 %v1516
        %1547 = vmatprep.subr.mxu0 0.0
        %1548 = vmatpush1.xpose.msra.mxu0 %v1519
        %1549 = vmatprep.subr.mxu0 0.0
        %1550 = vmatpush1.xpose.msra.mxu0 %v1522
        %1551 = vmatprep.subr.mxu0 0.0
        %1552 = vmatpush1.xpose.msra.mxu0 %v1525
        %1553 = vmatprep.subr.mxu0 0.0
        %1554 = vmatpush1.xpose.msra.mxu0 %v1528
        %1555 = vmatprep.subr.mxu0 0.0
        %1556 = vmatpush1.xpose.msra.mxu0 %v1531
        %1557 = vmatprep.subr.mxu0 0.0
        %1558 = vmatpush1.xpose.msra.mxu0 %v1534
        %1559 = vmatprep.subr.mxu0 0.0
        %1560 = vmatpush1.xpose.msra.mxu0 %v1537
        %1561 = vmatprep.subr.mxu0 0.0
        %1562 = vmatpush1.xpose.msra.mxu0 0.0
        %1563 = vmatprep.subr.mxu0 0.0
        %1564 = vmatpush1.xpose.msra.mxu0 0.0
        %1565 = vmatprep.subr.mxu0 0.0
        %1566 = vmatpush1.xpose.msra.mxu0 0.0
        %1567 = vmatprep.subr.mxu0 0.0
        %1568 = vmatpush1.xpose.msra.mxu0 0.0
        %1569 = vmatprep.subr.mxu0 0.0
        %1570 = vmatpush1.xpose.msra.mxu0 0.0
        %1571 = vmatprep.subr.mxu0 0.0
        %1572 = vmatpush1.xpose.msra.mxu0 0.0
        %1573 = vmatprep.subr.mxu0 0.0
        %1574 = vmatpush1.xpose.msra.mxu0 0.0
        %1575 = vmatprep.subr.mxu0 0.0
        %1576 = vmatpush1.xpose.msra.mxu0 0.0
        %1577 = vmatprep.subr.mxu0 0.0
        %1578 = vmatpush1.xpose.msra.mxu0 0.0
        %1579 = vmatprep.subr.mxu0 0.0
        %1580 = vmatpush1.xpose.msra.mxu0 0.0
        %1581 = vmatprep.subr.mxu0 0.0
        %1582 = vmatpush1.xpose.msra.mxu0 0.0
        %1583 = vmatprep.subr.mxu0 0.0
        %1584 = vmatpush1.xpose.msra.mxu0 0.0
        %1585 = vmatprep.subr.mxu0 0.0
        %1586 = vmatpush1.xpose.msra.mxu0 0.0
        %1587 = vmatprep.subr.mxu0 0.0
        %1588 = vmatpush1.xpose.msra.mxu0 0.0
        %1589 = vmatprep.subr.mxu0 0.0
        %1590 = vmatpush1.xpose.msra.mxu0 0.0
        %1591 = vmatprep.subr.mxu0 0.0
        %1592 = vmatpush1.xpose.msra.mxu0 0.0
        %1593 = vmatprep.subr.mxu0 0.0
        %1594 = vmatpush1.xpose.msra.mxu0 0.0
        %1595 = vmatprep.subr.mxu0 0.0
        %1596 = vmatpush1.xpose.msra.mxu0 0.0
        %1597 = vmatprep.subr.mxu0 0.0
        %1598 = vmatpush1.xpose.msra.mxu0 0.0
        %1599 = vmatprep.subr.mxu0 0.0
        %1600 = vmatpush1.xpose.msra.mxu0 0.0
        %1601 = vmatprep.subr.mxu0 0.0
        %1602 = vmatpush1.xpose.msra.mxu0 0.0
        %1603 = vmatprep.mubr.f32.mxu0 0.0
        %1604 = vmatmul.mubr.f32.gmra.mrb[0].mxu0 %v1483
        %v1605 = vpop.f32.mrb[0].mxu0
        %v1606 = vadd.f32 0.0, %v1605
        %v1607 = vpop.f32.mrb[0].mxu0
        %1608 = vmatprep.mubr.f32.mxu0 0.0
        %1609 = vmatmul.mubr.f32.gmra.mrb[0].mxu0 %v1486
        %v1610 = vpop.f32.mrb[0].mxu0
        %v1611 = vadd.f32 0.0, %v1610
        %v1612 = vpop.f32.mrb[0].mxu0
        %1613 = vmatprep.mubr.f32.mxu0 0.0
        %1614 = vmatmul.mubr.f32.gmra.mrb[0].mxu0 %v1489
        %v1615 = vpop.f32.mrb[0].mxu0
        %v1616 = vadd.f32 0.0, %v1615
        %v1617 = vpop.f32.mrb[0].mxu0
        %1618 = vmatprep.mubr.f32.mxu0 0.0
        %1619 = vmatmul.mubr.f32.gmra.mrb[0].mxu0 %v1492
        %v1620 = vpop.f32.mrb[0].mxu0
        %v1621 = vadd.f32 0.0, %v1620
        %v1622 = vpop.f32.mrb[0].mxu0
        %1623 = vmatprep.mubr.f32.mxu0 0.0
        %1624 = vmatmul.mubr.f32.gmra.mrb[0].mxu0 %v1495
        %v1625 = vpop.f32.mrb[0].mxu0
        %v1626 = vadd.f32 0.0, %v1625
        %v1627 = vpop.f32.mrb[0].mxu0
        %1628 = vmatprep.mubr.f32.mxu0 0.0
        %1629 = vmatmul.mubr.f32.gmra.mrb[0].mxu0 %v1498
        %v1630 = vpop.f32.mrb[0].mxu0
        %v1631 = vadd.f32 0.0, %v1630
        %v1632 = vpop.f32.mrb[0].mxu0
        %1633 = vmatprep.mubr.f32.mxu0 0.0
        %1634 = vmatmul.mubr.f32.gmra.mrb[0].mxu0 %v1501
        %v1635 = vpop.f32.mrb[0].mxu0
        %v1636 = vadd.f32 0.0, %v1635
        %v1637 = vpop.f32.mrb[0].mxu0
        %1638 = vmatprep.mubr.f32.mxu0 0.0
        %1639 = vmatmul.mubr.f32.gmra.mrb[0].mxu0 %v1504
        %v1640 = vpop.f32.mrb[0].mxu0
        %v1641 = vadd.f32 0.0, %v1640
        %v1642 = vpop.f32.mrb[0].mxu0
        %1643 = vdwg.mxu0
        %vm1644 = vcmask 662528
        %1645 = vst.msk [vmem:[%s353] sm:$0xff] %vm1644, %v1606
        %1646 = vst.msk [vmem:[%s353 + $0x8] sm:$0xff] %vm1644, %v1611
        %1647 = vst.msk [vmem:[%s353 + $0x10] sm:$0xff] %vm1644, %v1616
        %1648 = vst.msk [vmem:[%s353 + $0x18] sm:$0xff] %vm1644, %v1621
        %1649 = vst.msk [vmem:[%s353 + $0x20] sm:$0xff] %vm1644, %v1626
        %1650 = vst.msk [vmem:[%s353 + $0x28] sm:$0xff] %vm1644, %v1631
        %1651 = vst.msk [vmem:[%s353 + $0x30] sm:$0xff] %vm1644, %v1636
        %1652 = vst.msk [vmem:[%s353 + $0x38] sm:$0xff] %vm1644, %v1641
        %s1653 = scalar_lea.vmem %s3, 16
        %v1654 = vld [vmem:[%s1653] sm:$0xff]
        %v1655 = vld [vmem:[%s1653 + $0x8] sm:$0xff]
        %s1656 = scalar_lea.vmem %s4, 1
        %v1657 = vld [vmem:[%s1656] sm:$0x1]
        %v1659 = vlaneseq
        %v1660 = vshrl.u32 %v1659, 7
        %v1661 = vsub.s32 0, %v1660
        %v1662 = vrot.slane %v1657, %v1661
        %1664 = vmatprep.subr.mxu0 0.0
        %1665 = vmatpush1.msra.mxu0 %v1654
        %1666 = vmatprep.subr.mxu0 0.0
        %1667 = vmatpush1.msra.mxu0 %v1655
        %1668 = vmatprep.subr.mxu0 0.0
        %1669 = vmatpush1.msra.mxu0 0.0
        %1670 = vmatprep.subr.mxu0 0.0
        %1671 = vmatpush1.msra.mxu0 0.0
        %1672 = vmatprep.subr.mxu0 0.0
        %1673 = vmatpush1.msra.mxu0 0.0
        %1674 = vmatprep.subr.mxu0 0.0
        %1675 = vmatpush1.msra.mxu0 0.0
        %1676 = vmatprep.subr.mxu0 0.0
        %1677 = vmatpush1.msra.mxu0 0.0
        %1678 = vmatprep.subr.mxu0 0.0
        %1679 = vmatpush1.msra.mxu0 0.0
        %1680 = vmatprep.subr.mxu0 0.0
        %1681 = vmatpush1.msra.mxu0 0.0
        %1682 = vmatprep.subr.mxu0 0.0
        %1683 = vmatpush1.msra.mxu0 0.0
        %1684 = vmatprep.subr.mxu0 0.0
        %1685 = vmatpush1.msra.mxu0 0.0
        %1686 = vmatprep.subr.mxu0 0.0
        %1687 = vmatpush1.msra.mxu0 0.0
        %1688 = vmatprep.subr.mxu0 0.0
        %1689 = vmatpush1.msra.mxu0 0.0
        %1690 = vmatprep.subr.mxu0 0.0
        %1691 = vmatpush1.msra.mxu0 0.0
        %1692 = vmatprep.subr.mxu0 0.0
        %1693 = vmatpush1.msra.mxu0 0.0
        %1694 = vmatprep.subr.mxu0 0.0
        %1695 = vmatpush1.msra.mxu0 0.0
        %1696 = vmatprep.subr.mxu0 0.0
        %1697 = vmatpush1.msra.mxu0 0.0
        %1698 = vmatprep.subr.mxu0 0.0
        %1699 = vmatpush1.msra.mxu0 0.0
        %1700 = vmatprep.subr.mxu0 0.0
        %1701 = vmatpush1.msra.mxu0 0.0
        %1702 = vmatprep.subr.mxu0 0.0
        %1703 = vmatpush1.msra.mxu0 0.0
        %1704 = vmatprep.subr.mxu0 0.0
        %1705 = vmatpush1.msra.mxu0 0.0
        %1706 = vmatprep.subr.mxu0 0.0
        %1707 = vmatpush1.msra.mxu0 0.0
        %1708 = vmatprep.subr.mxu0 0.0
        %1709 = vmatpush1.msra.mxu0 0.0
        %1710 = vmatprep.subr.mxu0 0.0
        %1711 = vmatpush1.msra.mxu0 0.0
        %1712 = vmatprep.subr.mxu0 0.0
        %1713 = vmatpush1.msra.mxu0 0.0
        %1714 = vmatprep.subr.mxu0 0.0
        %1715 = vmatpush1.msra.mxu0 0.0
        %1716 = vmatprep.subr.mxu0 0.0
        %1717 = vmatpush1.msra.mxu0 0.0
        %1718 = vmatprep.subr.mxu0 0.0
        %1719 = vmatpush1.msra.mxu0 0.0
        %1720 = vmatprep.subr.mxu0 0.0
        %1721 = vmatpush1.msra.mxu0 0.0
        %1722 = vmatprep.subr.mxu0 0.0
        %1723 = vmatpush1.msra.mxu0 0.0
        %1724 = vmatprep.subr.mxu0 0.0
        %1725 = vmatpush1.msra.mxu0 0.0
        %1726 = vmatprep.subr.mxu0 0.0
        %1727 = vmatpush1.msra.mxu0 0.0
        %1728 = vmatprep.mubr.f32.mxu0 0.0
        %1729 = vmatmul.mubr.f32.gmra.mrb[0].mxu0 %v1224
        %v1730 = vpop.f32.mrb[0].mxu0
        %v1731 = vadd.f32 %v1662, %v1730
        %v1732 = vpop.f32.mrb[0].mxu0
        %1733 = vmatprep.mubr.f32.mxu0 0.0
        %1734 = vmatmul.mubr.f32.gmra.mrb[0].mxu0 %v1227
        %v1735 = vpop.f32.mrb[0].mxu0
        %v1736 = vadd.f32 %v1662, %v1735
        %v1737 = vpop.f32.mrb[0].mxu0
        %1738 = vmatprep.mubr.f32.mxu0 0.0
        %1739 = vmatmul.mubr.f32.gmra.mrb[0].mxu0 %v1230
        %v1740 = vpop.f32.mrb[0].mxu0
        %v1741 = vadd.f32 %v1662, %v1740
        %v1742 = vpop.f32.mrb[0].mxu0
        %1743 = vmatprep.mubr.f32.mxu0 0.0
        %1744 = vmatmul.mubr.f32.gmra.mrb[0].mxu0 %v1233
        %v1745 = vpop.f32.mrb[0].mxu0
        %v1746 = vadd.f32 %v1662, %v1745
        %v1747 = vpop.f32.mrb[0].mxu0
        %1748 = vmatprep.mubr.f32.mxu0 0.0
        %1749 = vmatmul.mubr.f32.gmra.mrb[0].mxu0 %v1236
        %v1750 = vpop.f32.mrb[0].mxu0
        %v1751 = vadd.f32 %v1662, %v1750
        %v1752 = vpop.f32.mrb[0].mxu0
        %1753 = vmatprep.mubr.f32.mxu0 0.0
        %1754 = vmatmul.mubr.f32.gmra.mrb[0].mxu0 %v1239
        %v1755 = vpop.f32.mrb[0].mxu0
        %v1756 = vadd.f32 %v1662, %v1755
        %v1757 = vpop.f32.mrb[0].mxu0
        %1758 = vmatprep.mubr.f32.mxu0 0.0
        %1759 = vmatmul.mubr.f32.gmra.mrb[0].mxu0 %v1242
        %v1760 = vpop.f32.mrb[0].mxu0
        %v1761 = vadd.f32 %v1662, %v1760
        %v1762 = vpop.f32.mrb[0].mxu0
        %1763 = vmatprep.mubr.f32.mxu0 0.0
        %1764 = vmatmul.mubr.f32.gmra.mrb[0].mxu0 %v1245
        %v1765 = vpop.f32.mrb[0].mxu0
        %v1766 = vadd.f32 %v1662, %v1765
        %v1767 = vpop.f32.mrb[0].mxu0
        %1768 = vdwg.mxu0
        %s1769 = scalar_lea.vmem %s5, 16
        %v1770 = vld [vmem:[%s1769] sm:$0xff]
        %v1771 = vld [vmem:[%s1769 + $0x8] sm:$0xff]
        %s1772 = scalar_lea.vmem %s6, 1
        %v1773 = vld [vmem:[%s1772] sm:$0x1]
        %v1775 = vlaneseq
        %v1776 = vshrl.u32 %v1775, 7
        %v1777 = vsub.s32 0, %v1776
        %v1778 = vrot.slane %v1773, %v1777
        %1780 = vmatprep.subr.mxu0 0.0
        %1781 = vmatpush1.msra.mxu0 %v1770
        %1782 = vmatprep.subr.mxu0 0.0
        %1783 = vmatpush1.msra.mxu0 %v1771
        %1784 = vmatprep.subr.mxu0 0.0
        %1785 = vmatpush1.msra.mxu0 0.0
        %1786 = vmatprep.subr.mxu0 0.0
        %1787 = vmatpush1.msra.mxu0 0.0
        %1788 = vmatprep.subr.mxu0 0.0
        %1789 = vmatpush1.msra.mxu0 0.0
        %1790 = vmatprep.subr.mxu0 0.0
        %1791 = vmatpush1.msra.mxu0 0.0
        %1792 = vmatprep.subr.mxu0 0.0
        %1793 = vmatpush1.msra.mxu0 0.0
        %1794 = vmatprep.subr.mxu0 0.0
        %1795 = vmatpush1.msra.mxu0 0.0
        %1796 = vmatprep.subr.mxu0 0.0
        %1797 = vmatpush1.msra.mxu0 0.0
        %1798 = vmatprep.subr.mxu0 0.0
        %1799 = vmatpush1.msra.mxu0 0.0
        %1800 = vmatprep.subr.mxu0 0.0
        %1801 = vmatpush1.msra.mxu0 0.0
        %1802 = vmatprep.subr.mxu0 0.0
        %1803 = vmatpush1.msra.mxu0 0.0
        %1804 = vmatprep.subr.mxu0 0.0
        %1805 = vmatpush1.msra.mxu0 0.0
        %1806 = vmatprep.subr.mxu0 0.0
        %1807 = vmatpush1.msra.mxu0 0.0
        %1808 = vmatprep.subr.mxu0 0.0
        %1809 = vmatpush1.msra.mxu0 0.0
        %1810 = vmatprep.subr.mxu0 0.0
        %1811 = vmatpush1.msra.mxu0 0.0
        %1812 = vmatprep.subr.mxu0 0.0
        %1813 = vmatpush1.msra.mxu0 0.0
        %1814 = vmatprep.subr.mxu0 0.0
        %1815 = vmatpush1.msra.mxu0 0.0
        %1816 = vmatprep.subr.mxu0 0.0
        %1817 = vmatpush1.msra.mxu0 0.0
        %1818 = vmatprep.subr.mxu0 0.0
        %1819 = vmatpush1.msra.mxu0 0.0
        %1820 = vmatprep.subr.mxu0 0.0
        %1821 = vmatpush1.msra.mxu0 0.0
        %1822 = vmatprep.subr.mxu0 0.0
        %1823 = vmatpush1.msra.mxu0 0.0
        %1824 = vmatprep.subr.mxu0 0.0
        %1825 = vmatpush1.msra.mxu0 0.0
        %1826 = vmatprep.subr.mxu0 0.0
        %1827 = vmatpush1.msra.mxu0 0.0
        %1828 = vmatprep.subr.mxu0 0.0
        %1829 = vmatpush1.msra.mxu0 0.0
        %1830 = vmatprep.subr.mxu0 0.0
        %1831 = vmatpush1.msra.mxu0 0.0
        %1832 = vmatprep.subr.mxu0 0.0
        %1833 = vmatpush1.msra.mxu0 0.0
        %1834 = vmatprep.subr.mxu0 0.0
        %1835 = vmatpush1.msra.mxu0 0.0
        %1836 = vmatprep.subr.mxu0 0.0
        %1837 = vmatpush1.msra.mxu0 0.0
        %1838 = vmatprep.subr.mxu0 0.0
        %1839 = vmatpush1.msra.mxu0 0.0
        %1840 = vmatprep.subr.mxu0 0.0
        %1841 = vmatpush1.msra.mxu0 0.0
        %1842 = vmatprep.subr.mxu0 0.0
        %1843 = vmatpush1.msra.mxu0 0.0
        %1844 = vmatprep.mubr.f32.mxu0 0.0
        %1845 = vmatmul.mubr.f32.gmra.mrb[0].mxu0 %v1049
        %v1846 = vpop.f32.mrb[0].mxu0
        %v1847 = vadd.f32 %v1778, %v1846
        %v1848 = vpop.f32.mrb[0].mxu0
        %1849 = vmatprep.mubr.f32.mxu0 0.0
        %1850 = vmatmul.mubr.f32.gmra.mrb[0].mxu0 %v1052
        %v1851 = vpop.f32.mrb[0].mxu0
        %v1852 = vadd.f32 %v1778, %v1851
        %v1853 = vpop.f32.mrb[0].mxu0
        %1854 = vmatprep.mubr.f32.mxu0 0.0
        %1855 = vmatmul.mubr.f32.gmra.mrb[0].mxu0 %v1055
        %v1856 = vpop.f32.mrb[0].mxu0
        %v1857 = vadd.f32 %v1778, %v1856
        %v1858 = vpop.f32.mrb[0].mxu0
        %1859 = vmatprep.mubr.f32.mxu0 0.0
        %1860 = vmatmul.mubr.f32.gmra.mrb[0].mxu0 %v1058
        %v1861 = vpop.f32.mrb[0].mxu0
        %v1862 = vadd.f32 %v1778, %v1861
        %v1863 = vpop.f32.mrb[0].mxu0
        %1864 = vmatprep.mubr.f32.mxu0 0.0
        %1865 = vmatmul.mubr.f32.gmra.mrb[0].mxu0 %v1061
        %v1866 = vpop.f32.mrb[0].mxu0
        %v1867 = vadd.f32 %v1778, %v1866
        %v1868 = vpop.f32.mrb[0].mxu0
        %1869 = vmatprep.mubr.f32.mxu0 0.0
        %1870 = vmatmul.mubr.f32.gmra.mrb[0].mxu0 %v1064
        %v1871 = vpop.f32.mrb[0].mxu0
        %v1872 = vadd.f32 %v1778, %v1871
        %v1873 = vpop.f32.mrb[0].mxu0
        %1874 = vmatprep.mubr.f32.mxu0 0.0
        %1875 = vmatmul.mubr.f32.gmra.mrb[0].mxu0 %v1067
        %v1876 = vpop.f32.mrb[0].mxu0
        %v1877 = vadd.f32 %v1778, %v1876
        %v1878 = vpop.f32.mrb[0].mxu0
        %1879 = vmatprep.mubr.f32.mxu0 0.0
        %1880 = vmatmul.mubr.f32.gmra.mrb[0].mxu0 %v1070
        %v1881 = vpop.f32.mrb[0].mxu0
        %v1882 = vadd.f32 %v1778, %v1881
        %v1883 = vpop.f32.mrb[0].mxu0
        %1884 = vmatprep.mubr.f32.mxu0 0.0
        %1885 = vmatmul.mubr.f32.gmra.mrb[0].mxu0 %v1073
        %v1886 = vpop.f32.mrb[0].mxu0
        %v1887 = vadd.f32 %v1778, %v1886
        %v1888 = vpop.f32.mrb[0].mxu0
        %1889 = vmatprep.mubr.f32.mxu0 0.0
        %1890 = vmatmul.mubr.f32.gmra.mrb[0].mxu0 %v1076
        %v1891 = vpop.f32.mrb[0].mxu0
        %v1892 = vadd.f32 %v1778, %v1891
        %v1893 = vpop.f32.mrb[0].mxu0
        %1894 = vmatprep.mubr.f32.mxu0 0.0
        %1895 = vmatmul.mubr.f32.gmra.mrb[0].mxu0 %v1079
        %v1896 = vpop.f32.mrb[0].mxu0
        %v1897 = vadd.f32 %v1778, %v1896
        %v1898 = vpop.f32.mrb[0].mxu0
        %1899 = vdwg.mxu0
        %v1901 = vsel %vm1481, %v1731, 0
        %v1904 = vsel %vm1481, %v1736, 0
        %v1907 = vsel %vm1481, %v1741, 0
        %v1910 = vsel %vm1481, %v1746, 0
        %v1913 = vsel %vm1481, %v1751, 0
        %v1916 = vsel %vm1481, %v1756, 0
        %v1919 = vsel %vm1481, %v1761, 0
        %v1922 = vsel %vm1481, %v1766, 0
        %v1925 = vsel %vm1481, %v1847, 0
        %v1928 = vsel %vm1481, %v1852, 0
        %v1931 = vsel %vm1481, %v1857, 0
        %v1934 = vsel %vm1481, %v1862, 0
        %v1937 = vsel %vm1481, %v1867, 0
        %v1940 = vsel %vm1481, %v1872, 0
        %v1943 = vsel %vm1481, %v1877, 0
        %v1946 = vsel %vm1481, %v1882, 0
        %v1949 = vsel %vm1481, %v1887, 0
        %v1952 = vsel %vm1481, %v1892, 0
        %v1955 = vsel %vm1481, %v1897, 0
        %1957 = vmatprep.subr.mxu0 0.0
        %1958 = vmatpush1.xpose.msra.mxu0 %v1925
        %1959 = vmatprep.subr.mxu0 0.0
        %1960 = vmatpush1.xpose.msra.mxu0 %v1928
        %1961 = vmatprep.subr.mxu0 0.0
        %1962 = vmatpush1.xpose.msra.mxu0 %v1931
        %1963 = vmatprep.subr.mxu0 0.0
        %1964 = vmatpush1.xpose.msra.mxu0 %v1934
        %1965 = vmatprep.subr.mxu0 0.0
        %1966 = vmatpush1.xpose.msra.mxu0 %v1937
        %1967 = vmatprep.subr.mxu0 0.0
        %1968 = vmatpush1.xpose.msra.mxu0 %v1940
        %1969 = vmatprep.subr.mxu0 0.0
        %1970 = vmatpush1.xpose.msra.mxu0 %v1943
        %1971 = vmatprep.subr.mxu0 0.0
        %1972 = vmatpush1.xpose.msra.mxu0 %v1946
        %1973 = vmatprep.subr.mxu0 0.0
        %1974 = vmatpush1.xpose.msra.mxu0 %v1949
        %1975 = vmatprep.subr.mxu0 0.0
        %1976 = vmatpush1.xpose.msra.mxu0 %v1952
        %1977 = vmatprep.subr.mxu0 0.0
        %1978 = vmatpush1.xpose.msra.mxu0 %v1955
        %1979 = vmatprep.subr.mxu0 0.0
        %1980 = vmatpush1.xpose.msra.mxu0 0.0
        %1981 = vmatprep.subr.mxu0 0.0
        %1982 = vmatpush1.xpose.msra.mxu0 0.0
        %1983 = vmatprep.subr.mxu0 0.0
        %1984 = vmatpush1.xpose.msra.mxu0 0.0
        %1985 = vmatprep.subr.mxu0 0.0
        %1986 = vmatpush1.xpose.msra.mxu0 0.0
        %1987 = vmatprep.subr.mxu0 0.0
        %1988 = vmatpush1.xpose.msra.mxu0 0.0
        %1989 = vmatprep.subr.mxu0 0.0
        %1990 = vmatpush1.xpose.msra.mxu0 0.0
        %1991 = vmatprep.subr.mxu0 0.0
        %1992 = vmatpush1.xpose.msra.mxu0 0.0
        %1993 = vmatprep.subr.mxu0 0.0
        %1994 = vmatpush1.xpose.msra.mxu0 0.0
        %1995 = vmatprep.subr.mxu0 0.0
        %1996 = vmatpush1.xpose.msra.mxu0 0.0
        %1997 = vmatprep.subr.mxu0 0.0
        %1998 = vmatpush1.xpose.msra.mxu0 0.0
        %1999 = vmatprep.subr.mxu0 0.0
        %2000 = vmatpush1.xpose.msra.mxu0 0.0
        %2001 = vmatprep.subr.mxu0 0.0
        %2002 = vmatpush1.xpose.msra.mxu0 0.0
        %2003 = vmatprep.subr.mxu0 0.0
        %2004 = vmatpush1.xpose.msra.mxu0 0.0
        %2005 = vmatprep.subr.mxu0 0.0
        %2006 = vmatpush1.xpose.msra.mxu0 0.0
        %2007 = vmatprep.subr.mxu0 0.0
        %2008 = vmatpush1.xpose.msra.mxu0 0.0
        %2009 = vmatprep.subr.mxu0 0.0
        %2010 = vmatpush1.xpose.msra.mxu0 0.0
        %2011 = vmatprep.subr.mxu0 0.0
        %2012 = vmatpush1.xpose.msra.mxu0 0.0
        %2013 = vmatprep.subr.mxu0 0.0
        %2014 = vmatpush1.xpose.msra.mxu0 0.0
        %2015 = vmatprep.subr.mxu0 0.0
        %2016 = vmatpush1.xpose.msra.mxu0 0.0
        %2017 = vmatprep.subr.mxu0 0.0
        %2018 = vmatpush1.xpose.msra.mxu0 0.0
        %2019 = vmatprep.subr.mxu0 0.0
        %2020 = vmatpush1.xpose.msra.mxu0 0.0
        %2021 = vmatprep.mubr.f32.mxu0 0.0
        %2022 = vmatmul.mubr.f32.gmra.mrb[0].mxu0 %v1901
        %v2023 = vpop.f32.mrb[0].mxu0
        %v2024 = vadd.f32 0.0, %v2023
        %v2025 = vpop.f32.mrb[0].mxu0
        %2026 = vmatprep.mubr.f32.mxu0 0.0
        %2027 = vmatmul.mubr.f32.gmra.mrb[0].mxu0 %v1904
        %v2028 = vpop.f32.mrb[0].mxu0
        %v2029 = vadd.f32 0.0, %v2028
        %v2030 = vpop.f32.mrb[0].mxu0
        %2031 = vmatprep.mubr.f32.mxu0 0.0
        %2032 = vmatmul.mubr.f32.gmra.mrb[0].mxu0 %v1907
        %v2033 = vpop.f32.mrb[0].mxu0
        %v2034 = vadd.f32 0.0, %v2033
        %v2035 = vpop.f32.mrb[0].mxu0
        %2036 = vmatprep.mubr.f32.mxu0 0.0
        %2037 = vmatmul.mubr.f32.gmra.mrb[0].mxu0 %v1910
        %v2038 = vpop.f32.mrb[0].mxu0
        %v2039 = vadd.f32 0.0, %v2038
        %v2040 = vpop.f32.mrb[0].mxu0
        %2041 = vmatprep.mubr.f32.mxu0 0.0
        %2042 = vmatmul.mubr.f32.gmra.mrb[0].mxu0 %v1913
        %v2043 = vpop.f32.mrb[0].mxu0
        %v2044 = vadd.f32 0.0, %v2043
        %v2045 = vpop.f32.mrb[0].mxu0
        %2046 = vmatprep.mubr.f32.mxu0 0.0
        %2047 = vmatmul.mubr.f32.gmra.mrb[0].mxu0 %v1916
        %v2048 = vpop.f32.mrb[0].mxu0
        %v2049 = vadd.f32 0.0, %v2048
        %v2050 = vpop.f32.mrb[0].mxu0
        %2051 = vmatprep.mubr.f32.mxu0 0.0
        %2052 = vmatmul.mubr.f32.gmra.mrb[0].mxu0 %v1919
        %v2053 = vpop.f32.mrb[0].mxu0
        %v2054 = vadd.f32 0.0, %v2053
        %v2055 = vpop.f32.mrb[0].mxu0
        %2056 = vmatprep.mubr.f32.mxu0 0.0
        %2057 = vmatmul.mubr.f32.gmra.mrb[0].mxu0 %v1922
        %v2058 = vpop.f32.mrb[0].mxu0
        %v2059 = vadd.f32 0.0, %v2058
        %v2060 = vpop.f32.mrb[0].mxu0
        %2061 = vdwg.mxu0
        %s2062 = scalar_lea.vmem %s353, 64 [#allocation4]
        %2063 = vst.msk [vmem:[%s2062] sm:$0xff] %vm1644, %v2024
        %2064 = vst.msk [vmem:[%s2062 + $0x8] sm:$0xff] %vm1644, %v2029
        %2065 = vst.msk [vmem:[%s2062 + $0x10] sm:$0xff] %vm1644, %v2034
        %2066 = vst.msk [vmem:[%s2062 + $0x18] sm:$0xff] %vm1644, %v2039
        %2067 = vst.msk [vmem:[%s2062 + $0x20] sm:$0xff] %vm1644, %v2044
        %2068 = vst.msk [vmem:[%s2062 + $0x28] sm:$0xff] %vm1644, %v2049
        %2069 = vst.msk [vmem:[%s2062 + $0x30] sm:$0xff] %vm1644, %v2054
        %2070 = vst.msk [vmem:[%s2062 + $0x38] sm:$0xff] %vm1644, %v2059
        %s2071 = scalar_lea.vmem %s3, 32
        %v2072 = vld [vmem:[%s2071] sm:$0xff]
        %v2073 = vld [vmem:[%s2071 + $0x8] sm:$0xff]
        %s2074 = scalar_lea.vmem %s4, 2
        %v2075 = vld [vmem:[%s2074] sm:$0x1]
        %v2077 = vlaneseq
        %v2078 = vshrl.u32 %v2077, 7
        %v2079 = vsub.s32 0, %v2078
        %v2080 = vrot.slane %v2075, %v2079
        %2082 = vmatprep.subr.mxu0 0.0
        %2083 = vmatpush1.msra.mxu0 %v2072
        %2084 = vmatprep.subr.mxu0 0.0
        %2085 = vmatpush1.msra.mxu0 %v2073
        %2086 = vmatprep.subr.mxu0 0.0
        %2087 = vmatpush1.msra.mxu0 0.0
        %2088 = vmatprep.subr.mxu0 0.0
        %2089 = vmatpush1.msra.mxu0 0.0
        %2090 = vmatprep.subr.mxu0 0.0
        %2091 = vmatpush1.msra.mxu0 0.0
        %2092 = vmatprep.subr.mxu0 0.0
        %2093 = vmatpush1.msra.mxu0 0.0
        %2094 = vmatprep.subr.mxu0 0.0
        %2095 = vmatpush1.msra.mxu0 0.0
        %2096 = vmatprep.subr.mxu0 0.0
        %2097 = vmatpush1.msra.mxu0 0.0
        %2098 = vmatprep.subr.mxu0 0.0
        %2099 = vmatpush1.msra.mxu0 0.0
        %2100 = vmatprep.subr.mxu0 0.0
        %2101 = vmatpush1.msra.mxu0 0.0
        %2102 = vmatprep.subr.mxu0 0.0
        %2103 = vmatpush1.msra.mxu0 0.0
        %2104 = vmatprep.subr.mxu0 0.0
        %2105 = vmatpush1.msra.mxu0 0.0
        %2106 = vmatprep.subr.mxu0 0.0
        %2107 = vmatpush1.msra.mxu0 0.0
        %2108 = vmatprep.subr.mxu0 0.0
        %2109 = vmatpush1.msra.mxu0 0.0
        %2110 = vmatprep.subr.mxu0 0.0
        %2111 = vmatpush1.msra.mxu0 0.0
        %2112 = vmatprep.subr.mxu0 0.0
        %2113 = vmatpush1.msra.mxu0 0.0
        %2114 = vmatprep.subr.mxu0 0.0
        %2115 = vmatpush1.msra.mxu0 0.0
        %2116 = vmatprep.subr.mxu0 0.0
        %2117 = vmatpush1.msra.mxu0 0.0
        %2118 = vmatprep.subr.mxu0 0.0
        %2119 = vmatpush1.msra.mxu0 0.0
        %2120 = vmatprep.subr.mxu0 0.0
        %2121 = vmatpush1.msra.mxu0 0.0
        %2122 = vmatprep.subr.mxu0 0.0
        %2123 = vmatpush1.msra.mxu0 0.0
        %2124 = vmatprep.subr.mxu0 0.0
        %2125 = vmatpush1.msra.mxu0 0.0
        %2126 = vmatprep.subr.mxu0 0.0
        %2127 = vmatpush1.msra.mxu0 0.0
        %2128 = vmatprep.subr.mxu0 0.0
        %2129 = vmatpush1.msra.mxu0 0.0
        %2130 = vmatprep.subr.mxu0 0.0
        %2131 = vmatpush1.msra.mxu0 0.0
        %2132 = vmatprep.subr.mxu0 0.0
        %2133 = vmatpush1.msra.mxu0 0.0
        %2134 = vmatprep.subr.mxu0 0.0
        %2135 = vmatpush1.msra.mxu0 0.0
        %2136 = vmatprep.subr.mxu0 0.0
        %2137 = vmatpush1.msra.mxu0 0.0
        %2138 = vmatprep.subr.mxu0 0.0
        %2139 = vmatpush1.msra.mxu0 0.0
        %2140 = vmatprep.subr.mxu0 0.0
        %2141 = vmatpush1.msra.mxu0 0.0
        %2142 = vmatprep.subr.mxu0 0.0
        %2143 = vmatpush1.msra.mxu0 0.0
        %2144 = vmatprep.subr.mxu0 0.0
        %2145 = vmatpush1.msra.mxu0 0.0
        %2146 = vmatprep.mubr.f32.mxu0 0.0
        %2147 = vmatmul.mubr.f32.gmra.mrb[0].mxu0 %v1224
        %v2148 = vpop.f32.mrb[0].mxu0
        %v2149 = vadd.f32 %v2080, %v2148
        %v2150 = vpop.f32.mrb[0].mxu0
        %2151 = vmatprep.mubr.f32.mxu0 0.0
        %2152 = vmatmul.mubr.f32.gmra.mrb[0].mxu0 %v1227
        %v2153 = vpop.f32.mrb[0].mxu0
        %v2154 = vadd.f32 %v2080, %v2153
        %v2155 = vpop.f32.mrb[0].mxu0
        %2156 = vmatprep.mubr.f32.mxu0 0.0
        %2157 = vmatmul.mubr.f32.gmra.mrb[0].mxu0 %v1230
        %v2158 = vpop.f32.mrb[0].mxu0
        %v2159 = vadd.f32 %v2080, %v2158
        %v2160 = vpop.f32.mrb[0].mxu0
        %2161 = vmatprep.mubr.f32.mxu0 0.0
        %2162 = vmatmul.mubr.f32.gmra.mrb[0].mxu0 %v1233
        %v2163 = vpop.f32.mrb[0].mxu0
        %v2164 = vadd.f32 %v2080, %v2163
        %v2165 = vpop.f32.mrb[0].mxu0
        %2166 = vmatprep.mubr.f32.mxu0 0.0
        %2167 = vmatmul.mubr.f32.gmra.mrb[0].mxu0 %v1236
        %v2168 = vpop.f32.mrb[0].mxu0
        %v2169 = vadd.f32 %v2080, %v2168
        %v2170 = vpop.f32.mrb[0].mxu0
        %2171 = vmatprep.mubr.f32.mxu0 0.0
        %2172 = vmatmul.mubr.f32.gmra.mrb[0].mxu0 %v1239
        %v2173 = vpop.f32.mrb[0].mxu0
        %v2174 = vadd.f32 %v2080, %v2173
        %v2175 = vpop.f32.mrb[0].mxu0
        %2176 = vmatprep.mubr.f32.mxu0 0.0
        %2177 = vmatmul.mubr.f32.gmra.mrb[0].mxu0 %v1242
        %v2178 = vpop.f32.mrb[0].mxu0
        %v2179 = vadd.f32 %v2080, %v2178
        %v2180 = vpop.f32.mrb[0].mxu0
        %2181 = vmatprep.mubr.f32.mxu0 0.0
        %2182 = vmatmul.mubr.f32.gmra.mrb[0].mxu0 %v1245
        %v2183 = vpop.f32.mrb[0].mxu0
        %v2184 = vadd.f32 %v2080, %v2183
        %v2185 = vpop.f32.mrb[0].mxu0
        %2186 = vdwg.mxu0
        %s2187 = scalar_lea.vmem %s5, 32
        %v2188 = vld [vmem:[%s2187] sm:$0xff]
        %v2189 = vld [vmem:[%s2187 + $0x8] sm:$0xff]
        %s2190 = scalar_lea.vmem %s6, 2
        %v2191 = vld [vmem:[%s2190] sm:$0x1]
        %v2193 = vlaneseq
        %v2194 = vshrl.u32 %v2193, 7
        %v2195 = vsub.s32 0, %v2194
        %v2196 = vrot.slane %v2191, %v2195
        %2198 = vmatprep.subr.mxu0 0.0
        %2199 = vmatpush1.msra.mxu0 %v2188
        %2200 = vmatprep.subr.mxu0 0.0
        %2201 = vmatpush1.msra.mxu0 %v2189
        %2202 = vmatprep.subr.mxu0 0.0
        %2203 = vmatpush1.msra.mxu0 0.0
        %2204 = vmatprep.subr.mxu0 0.0
        %2205 = vmatpush1.msra.mxu0 0.0
        %2206 = vmatprep.subr.mxu0 0.0
        %2207 = vmatpush1.msra.mxu0 0.0
        %2208 = vmatprep.subr.mxu0 0.0
        %2209 = vmatpush1.msra.mxu0 0.0
        %2210 = vmatprep.subr.mxu0 0.0
        %2211 = vmatpush1.msra.mxu0 0.0
        %2212 = vmatprep.subr.mxu0 0.0
        %2213 = vmatpush1.msra.mxu0 0.0
        %2214 = vmatprep.subr.mxu0 0.0
        %2215 = vmatpush1.msra.mxu0 0.0
        %2216 = vmatprep.subr.mxu0 0.0
        %2217 = vmatpush1.msra.mxu0 0.0
        %2218 = vmatprep.subr.mxu0 0.0
        %2219 = vmatpush1.msra.mxu0 0.0
        %2220 = vmatprep.subr.mxu0 0.0
        %2221 = vmatpush1.msra.mxu0 0.0
        %2222 = vmatprep.subr.mxu0 0.0
        %2223 = vmatpush1.msra.mxu0 0.0
        %2224 = vmatprep.subr.mxu0 0.0
        %2225 = vmatpush1.msra.mxu0 0.0
        %2226 = vmatprep.subr.mxu0 0.0
        %2227 = vmatpush1.msra.mxu0 0.0
        %2228 = vmatprep.subr.mxu0 0.0
        %2229 = vmatpush1.msra.mxu0 0.0
        %2230 = vmatprep.subr.mxu0 0.0
        %2231 = vmatpush1.msra.mxu0 0.0
        %2232 = vmatprep.subr.mxu0 0.0
        %2233 = vmatpush1.msra.mxu0 0.0
        %2234 = vmatprep.subr.mxu0 0.0
        %2235 = vmatpush1.msra.mxu0 0.0
        %2236 = vmatprep.subr.mxu0 0.0
        %2237 = vmatpush1.msra.mxu0 0.0
        %2238 = vmatprep.subr.mxu0 0.0
        %2239 = vmatpush1.msra.mxu0 0.0
        %2240 = vmatprep.subr.mxu0 0.0
        %2241 = vmatpush1.msra.mxu0 0.0
        %2242 = vmatprep.subr.mxu0 0.0
        %2243 = vmatpush1.msra.mxu0 0.0
        %2244 = vmatprep.subr.mxu0 0.0
        %2245 = vmatpush1.msra.mxu0 0.0
        %2246 = vmatprep.subr.mxu0 0.0
        %2247 = vmatpush1.msra.mxu0 0.0
        %2248 = vmatprep.subr.mxu0 0.0
        %2249 = vmatpush1.msra.mxu0 0.0
        %2250 = vmatprep.subr.mxu0 0.0
        %2251 = vmatpush1.msra.mxu0 0.0
        %2252 = vmatprep.subr.mxu0 0.0
        %2253 = vmatpush1.msra.mxu0 0.0
        %2254 = vmatprep.subr.mxu0 0.0
        %2255 = vmatpush1.msra.mxu0 0.0
        %2256 = vmatprep.subr.mxu0 0.0
        %2257 = vmatpush1.msra.mxu0 0.0
        %2258 = vmatprep.subr.mxu0 0.0
        %2259 = vmatpush1.msra.mxu0 0.0
        %2260 = vmatprep.subr.mxu0 0.0
        %2261 = vmatpush1.msra.mxu0 0.0
        %2262 = vmatprep.mubr.f32.mxu0 0.0
        %2263 = vmatmul.mubr.f32.gmra.mrb[0].mxu0 %v1049
        %v2264 = vpop.f32.mrb[0].mxu0
        %v2265 = vadd.f32 %v2196, %v2264
        %v2266 = vpop.f32.mrb[0].mxu0
        %2267 = vmatprep.mubr.f32.mxu0 0.0
        %2268 = vmatmul.mubr.f32.gmra.mrb[0].mxu0 %v1052
        %v2269 = vpop.f32.mrb[0].mxu0
        %v2270 = vadd.f32 %v2196, %v2269
        %v2271 = vpop.f32.mrb[0].mxu0
        %2272 = vmatprep.mubr.f32.mxu0 0.0
        %2273 = vmatmul.mubr.f32.gmra.mrb[0].mxu0 %v1055
        %v2274 = vpop.f32.mrb[0].mxu0
        %v2275 = vadd.f32 %v2196, %v2274
        %v2276 = vpop.f32.mrb[0].mxu0
        %2277 = vmatprep.mubr.f32.mxu0 0.0
        %2278 = vmatmul.mubr.f32.gmra.mrb[0].mxu0 %v1058
        %v2279 = vpop.f32.mrb[0].mxu0
        %v2280 = vadd.f32 %v2196, %v2279
        %v2281 = vpop.f32.mrb[0].mxu0
        %2282 = vmatprep.mubr.f32.mxu0 0.0
        %2283 = vmatmul.mubr.f32.gmra.mrb[0].mxu0 %v1061
        %v2284 = vpop.f32.mrb[0].mxu0
        %v2285 = vadd.f32 %v2196, %v2284
        %v2286 = vpop.f32.mrb[0].mxu0
        %2287 = vmatprep.mubr.f32.mxu0 0.0
        %2288 = vmatmul.mubr.f32.gmra.mrb[0].mxu0 %v1064
        %v2289 = vpop.f32.mrb[0].mxu0
        %v2290 = vadd.f32 %v2196, %v2289
        %v2291 = vpop.f32.mrb[0].mxu0
        %2292 = vmatprep.mubr.f32.mxu0 0.0
        %2293 = vmatmul.mubr.f32.gmra.mrb[0].mxu0 %v1067
        %v2294 = vpop.f32.mrb[0].mxu0
        %v2295 = vadd.f32 %v2196, %v2294
        %v2296 = vpop.f32.mrb[0].mxu0
        %2297 = vmatprep.mubr.f32.mxu0 0.0
        %2298 = vmatmul.mubr.f32.gmra.mrb[0].mxu0 %v1070
        %v2299 = vpop.f32.mrb[0].mxu0
        %v2300 = vadd.f32 %v2196, %v2299
        %v2301 = vpop.f32.mrb[0].mxu0
        %2302 = vmatprep.mubr.f32.mxu0 0.0
        %2303 = vmatmul.mubr.f32.gmra.mrb[0].mxu0 %v1073
        %v2304 = vpop.f32.mrb[0].mxu0
        %v2305 = vadd.f32 %v2196, %v2304
        %v2306 = vpop.f32.mrb[0].mxu0
        %2307 = vmatprep.mubr.f32.mxu0 0.0
        %2308 = vmatmul.mubr.f32.gmra.mrb[0].mxu0 %v1076
        %v2309 = vpop.f32.mrb[0].mxu0
        %v2310 = vadd.f32 %v2196, %v2309
        %v2311 = vpop.f32.mrb[0].mxu0
        %2312 = vmatprep.mubr.f32.mxu0 0.0
        %2313 = vmatmul.mubr.f32.gmra.mrb[0].mxu0 %v1079
        %v2314 = vpop.f32.mrb[0].mxu0
        %v2315 = vadd.f32 %v2196, %v2314
        %v2316 = vpop.f32.mrb[0].mxu0
        %2317 = vdwg.mxu0
        %v2319 = vsel %vm1481, %v2149, 0
        %v2322 = vsel %vm1481, %v2154, 0
        %v2325 = vsel %vm1481, %v2159, 0
        %v2328 = vsel %vm1481, %v2164, 0
        %v2331 = vsel %vm1481, %v2169, 0
        %v2334 = vsel %vm1481, %v2174, 0
        %v2337 = vsel %vm1481, %v2179, 0
        %v2340 = vsel %vm1481, %v2184, 0
        %v2343 = vsel %vm1481, %v2265, 0
        %v2346 = vsel %vm1481, %v2270, 0
        %v2349 = vsel %vm1481, %v2275, 0
        %v2352 = vsel %vm1481, %v2280, 0
        %v2355 = vsel %vm1481, %v2285, 0
        %v2358 = vsel %vm1481, %v2290, 0
        %v2361 = vsel %vm1481, %v2295, 0
        %v2364 = vsel %vm1481, %v2300, 0
        %v2367 = vsel %vm1481, %v2305, 0
        %v2370 = vsel %vm1481, %v2310, 0
        %v2373 = vsel %vm1481, %v2315, 0
        %2375 = vmatprep.subr.mxu0 0.0
        %2376 = vmatpush1.xpose.msra.mxu0 %v2343
        %2377 = vmatprep.subr.mxu0 0.0
        %2378 = vmatpush1.xpose.msra.mxu0 %v2346
        %2379 = vmatprep.subr.mxu0 0.0
        %2380 = vmatpush1.xpose.msra.mxu0 %v2349
        %2381 = vmatprep.subr.mxu0 0.0
        %2382 = vmatpush1.xpose.msra.mxu0 %v2352
        %2383 = vmatprep.subr.mxu0 0.0
        %2384 = vmatpush1.xpose.msra.mxu0 %v2355
        %2385 = vmatprep.subr.mxu0 0.0
        %2386 = vmatpush1.xpose.msra.mxu0 %v2358
        %2387 = vmatprep.subr.mxu0 0.0
        %2388 = vmatpush1.xpose.msra.mxu0 %v2361
        %2389 = vmatprep.subr.mxu0 0.0
        %2390 = vmatpush1.xpose.msra.mxu0 %v2364
        %2391 = vmatprep.subr.mxu0 0.0
        %2392 = vmatpush1.xpose.msra.mxu0 %v2367
        %2393 = vmatprep.subr.mxu0 0.0
        %2394 = vmatpush1.xpose.msra.mxu0 %v2370
        %2395 = vmatprep.subr.mxu0 0.0
        %2396 = vmatpush1.xpose.msra.mxu0 %v2373
        %2397 = vmatprep.subr.mxu0 0.0
        %2398 = vmatpush1.xpose.msra.mxu0 0.0
        %2399 = vmatprep.subr.mxu0 0.0
        %2400 = vmatpush1.xpose.msra.mxu0 0.0
        %2401 = vmatprep.subr.mxu0 0.0
        %2402 = vmatpush1.xpose.msra.mxu0 0.0
        %2403 = vmatprep.subr.mxu0 0.0
        %2404 = vmatpush1.xpose.msra.mxu0 0.0
        %2405 = vmatprep.subr.mxu0 0.0
        %2406 = vmatpush1.xpose.msra.mxu0 0.0
        %2407 = vmatprep.subr.mxu0 0.0
        %2408 = vmatpush1.xpose.msra.mxu0 0.0
        %2409 = vmatprep.subr.mxu0 0.0
        %2410 = vmatpush1.xpose.msra.mxu0 0.0
        %2411 = vmatprep.subr.mxu0 0.0
        %2412 = vmatpush1.xpose.msra.mxu0 0.0
        %2413 = vmatprep.subr.mxu0 0.0
        %2414 = vmatpush1.xpose.msra.mxu0 0.0
        %2415 = vmatprep.subr.mxu0 0.0
        %2416 = vmatpush1.xpose.msra.mxu0 0.0
        %2417 = vmatprep.subr.mxu0 0.0
        %2418 = vmatpush1.xpose.msra.mxu0 0.0
        %2419 = vmatprep.subr.mxu0 0.0
        %2420 = vmatpush1.xpose.msra.mxu0 0.0
        %2421 = vmatprep.subr.mxu0 0.0
        %2422 = vmatpush1.xpose.msra.mxu0 0.0
        %2423 = vmatprep.subr.mxu0 0.0
        %2424 = vmatpush1.xpose.msra.mxu0 0.0
        %2425 = vmatprep.subr.mxu0 0.0
        %2426 = vmatpush1.xpose.msra.mxu0 0.0
        %2427 = vmatprep.subr.mxu0 0.0
        %2428 = vmatpush1.xpose.msra.mxu0 0.0
        %2429 = vmatprep.subr.mxu0 0.0
        %2430 = vmatpush1.xpose.msra.mxu0 0.0
        %2431 = vmatprep.subr.mxu0 0.0
        %2432 = vmatpush1.xpose.msra.mxu0 0.0
        %2433 = vmatprep.subr.mxu0 0.0
        %2434 = vmatpush1.xpose.msra.mxu0 0.0
        %2435 = vmatprep.subr.mxu0 0.0
        %2436 = vmatpush1.xpose.msra.mxu0 0.0
        %2437 = vmatprep.subr.mxu0 0.0
        %2438 = vmatpush1.xpose.msra.mxu0 0.0
        %2439 = vmatprep.mubr.f32.mxu0 0.0
        %2440 = vmatmul.mubr.f32.gmra.mrb[0].mxu0 %v2319
        %v2441 = vpop.f32.mrb[0].mxu0
        %v2442 = vadd.f32 0.0, %v2441
        %v2443 = vpop.f32.mrb[0].mxu0
        %2444 = vmatprep.mubr.f32.mxu0 0.0
        %2445 = vmatmul.mubr.f32.gmra.mrb[0].mxu0 %v2322
        %v2446 = vpop.f32.mrb[0].mxu0
        %v2447 = vadd.f32 0.0, %v2446
        %v2448 = vpop.f32.mrb[0].mxu0
        %2449 = vmatprep.mubr.f32.mxu0 0.0
        %2450 = vmatmul.mubr.f32.gmra.mrb[0].mxu0 %v2325
        %v2451 = vpop.f32.mrb[0].mxu0
        %v2452 = vadd.f32 0.0, %v2451
        %v2453 = vpop.f32.mrb[0].mxu0
        %2454 = vmatprep.mubr.f32.mxu0 0.0
        %2455 = vmatmul.mubr.f32.gmra.mrb[0].mxu0 %v2328
        %v2456 = vpop.f32.mrb[0].mxu0
        %v2457 = vadd.f32 0.0, %v2456
        %v2458 = vpop.f32.mrb[0].mxu0
        %2459 = vmatprep.mubr.f32.mxu0 0.0
        %2460 = vmatmul.mubr.f32.gmra.mrb[0].mxu0 %v2331
        %v2461 = vpop.f32.mrb[0].mxu0
        %v2462 = vadd.f32 0.0, %v2461
        %v2463 = vpop.f32.mrb[0].mxu0
        %2464 = vmatprep.mubr.f32.mxu0 0.0
        %2465 = vmatmul.mubr.f32.gmra.mrb[0].mxu0 %v2334
        %v2466 = vpop.f32.mrb[0].mxu0
        %v2467 = vadd.f32 0.0, %v2466
        %v2468 = vpop.f32.mrb[0].mxu0
        %2469 = vmatprep.mubr.f32.mxu0 0.0
        %2470 = vmatmul.mubr.f32.gmra.mrb[0].mxu0 %v2337
        %v2471 = vpop.f32.mrb[0].mxu0
        %v2472 = vadd.f32 0.0, %v2471
        %v2473 = vpop.f32.mrb[0].mxu0
        %2474 = vmatprep.mubr.f32.mxu0 0.0
        %2475 = vmatmul.mubr.f32.gmra.mrb[0].mxu0 %v2340
        %v2476 = vpop.f32.mrb[0].mxu0
        %v2477 = vadd.f32 0.0, %v2476
        %v2478 = vpop.f32.mrb[0].mxu0
        %2479 = vdwg.mxu0
        %s2480 = scalar_lea.vmem %s353, 128 [#allocation4]
        %2481 = vst.msk [vmem:[%s2480] sm:$0xff] %vm1644, %v2442
        %2482 = vst.msk [vmem:[%s2480 + $0x8] sm:$0xff] %vm1644, %v2447
        %2483 = vst.msk [vmem:[%s2480 + $0x10] sm:$0xff] %vm1644, %v2452
        %2484 = vst.msk [vmem:[%s2480 + $0x18] sm:$0xff] %vm1644, %v2457
        %2485 = vst.msk [vmem:[%s2480 + $0x20] sm:$0xff] %vm1644, %v2462
        %2486 = vst.msk [vmem:[%s2480 + $0x28] sm:$0xff] %vm1644, %v2467
        %2487 = vst.msk [vmem:[%s2480 + $0x30] sm:$0xff] %vm1644, %v2472
        %2488 = vst.msk [vmem:[%s2480 + $0x38] sm:$0xff] %vm1644, %v2477
        %s2489 = scalar_lea.vmem %s3, 48
        %v2490 = vld [vmem:[%s2489] sm:$0xff]
        %v2491 = vld [vmem:[%s2489 + $0x8] sm:$0xff]
        %s2492 = scalar_lea.vmem %s4, 3
        %v2493 = vld [vmem:[%s2492] sm:$0x1]
        %v2495 = vlaneseq
        %v2496 = vshrl.u32 %v2495, 7
        %v2497 = vsub.s32 0, %v2496
        %v2498 = vrot.slane %v2493, %v2497
        %2500 = vmatprep.subr.mxu0 0.0
        %2501 = vmatpush1.msra.mxu0 %v2490
        %2502 = vmatprep.subr.mxu0 0.0
        %2503 = vmatpush1.msra.mxu0 %v2491
        %2504 = vmatprep.subr.mxu0 0.0
        %2505 = vmatpush1.msra.mxu0 0.0
        %2506 = vmatprep.subr.mxu0 0.0
        %2507 = vmatpush1.msra.mxu0 0.0
        %2508 = vmatprep.subr.mxu0 0.0
        %2509 = vmatpush1.msra.mxu0 0.0
        %2510 = vmatprep.subr.mxu0 0.0
        %2511 = vmatpush1.msra.mxu0 0.0
        %2512 = vmatprep.subr.mxu0 0.0
        %2513 = vmatpush1.msra.mxu0 0.0
        %2514 = vmatprep.subr.mxu0 0.0
        %2515 = vmatpush1.msra.mxu0 0.0
        %2516 = vmatprep.subr.mxu0 0.0
        %2517 = vmatpush1.msra.mxu0 0.0
        %2518 = vmatprep.subr.mxu0 0.0
        %2519 = vmatpush1.msra.mxu0 0.0
        %2520 = vmatprep.subr.mxu0 0.0
        %2521 = vmatpush1.msra.mxu0 0.0
        %2522 = vmatprep.subr.mxu0 0.0
        %2523 = vmatpush1.msra.mxu0 0.0
        %2524 = vmatprep.subr.mxu0 0.0
        %2525 = vmatpush1.msra.mxu0 0.0
        %2526 = vmatprep.subr.mxu0 0.0
        %2527 = vmatpush1.msra.mxu0 0.0
        %2528 = vmatprep.subr.mxu0 0.0
        %2529 = vmatpush1.msra.mxu0 0.0
        %2530 = vmatprep.subr.mxu0 0.0
        %2531 = vmatpush1.msra.mxu0 0.0
        %2532 = vmatprep.subr.mxu0 0.0
        %2533 = vmatpush1.msra.mxu0 0.0
        %2534 = vmatprep.subr.mxu0 0.0
        %2535 = vmatpush1.msra.mxu0 0.0
        %2536 = vmatprep.subr.mxu0 0.0
        %2537 = vmatpush1.msra.mxu0 0.0
        %2538 = vmatprep.subr.mxu0 0.0
        %2539 = vmatpush1.msra.mxu0 0.0
        %2540 = vmatprep.subr.mxu0 0.0
        %2541 = vmatpush1.msra.mxu0 0.0
        %2542 = vmatprep.subr.mxu0 0.0
        %2543 = vmatpush1.msra.mxu0 0.0
        %2544 = vmatprep.subr.mxu0 0.0
        %2545 = vmatpush1.msra.mxu0 0.0
        %2546 = vmatprep.subr.mxu0 0.0
        %2547 = vmatpush1.msra.mxu0 0.0
        %2548 = vmatprep.subr.mxu0 0.0
        %2549 = vmatpush1.msra.mxu0 0.0
        %2550 = vmatprep.subr.mxu0 0.0
        %2551 = vmatpush1.msra.mxu0 0.0
        %2552 = vmatprep.subr.mxu0 0.0
        %2553 = vmatpush1.msra.mxu0 0.0
        %2554 = vmatprep.subr.mxu0 0.0
        %2555 = vmatpush1.msra.mxu0 0.0
        %2556 = vmatprep.subr.mxu0 0.0
        %2557 = vmatpush1.msra.mxu0 0.0
        %2558 = vmatprep.subr.mxu0 0.0
        %2559 = vmatpush1.msra.mxu0 0.0
        %2560 = vmatprep.subr.mxu0 0.0
        %2561 = vmatpush1.msra.mxu0 0.0
        %2562 = vmatprep.subr.mxu0 0.0
        %2563 = vmatpush1.msra.mxu0 0.0
        %2564 = vmatprep.mubr.f32.mxu0 0.0
        %2565 = vmatmul.mubr.f32.gmra.mrb[0].mxu0 %v1224
        %v2566 = vpop.f32.mrb[0].mxu0
        %v2567 = vadd.f32 %v2498, %v2566
        %v2568 = vpop.f32.mrb[0].mxu0
        %2569 = vmatprep.mubr.f32.mxu0 0.0
        %2570 = vmatmul.mubr.f32.gmra.mrb[0].mxu0 %v1227
        %v2571 = vpop.f32.mrb[0].mxu0
        %v2572 = vadd.f32 %v2498, %v2571
        %v2573 = vpop.f32.mrb[0].mxu0
        %2574 = vmatprep.mubr.f32.mxu0 0.0
        %2575 = vmatmul.mubr.f32.gmra.mrb[0].mxu0 %v1230
        %v2576 = vpop.f32.mrb[0].mxu0
        %v2577 = vadd.f32 %v2498, %v2576
        %v2578 = vpop.f32.mrb[0].mxu0
        %2579 = vmatprep.mubr.f32.mxu0 0.0
        %2580 = vmatmul.mubr.f32.gmra.mrb[0].mxu0 %v1233
        %v2581 = vpop.f32.mrb[0].mxu0
        %v2582 = vadd.f32 %v2498, %v2581
        %v2583 = vpop.f32.mrb[0].mxu0
        %2584 = vmatprep.mubr.f32.mxu0 0.0
        %2585 = vmatmul.mubr.f32.gmra.mrb[0].mxu0 %v1236
        %v2586 = vpop.f32.mrb[0].mxu0
        %v2587 = vadd.f32 %v2498, %v2586
        %v2588 = vpop.f32.mrb[0].mxu0
        %2589 = vmatprep.mubr.f32.mxu0 0.0
        %2590 = vmatmul.mubr.f32.gmra.mrb[0].mxu0 %v1239
        %v2591 = vpop.f32.mrb[0].mxu0
        %v2592 = vadd.f32 %v2498, %v2591
        %v2593 = vpop.f32.mrb[0].mxu0
        %2594 = vmatprep.mubr.f32.mxu0 0.0
        %2595 = vmatmul.mubr.f32.gmra.mrb[0].mxu0 %v1242
        %v2596 = vpop.f32.mrb[0].mxu0
        %v2597 = vadd.f32 %v2498, %v2596
        %v2598 = vpop.f32.mrb[0].mxu0
        %2599 = vmatprep.mubr.f32.mxu0 0.0
        %2600 = vmatmul.mubr.f32.gmra.mrb[0].mxu0 %v1245
        %v2601 = vpop.f32.mrb[0].mxu0
        %v2602 = vadd.f32 %v2498, %v2601
        %v2603 = vpop.f32.mrb[0].mxu0
        %2604 = vdwg.mxu0
        %s2605 = scalar_lea.vmem %s5, 48
        %v2606 = vld [vmem:[%s2605] sm:$0xff]
        %v2607 = vld [vmem:[%s2605 + $0x8] sm:$0xff]
        %s2608 = scalar_lea.vmem %s6, 3
        %v2609 = vld [vmem:[%s2608] sm:$0x1]
        %v2611 = vlaneseq
        %v2612 = vshrl.u32 %v2611, 7
        %v2613 = vsub.s32 0, %v2612
        %v2614 = vrot.slane %v2609, %v2613
        %2616 = vmatprep.subr.mxu0 0.0
        %2617 = vmatpush1.msra.mxu0 %v2606
        %2618 = vmatprep.subr.mxu0 0.0
        %2619 = vmatpush1.msra.mxu0 %v2607
        %2620 = vmatprep.subr.mxu0 0.0
        %2621 = vmatpush1.msra.mxu0 0.0
        %2622 = vmatprep.subr.mxu0 0.0
        %2623 = vmatpush1.msra.mxu0 0.0
        %2624 = vmatprep.subr.mxu0 0.0
        %2625 = vmatpush1.msra.mxu0 0.0
        %2626 = vmatprep.subr.mxu0 0.0
        %2627 = vmatpush1.msra.mxu0 0.0
        %2628 = vmatprep.subr.mxu0 0.0
        %2629 = vmatpush1.msra.mxu0 0.0
        %2630 = vmatprep.subr.mxu0 0.0
        %2631 = vmatpush1.msra.mxu0 0.0
        %2632 = vmatprep.subr.mxu0 0.0
        %2633 = vmatpush1.msra.mxu0 0.0
        %2634 = vmatprep.subr.mxu0 0.0
        %2635 = vmatpush1.msra.mxu0 0.0
        %2636 = vmatprep.subr.mxu0 0.0
        %2637 = vmatpush1.msra.mxu0 0.0
        %2638 = vmatprep.subr.mxu0 0.0
        %2639 = vmatpush1.msra.mxu0 0.0
        %2640 = vmatprep.subr.mxu0 0.0
        %2641 = vmatpush1.msra.mxu0 0.0
        %2642 = vmatprep.subr.mxu0 0.0
        %2643 = vmatpush1.msra.mxu0 0.0
        %2644 = vmatprep.subr.mxu0 0.0
        %2645 = vmatpush1.msra.mxu0 0.0
        %2646 = vmatprep.subr.mxu0 0.0
        %2647 = vmatpush1.msra.mxu0 0.0
        %2648 = vmatprep.subr.mxu0 0.0
        %2649 = vmatpush1.msra.mxu0 0.0
        %2650 = vmatprep.subr.mxu0 0.0
        %2651 = vmatpush1.msra.mxu0 0.0
        %2652 = vmatprep.subr.mxu0 0.0
        %2653 = vmatpush1.msra.mxu0 0.0
        %2654 = vmatprep.subr.mxu0 0.0
        %2655 = vmatpush1.msra.mxu0 0.0
        %2656 = vmatprep.subr.mxu0 0.0
        %2657 = vmatpush1.msra.mxu0 0.0
        %2658 = vmatprep.subr.mxu0 0.0
        %2659 = vmatpush1.msra.mxu0 0.0
        %2660 = vmatprep.subr.mxu0 0.0
        %2661 = vmatpush1.msra.mxu0 0.0
        %2662 = vmatprep.subr.mxu0 0.0
        %2663 = vmatpush1.msra.mxu0 0.0
        %2664 = vmatprep.subr.mxu0 0.0
        %2665 = vmatpush1.msra.mxu0 0.0
        %2666 = vmatprep.subr.mxu0 0.0
        %2667 = vmatpush1.msra.mxu0 0.0
        %2668 = vmatprep.subr.mxu0 0.0
        %2669 = vmatpush1.msra.mxu0 0.0
        %2670 = vmatprep.subr.mxu0 0.0
        %2671 = vmatpush1.msra.mxu0 0.0
        %2672 = vmatprep.subr.mxu0 0.0
        %2673 = vmatpush1.msra.mxu0 0.0
        %2674 = vmatprep.subr.mxu0 0.0
        %2675 = vmatpush1.msra.mxu0 0.0
        %2676 = vmatprep.subr.mxu0 0.0
        %2677 = vmatpush1.msra.mxu0 0.0
        %2678 = vmatprep.subr.mxu0 0.0
        %2679 = vmatpush1.msra.mxu0 0.0
        %2680 = vmatprep.mubr.f32.mxu0 0.0
        %2681 = vmatmul.mubr.f32.gmra.mrb[0].mxu0 %v1049
        %v2682 = vpop.f32.mrb[0].mxu0
        %v2683 = vadd.f32 %v2614, %v2682
        %v2684 = vpop.f32.mrb[0].mxu0
        %2685 = vmatprep.mubr.f32.mxu0 0.0
        %2686 = vmatmul.mubr.f32.gmra.mrb[0].mxu0 %v1052
        %v2687 = vpop.f32.mrb[0].mxu0
        %v2688 = vadd.f32 %v2614, %v2687
        %v2689 = vpop.f32.mrb[0].mxu0
        %2690 = vmatprep.mubr.f32.mxu0 0.0
        %2691 = vmatmul.mubr.f32.gmra.mrb[0].mxu0 %v1055
        %v2692 = vpop.f32.mrb[0].mxu0
        %v2693 = vadd.f32 %v2614, %v2692
        %v2694 = vpop.f32.mrb[0].mxu0
        %2695 = vmatprep.mubr.f32.mxu0 0.0
        %2696 = vmatmul.mubr.f32.gmra.mrb[0].mxu0 %v1058
        %v2697 = vpop.f32.mrb[0].mxu0
        %v2698 = vadd.f32 %v2614, %v2697
        %v2699 = vpop.f32.mrb[0].mxu0
        %2700 = vmatprep.mubr.f32.mxu0 0.0
        %2701 = vmatmul.mubr.f32.gmra.mrb[0].mxu0 %v1061
        %v2702 = vpop.f32.mrb[0].mxu0
        %v2703 = vadd.f32 %v2614, %v2702
        %v2704 = vpop.f32.mrb[0].mxu0
        %2705 = vmatprep.mubr.f32.mxu0 0.0
        %2706 = vmatmul.mubr.f32.gmra.mrb[0].mxu0 %v1064
        %v2707 = vpop.f32.mrb[0].mxu0
        %v2708 = vadd.f32 %v2614, %v2707
        %v2709 = vpop.f32.mrb[0].mxu0
        %2710 = vmatprep.mubr.f32.mxu0 0.0
        %2711 = vmatmul.mubr.f32.gmra.mrb[0].mxu0 %v1067
        %v2712 = vpop.f32.mrb[0].mxu0
        %v2713 = vadd.f32 %v2614, %v2712
        %v2714 = vpop.f32.mrb[0].mxu0
        %2715 = vmatprep.mubr.f32.mxu0 0.0
        %2716 = vmatmul.mubr.f32.gmra.mrb[0].mxu0 %v1070
        %v2717 = vpop.f32.mrb[0].mxu0
        %v2718 = vadd.f32 %v2614, %v2717
        %v2719 = vpop.f32.mrb[0].mxu0
        %2720 = vmatprep.mubr.f32.mxu0 0.0
        %2721 = vmatmul.mubr.f32.gmra.mrb[0].mxu0 %v1073
        %v2722 = vpop.f32.mrb[0].mxu0
        %v2723 = vadd.f32 %v2614, %v2722
        %v2724 = vpop.f32.mrb[0].mxu0
        %2725 = vmatprep.mubr.f32.mxu0 0.0
        %2726 = vmatmul.mubr.f32.gmra.mrb[0].mxu0 %v1076
        %v2727 = vpop.f32.mrb[0].mxu0
        %v2728 = vadd.f32 %v2614, %v2727
        %v2729 = vpop.f32.mrb[0].mxu0
        %2730 = vmatprep.mubr.f32.mxu0 0.0
        %2731 = vmatmul.mubr.f32.gmra.mrb[0].mxu0 %v1079
        %v2732 = vpop.f32.mrb[0].mxu0
        %v2733 = vadd.f32 %v2614, %v2732
        %v2734 = vpop.f32.mrb[0].mxu0
        %2735 = vdwg.mxu0
        %v2737 = vsel %vm1481, %v2567, 0
        %v2740 = vsel %vm1481, %v2572, 0
        %v2743 = vsel %vm1481, %v2577, 0
        %v2746 = vsel %vm1481, %v2582, 0
        %v2749 = vsel %vm1481, %v2587, 0
        %v2752 = vsel %vm1481, %v2592, 0
        %v2755 = vsel %vm1481, %v2597, 0
        %v2758 = vsel %vm1481, %v2602, 0
        %v2761 = vsel %vm1481, %v2683, 0
        %v2764 = vsel %vm1481, %v2688, 0
        %v2767 = vsel %vm1481, %v2693, 0
        %v2770 = vsel %vm1481, %v2698, 0
        %v2773 = vsel %vm1481, %v2703, 0
        %v2776 = vsel %vm1481, %v2708, 0
        %v2779 = vsel %vm1481, %v2713, 0
        %v2782 = vsel %vm1481, %v2718, 0
        %v2785 = vsel %vm1481, %v2723, 0
        %v2788 = vsel %vm1481, %v2728, 0
        %v2791 = vsel %vm1481, %v2733, 0
        %2793 = vmatprep.subr.mxu0 0.0
        %2794 = vmatpush1.xpose.msra.mxu0 %v2761
        %2795 = vmatprep.subr.mxu0 0.0
        %2796 = vmatpush1.xpose.msra.mxu0 %v2764
        %2797 = vmatprep.subr.mxu0 0.0
        %2798 = vmatpush1.xpose.msra.mxu0 %v2767
        %2799 = vmatprep.subr.mxu0 0.0
        %2800 = vmatpush1.xpose.msra.mxu0 %v2770
        %2801 = vmatprep.subr.mxu0 0.0
        %2802 = vmatpush1.xpose.msra.mxu0 %v2773
        %2803 = vmatprep.subr.mxu0 0.0
        %2804 = vmatpush1.xpose.msra.mxu0 %v2776
        %2805 = vmatprep.subr.mxu0 0.0
        %2806 = vmatpush1.xpose.msra.mxu0 %v2779
        %2807 = vmatprep.subr.mxu0 0.0
        %2808 = vmatpush1.xpose.msra.mxu0 %v2782
        %2809 = vmatprep.subr.mxu0 0.0
        %2810 = vmatpush1.xpose.msra.mxu0 %v2785
        %2811 = vmatprep.subr.mxu0 0.0
        %2812 = vmatpush1.xpose.msra.mxu0 %v2788
        %2813 = vmatprep.subr.mxu0 0.0
        %2814 = vmatpush1.xpose.msra.mxu0 %v2791
        %2815 = vmatprep.subr.mxu0 0.0
        %2816 = vmatpush1.xpose.msra.mxu0 0.0
        %2817 = vmatprep.subr.mxu0 0.0
        %2818 = vmatpush1.xpose.msra.mxu0 0.0
        %2819 = vmatprep.subr.mxu0 0.0
        %2820 = vmatpush1.xpose.msra.mxu0 0.0
        %2821 = vmatprep.subr.mxu0 0.0
        %2822 = vmatpush1.xpose.msra.mxu0 0.0
        %2823 = vmatprep.subr.mxu0 0.0
        %2824 = vmatpush1.xpose.msra.mxu0 0.0
        %2825 = vmatprep.subr.mxu0 0.0
        %2826 = vmatpush1.xpose.msra.mxu0 0.0
        %2827 = vmatprep.subr.mxu0 0.0
        %2828 = vmatpush1.xpose.msra.mxu0 0.0
        %2829 = vmatprep.subr.mxu0 0.0
        %2830 = vmatpush1.xpose.msra.mxu0 0.0
        %2831 = vmatprep.subr.mxu0 0.0
        %2832 = vmatpush1.xpose.msra.mxu0 0.0
        %2833 = vmatprep.subr.mxu0 0.0
        %2834 = vmatpush1.xpose.msra.mxu0 0.0
        %2835 = vmatprep.subr.mxu0 0.0
        %2836 = vmatpush1.xpose.msra.mxu0 0.0
        %2837 = vmatprep.subr.mxu0 0.0
        %2838 = vmatpush1.xpose.msra.mxu0 0.0
        %2839 = vmatprep.subr.mxu0 0.0
        %2840 = vmatpush1.xpose.msra.mxu0 0.0
        %2841 = vmatprep.subr.mxu0 0.0
        %2842 = vmatpush1.xpose.msra.mxu0 0.0
        %2843 = vmatprep.subr.mxu0 0.0
        %2844 = vmatpush1.xpose.msra.mxu0 0.0
        %2845 = vmatprep.subr.mxu0 0.0
        %2846 = vmatpush1.xpose.msra.mxu0 0.0
        %2847 = vmatprep.subr.mxu0 0.0
        %2848 = vmatpush1.xpose.msra.mxu0 0.0
        %2849 = vmatprep.subr.mxu0 0.0
        %2850 = vmatpush1.xpose.msra.mxu0 0.0
        %2851 = vmatprep.subr.mxu0 0.0
        %2852 = vmatpush1.xpose.msra.mxu0 0.0
        %2853 = vmatprep.subr.mxu0 0.0
        %2854 = vmatpush1.xpose.msra.mxu0 0.0
        %2855 = vmatprep.subr.mxu0 0.0
        %2856 = vmatpush1.xpose.msra.mxu0 0.0
        %2857 = vmatprep.mubr.f32.mxu0 0.0
        %2858 = vmatmul.mubr.f32.gmra.mrb[0].mxu0 %v2737
        %v2859 = vpop.f32.mrb[0].mxu0
        %v2860 = vadd.f32 0.0, %v2859
        %v2861 = vpop.f32.mrb[0].mxu0
        %2862 = vmatprep.mubr.f32.mxu0 0.0
        %2863 = vmatmul.mubr.f32.gmra.mrb[0].mxu0 %v2740
        %v2864 = vpop.f32.mrb[0].mxu0
        %v2865 = vadd.f32 0.0, %v2864
        %v2866 = vpop.f32.mrb[0].mxu0
        %2867 = vmatprep.mubr.f32.mxu0 0.0
        %2868 = vmatmul.mubr.f32.gmra.mrb[0].mxu0 %v2743
        %v2869 = vpop.f32.mrb[0].mxu0
        %v2870 = vadd.f32 0.0, %v2869
        %v2871 = vpop.f32.mrb[0].mxu0
        %2872 = vmatprep.mubr.f32.mxu0 0.0
        %2873 = vmatmul.mubr.f32.gmra.mrb[0].mxu0 %v2746
        %v2874 = vpop.f32.mrb[0].mxu0
        %v2875 = vadd.f32 0.0, %v2874
        %v2876 = vpop.f32.mrb[0].mxu0
        %2877 = vmatprep.mubr.f32.mxu0 0.0
        %2878 = vmatmul.mubr.f32.gmra.mrb[0].mxu0 %v2749
        %v2879 = vpop.f32.mrb[0].mxu0
        %v2880 = vadd.f32 0.0, %v2879
        %v2881 = vpop.f32.mrb[0].mxu0
        %2882 = vmatprep.mubr.f32.mxu0 0.0
        %2883 = vmatmul.mubr.f32.gmra.mrb[0].mxu0 %v2752
        %v2884 = vpop.f32.mrb[0].mxu0
        %v2885 = vadd.f32 0.0, %v2884
        %v2886 = vpop.f32.mrb[0].mxu0
        %2887 = vmatprep.mubr.f32.mxu0 0.0
        %2888 = vmatmul.mubr.f32.gmra.mrb[0].mxu0 %v2755
        %v2889 = vpop.f32.mrb[0].mxu0
        %v2890 = vadd.f32 0.0, %v2889
        %v2891 = vpop.f32.mrb[0].mxu0
        %2892 = vmatprep.mubr.f32.mxu0 0.0
        %2893 = vmatmul.mubr.f32.gmra.mrb[0].mxu0 %v2758
        %v2894 = vpop.f32.mrb[0].mxu0
        %v2895 = vadd.f32 0.0, %v2894
        %v2896 = vpop.f32.mrb[0].mxu0
        %2897 = vdwg.mxu0
        %s2898 = scalar_lea.vmem %s353, 192 [#allocation4]
        %2899 = vst.msk [vmem:[%s2898] sm:$0xff] %vm1644, %v2860
        %2900 = vst.msk [vmem:[%s2898 + $0x8] sm:$0xff] %vm1644, %v2865
        %2901 = vst.msk [vmem:[%s2898 + $0x10] sm:$0xff] %vm1644, %v2870
        %2902 = vst.msk [vmem:[%s2898 + $0x18] sm:$0xff] %vm1644, %v2875
        %2903 = vst.msk [vmem:[%s2898 + $0x20] sm:$0xff] %vm1644, %v2880
        %2904 = vst.msk [vmem:[%s2898 + $0x28] sm:$0xff] %vm1644, %v2885
        %2905 = vst.msk [vmem:[%s2898 + $0x30] sm:$0xff] %vm1644, %v2890
        %2906 = vst.msk [vmem:[%s2898 + $0x38] sm:$0xff] %vm1644, %v2895
        %s2907 = sand.u32 %s227, 1
        %s2908 = scalar_lea.sflag [#allocation5], %s2907
        %s2909 = sand.u32 %s227, 1
        %s2910 = smul.addr %s2909, 256
        %s2911 = scalar_lea.vmem [#allocation4], %s2910
        %p2912 = scmp.lt.s32.totalorder %s25, 1
        %s2913 = scalar_select %p2912, %s25, 1
        %s2914 = smul.addr %s2913, 11
        %s2915 = smul.addr %s2914, 8
        %s2916 = scalar_lea.vmem %s10, %s2915
        // Predicated region
        $region57: #{tpu_custom_call.1} parent=55 // pred_check
          %p2917 = pneg %p237
        $region58: #{tpu_custom_call.1} parent=55 // pred_check_branch
          %2919 = sbr.rel (%p2917) target = $region60
        $region59: #{tpu_custom_call.1} parent=55 // pred_region
          %s2921 = ssub.s32 4096, 4096
          %2922 = vsyncadd %s2908, %s2921
          %s2923 = smul.addr %s25, 32
          %s2924 = smul.addr %s2923, 128
          %s2925 = scalar_lea.hbm %s9, %s2924
          %s2926 = sshll.u32 %s2911, 4
          %s2927 = int_to_ptr.vmem [resolvable:$true] %s2926
          %2932 = dma.vmem_to_hbm [thread:$0]  %s2927, 4096, %s2925, %s2908, 128, 128, 8
        $region60: #{tpu_custom_call.1} parent=55 // pred_fallthru
          _
        // Predicated region
        $region61: #{tpu_custom_call.1} parent=55 // pred_check
          %p2933 = pneg %p263
        $region62: #{tpu_custom_call.1} parent=55 // pred_check_branch
          %2935 = sbr.rel (%p2933) target = $region64
        $region63: #{tpu_custom_call.1} parent=55 // pred_region
          _
        $region64: #{tpu_custom_call.1} parent=55 // pred_fallthru
          _
      $region56: #{tpu_custom_call.1} parent=5 // pred_fallthru
        _
      %p2936 = scmp.le.s32.totalorder 2, %s20
      // Predicated region
      $region65: #{tpu_custom_call.1} parent=5 // pred_check
        %p2937 = pneg %p2936
      $region66: #{tpu_custom_call.1} parent=5 // pred_check_branch
        %2939 = sbr.rel (%p2937) target = $region68
      $region67: #{tpu_custom_call.1} parent=5 // pred_region
        %s2940 = ssub.s32 %s20, 2
        // Predicated region
        $region69: #{tpu_custom_call.1} parent=67 // pred_check
          %p2941 = pneg %p243
        $region70: #{tpu_custom_call.1} parent=67 // pred_check_branch
          %2943 = sbr.rel (%p2941) target = $region72
        $region71: #{tpu_custom_call.1} parent=67 // pred_region
          %s2944 = sand.u32 %s228, 1
          %s2945 = scalar_lea.sflag [#allocation5], %s2944
          %s2946 = sand.u32 %s228, 1
          %s2947 = smul.addr %s2946, 256
          %s2948 = scalar_lea.vmem [#allocation4], %s2947
          %2949 = dma.done %s2945, 4096
        $region72: #{tpu_custom_call.1} parent=67 // pred_fallthru
          _
        // Predicated region
        $region73: #{tpu_custom_call.1} parent=67 // pred_check
          %p2950 = pneg %p269
        $region74: #{tpu_custom_call.1} parent=67 // pred_check_branch
          %2952 = sbr.rel (%p2950) target = $region76
        $region75: #{tpu_custom_call.1} parent=67 // pred_region
          %p2953 = scmp.lt.s32.totalorder %s26, 1
          %s2954 = scalar_select %p2953, %s26, 1
          %s2955 = smul.addr %s2954, 11
          %s2956 = smul.addr %s2955, 8
          %s2957 = scalar_lea.vmem %s10, %s2956
        $region76: #{tpu_custom_call.1} parent=67 // pred_fallthru
          _
      $region68: #{tpu_custom_call.1} parent=5 // pred_fallthru
        _
    $region6: #{tpu_custom_call.1} parent=1 // loop_footer
      %s24 = sadd.s32 1, %s20
    $region7: #{tpu_custom_call.1} parent=1 // loop_footer_branch
      %19 = sbr.rel target = $region3
    $region8: #{tpu_custom_call.1} parent=1 // loop_exit
      _
    %2958 = vsyncpa [#allocation5], 1
    %s2959 = scalar_lea.sflag [#allocation5], 1
    %2960 = vsyncpa %s2959, 1

</llo_original>
